<compile_context>
chip_gen: v5e
topology: v5e:2x2
jax: 0.10.0
libtpu: 0.0.40
codegen_flags: <defaults>
</compile_context>

<pallas_src>
import jax
import jax.numpy as jnp
from jax.experimental import pallas as pl
from jax.experimental.pallas import tpu as pltpu

LANES = 128                      # every matmul N is padded to this lane width
VMEM_LIMIT = 32 * 1024 * 1024    # fits v5e/v6e/v7x scoped VMEM; >> our tiles


def _pick_tile(m, target=1024):
    """Largest row tile <= target that divides m (multiple of 8), else m."""
    if m <= target:
        return m
    for t in (2048, 1024, 512, 256, 128, 64, 32, 16, 8):
        if t <= target and m % t == 0:
            return t
    return m


# ---------------------------------------------------------------------------
# Pallas kernels
# ---------------------------------------------------------------------------

def _conv_relu_pool_kernel(p_ref, w_ref, b_ref, o_ref):
    """Fused conv-as-matmul + 2x2 maxpool + bias + ReLU.

    p_ref: (4, TM, K) bf16 -- im2col patches for the 4 corners of each 2x2
                              pooling window (K = kh*kw*Cin).
    w_ref: (K, 128)   bf16 -- conv weights, out-channels zero-padded to 128.
    b_ref: (1, 128)   f32  -- bias, zero-padded.
    o_ref: (TM, 128)  f32  -- maxpool(relu(conv + bias)); pad lanes are 0.
    """
    w = w_ref[...]
    d0 = jnp.dot(p_ref[0], w, preferred_element_type=jnp.float32)
    d1 = jnp.dot(p_ref[1], w, preferred_element_type=jnp.float32)
    d2 = jnp.dot(p_ref[2], w, preferred_element_type=jnp.float32)
    d3 = jnp.dot(p_ref[3], w, preferred_element_type=jnp.float32)
    m = jnp.maximum(jnp.maximum(d0, d1), jnp.maximum(d2, d3))
    o_ref[...] = jnp.maximum(m + b_ref[...], 0.0)


def _fc_fused_kernel(x_ref, w1_ref, b1_ref, w2_ref, b2_ref, w3_ref, b3_ref,
                     o_ref):
    """fc1+ReLU, fc2+ReLU, fc3 fused. All widths padded to 128 lanes."""
    h = jnp.dot(x_ref[...], w1_ref[...], preferred_element_type=jnp.float32)
    h = jnp.maximum(h + b1_ref[...], 0.0)
    h = jnp.dot(h.astype(jnp.bfloat16), w2_ref[...],
                preferred_element_type=jnp.float32)
    h = jnp.maximum(h + b2_ref[...], 0.0)
    h = jnp.dot(h.astype(jnp.bfloat16), w3_ref[...],
                preferred_element_type=jnp.float32)
    o_ref[...] = h + b3_ref[...]


# ---------------------------------------------------------------------------
# Wrappers around pallas_call
# ---------------------------------------------------------------------------

def _pooled_conv_patches(x, kh, kw):
    """x: (B, H, W, Cin) NHWC -> (4, B*PH*PW, kh*kw*Cin) bf16 patches grouped
    by 2x2-pool corner; K ordering is (i, j, ci) to match the packed weights."""
    B, H, W, Cin = x.shape
    OH, OW = H - kh + 1, W - kw + 1
    PH, PW = OH // 2, OW // 2
    corners = []
    for cy in (0, 1):
        for cx in (0, 1):
            cols = []
            for i in range(kh):
                for j in range(kw):
                    sl = x[:, cy + i: cy + i + 2 * PH: 2,
                           cx + j: cx + j + 2 * PW: 2, :]      # (B,PH,PW,Cin)
                    cols.append(sl)
            p = jnp.concatenate(cols, axis=-1)                  # (B,PH,PW,K)
            corners.append(p.reshape(B * PH * PW, kh * kw * Cin))
    return jnp.stack(corners, axis=0).astype(jnp.bfloat16), PH, PW


def conv_relu_pool(x_nhwc, w_packed, b_packed, kh=5, kw=5):
    """(B,H,W,Cin) NHWC -> (B, PH, PW, 128) with maxpool(relu(conv+b)) fused."""
    B = x_nhwc.shape[0]
    patches, PH, PW = _pooled_conv_patches(x_nhwc, kh, kw)
    Mp = B * PH * PW
    K = patches.shape[-1]
    TM = _pick_tile(Mp)
    out = pl.pallas_call(
        _conv_relu_pool_kernel,
        out_shape=jax.ShapeDtypeStruct((Mp, LANES), jnp.float32),
        grid=(Mp // TM,),
        in_specs=[
            pl.BlockSpec((4, TM, K), lambda m: (0, m, 0)),
            pl.BlockSpec((K, LANES), lambda m: (0, 0)),
            pl.BlockSpec((1, LANES), lambda m: (0, 0)),
        ],
        out_specs=pl.BlockSpec((TM, LANES), lambda m: (m, 0)),
        compiler_params=pltpu.CompilerParams(
            dimension_semantics=("parallel",),
            vmem_limit_bytes=VMEM_LIMIT,
        ),
    )(patches, w_packed, b_packed)
    return out.reshape(B, PH, PW, LANES)


def fc_head(x_flat, params):
    """x_flat: (B, 5*5*128) bf16 (padded NHWC flatten of conv2) -> (B, 128)."""
    B, K = x_flat.shape
    TB = _pick_tile(B, target=512)
    return pl.pallas_call(
        _fc_fused_kernel,
        out_shape=jax.ShapeDtypeStruct((B, LANES), jnp.float32),
        grid=(B // TB,),
        in_specs=[
            pl.BlockSpec((TB, K), lambda m: (m, 0)),
            pl.BlockSpec((K, LANES), lambda m: (0, 0)),
            pl.BlockSpec((1, LANES), lambda m: (0, 0)),
            pl.BlockSpec((LANES, LANES), lambda m: (0, 0)),
            pl.BlockSpec((1, LANES), lambda m: (0, 0)),
            pl.BlockSpec((LANES, LANES), lambda m: (0, 0)),
            pl.BlockSpec((1, LANES), lambda m: (0, 0)),
        ],
        out_specs=pl.BlockSpec((TB, LANES), lambda m: (m, 0)),
        compiler_params=pltpu.CompilerParams(
            dimension_semantics=("parallel",),
            vmem_limit_bytes=VMEM_LIMIT,
        ),
    )(x_flat, params["w1"], params["b1"], params["w2"], params["b2"],
      params["w3"], params["b3"])


# ---------------------------------------------------------------------------
# Parameters: PyTorch-style init (torch layout), then one-time packing
# ---------------------------------------------------------------------------

def init_params(key):
    def uniform(k, shape, fan_in):
        bound = 1.0 / float(fan_in) ** 0.5
        return jax.random.uniform(k, shape, jnp.float32, -bound, bound)

    keys = jax.random.split(key, 10)
    return {
        "conv1_w": uniform(keys[0], (6, 3, 5, 5), 3 * 5 * 5),
        "conv1_b": uniform(keys[1], (6,), 3 * 5 * 5),
        "conv2_w": uniform(keys[2], (16, 6, 5, 5), 6 * 5 * 5),
        "conv2_b": uniform(keys[3], (16,), 6 * 5 * 5),
        "fc1_w": uniform(keys[4], (120, 16 * 5 * 5), 16 * 5 * 5),
        "fc1_b": uniform(keys[5], (120,), 16 * 5 * 5),
        "fc2_w": uniform(keys[6], (84, 120), 120),
        "fc2_b": uniform(keys[7], (84,), 120),
        "fc3_w": uniform(keys[8], (10, 84), 84),
        "fc3_b": uniform(keys[9], (10,), 84),
    }


def prepare_params(raw):
    """One-time packing: pad N to 128 lanes, reorder conv weights to the
    (i, j, ci) patch K-order, fold the flatten permutation + channel padding
    into fc1, cast MXU operands to bf16 (biases stay f32)."""
    def conv_pack(w, b):
        cout, cin, kh, kw = w.shape
        w2 = jnp.transpose(w, (2, 3, 1, 0)).reshape(kh * kw * cin, cout)
        wp = jnp.zeros((kh * kw * cin, LANES), jnp.float32).at[:, :cout].set(w2)
        bp = jnp.zeros((1, LANES), jnp.float32).at[0, :cout].set(b)
        return wp.astype(jnp.bfloat16), bp

    c1_w, c1_b = conv_pack(raw["conv1_w"], raw["conv1_b"])
    c2_w, c2_b = conv_pack(raw["conv2_w"], raw["conv2_b"])

    # fc1 consumes the conv2 output directly in its padded-NHWC layout:
    # flat index = (h*5 + w)*128 + c  (c < 16 real, padded lanes are exact 0).
    w1 = raw["fc1_w"].reshape(120, 16, 5, 5).transpose(2, 3, 1, 0)  # (5,5,16,120)
    w1p = jnp.zeros((5, 5, LANES, LANES), jnp.float32)
    w1p = w1p.at[:, :, :16, :120].set(w1).reshape(5 * 5 * LANES, LANES)
    b1p = jnp.zeros((1, LANES), jnp.float32).at[0, :120].set(raw["fc1_b"])

    w2p = jnp.zeros((LANES, LANES), jnp.float32).at[:120, :84].set(raw["fc2_w"].T)
    b2p = jnp.zeros((1, LANES), jnp.float32).at[0, :84].set(raw["fc2_b"])
    w3p = jnp.zeros((LANES, LANES), jnp.float32).at[:84, :10].set(raw["fc3_w"].T)
    b3p = jnp.zeros((1, LANES), jnp.float32).at[0, :10].set(raw["fc3_b"])

    return {
        "c1_w": c1_w, "c1_b": c1_b, "c2_w": c2_w, "c2_b": c2_b,
        "w1": w1p.astype(jnp.bfloat16), "b1": b1p,
        "w2": w2p.astype(jnp.bfloat16), "b2": b2p,
        "w3": w3p.astype(jnp.bfloat16), "b3": b3p,
    }


# ---------------------------------------------------------------------------
# Forward pass (matches Net.forward semantics)
# ---------------------------------------------------------------------------

def net_forward(params, x):
    # x: (B, 3, 32, 32) f32 NCHW (PyTorch convention)
    B = x.shape[0]
    x = jnp.transpose(x, (0, 2, 3, 1))                        # NHWC (B,32,32,3)
    a1 = conv_relu_pool(x, params["c1_w"], params["c1_b"])    # (B,14,14,128)
    a1 = a1[..., :6]                                          # drop zero pad lanes
    a2 = conv_relu_pool(a1, params["c2_w"], params["c2_b"])   # (B,5,5,128)
    flat = a2.reshape(B, 5 * 5 * LANES).astype(jnp.bfloat16)  # pad lanes exact 0
    logits = fc_head(flat, params)                            # (B,128)
    return logits[:, :10]


# Pure-JAX f32 reference (for correctness check only).
def net_reference(raw, x):
    def conv(x, w, b):
        y = jax.lax.conv_general_dilated(
            x, w, (1, 1), "VALID", dimension_numbers=("NCHW", "OIHW", "NCHW"))
        return jax.nn.relu(y + b[None, :, None, None])

    def pool(x):
        return jax.lax.reduce_window(x, -jnp.inf, jax.lax.max,
                                     (1, 1, 2, 2), (1, 1, 2, 2), "VALID")

    x = pool(conv(x, raw["conv1_w"], raw["conv1_b"]))
    x = pool(conv(x, raw["conv2_w"], raw["conv2_b"]))
    x = x.reshape(x.shape[0], -1)
    x = jax.nn.relu(x @ raw["fc1_w"].T + raw["fc1_b"])
    x = jax.nn.relu(x @ raw["fc2_w"].T + raw["fc2_b"])
    return x @ raw["fc3_w"].T + raw["fc3_b"]


if __name__ == "__main__":
    key = jax.random.PRNGKey(0)
    pkey, xkey = jax.random.split(key)
    raw = init_params(pkey)
    params = prepare_params(raw)
    # Spatial size must be 32x32 so the flatten hits 16*5*5, as the module implies.
    x = jax.random.normal(xkey, (2, 3, 32, 32), jnp.float32)

    out = jax.jit(net_forward)(params, x)
    out = jax.block_until_ready(out)

    assert out.shape == (2, 10), out.shape
    assert out.dtype == jnp.float32

    ref = net_reference(raw, x)
    err = float(jnp.max(jnp.abs(out - ref)))
    assert err < 0.15, f"max abs error vs reference too large: {err}"

    print("KERNEL_OK")
</pallas_src>

<mosaic_0001>
module attributes {stable_mosaic.version = 11 : i64} {
  func.func @_conv_relu_pool_kernel(%arg0: i32, %arg1: memref<4x392x75xbf16, #tpu.memory_space<vmem>>, %arg2: memref<75x128xbf16, #tpu.memory_space<vmem>>, %arg3: memref<1x128xf32, #tpu.memory_space<vmem>>, %arg4: memref<392x128xf32, #tpu.memory_space<vmem>>) attributes {dimension_semantics = [#tpu.dimension_semantics<parallel>], iteration_bounds = array<i64: 1>, scalar_prefetch = 0 : i64, scratch_operands = 0 : i64, tpu.core_type = #tpu.core_type<tc>, window_params = [{transform_indices = @transform_0, window_bounds = array<i64: 4, 392, 75>}, {pipeline_mode = #tpu.pipeline_mode<synchronous>, transform_indices = @transform_1, window_bounds = array<i64: 75, 128>}, {pipeline_mode = #tpu.pipeline_mode<synchronous>, transform_indices = @transform_2, window_bounds = array<i64: 1, 128>}, {transform_indices = @transform_3, window_bounds = array<i64: 392, 128>}]} {
    %c0 = arith.constant 0 : index
    %c0_0 = arith.constant 0 : index
    %0 = vector.load %arg2[%c0, %c0_0] : memref<75x128xbf16, #tpu.memory_space<vmem>>, vector<75x128xbf16>
    %c0_1 = arith.constant 0 : index
    %c0_2 = arith.constant 0 : index
    %c0_3 = arith.constant 0 : index
    %1 = vector.load %arg1[%c0_1, %c0_2, %c0_3] : memref<4x392x75xbf16, #tpu.memory_space<vmem>>, vector<1x392x75xbf16>
    %2 = vector.shape_cast %1 : vector<1x392x75xbf16> to vector<392x75xbf16>
    %cst = arith.constant dense<0.000000e+00> : vector<392x128xf32>
    %3 = tpu.matmul %2, %0, %cst {dimension_numbers = #tpu.dot_dimension_numbers<[1], [0], [0], [1], [0, 0, 1, 1], [], []>} : vector<392x75xbf16>, vector<75x128xbf16>, vector<392x128xf32> -> vector<392x128xf32>
    %c1 = arith.constant 1 : index
    %c0_4 = arith.constant 0 : index
    %c0_5 = arith.constant 0 : index
    %4 = vector.load %arg1[%c1, %c0_4, %c0_5] : memref<4x392x75xbf16, #tpu.memory_space<vmem>>, vector<1x392x75xbf16>
    %5 = vector.shape_cast %4 : vector<1x392x75xbf16> to vector<392x75xbf16>
    %cst_6 = arith.constant dense<0.000000e+00> : vector<392x128xf32>
    %6 = tpu.matmul %5, %0, %cst_6 {dimension_numbers = #tpu.dot_dimension_numbers<[1], [0], [0], [1], [0, 0, 1, 1], [], []>} : vector<392x75xbf16>, vector<75x128xbf16>, vector<392x128xf32> -> vector<392x128xf32>
    %c2 = arith.constant 2 : index
    %c0_7 = arith.constant 0 : index
    %c0_8 = arith.constant 0 : index
    %7 = vector.load %arg1[%c2, %c0_7, %c0_8] : memref<4x392x75xbf16, #tpu.memory_space<vmem>>, vector<1x392x75xbf16>
    %8 = vector.shape_cast %7 : vector<1x392x75xbf16> to vector<392x75xbf16>
    %cst_9 = arith.constant dense<0.000000e+00> : vector<392x128xf32>
    %9 = tpu.matmul %8, %0, %cst_9 {dimension_numbers = #tpu.dot_dimension_numbers<[1], [0], [0], [1], [0, 0, 1, 1], [], []>} : vector<392x75xbf16>, vector<75x128xbf16>, vector<392x128xf32> -> vector<392x128xf32>
    %c3 = arith.constant 3 : index
    %c0_10 = arith.constant 0 : index
    %c0_11 = arith.constant 0 : index
    %10 = vector.load %arg1[%c3, %c0_10, %c0_11] : memref<4x392x75xbf16, #tpu.memory_space<vmem>>, vector<1x392x75xbf16>
    %11 = vector.shape_cast %10 : vector<1x392x75xbf16> to vector<392x75xbf16>
    %cst_12 = arith.constant dense<0.000000e+00> : vector<392x128xf32>
    %12 = tpu.matmul %11, %0, %cst_12 {dimension_numbers = #tpu.dot_dimension_numbers<[1], [0], [0], [1], [0, 0, 1, 1], [], []>} : vector<392x75xbf16>, vector<75x128xbf16>, vector<392x128xf32> -> vector<392x128xf32>
    %13 = arith.maximumf %3, %6 : vector<392x128xf32>
    %14 = arith.maximumf %9, %12 : vector<392x128xf32>
    %15 = arith.maximumf %13, %14 : vector<392x128xf32>
    %c0_13 = arith.constant 0 : index
    %c0_14 = arith.constant 0 : index
    %16 = vector.load %arg3[%c0_13, %c0_14] : memref<1x128xf32, #tpu.memory_space<vmem>>, vector<1x128xf32>
    %17 = vector.broadcast %16 : vector<1x128xf32> to vector<392x128xf32>
    %18 = arith.addf %15, %17 : vector<392x128xf32>
    %cst_15 = arith.constant 0.000000e+00 : f32
    %19 = vector.broadcast %cst_15 : f32 to vector<392x128xf32>
    %20 = arith.maximumf %18, %19 : vector<392x128xf32>
    %c0_16 = arith.constant 0 : index
    %c0_17 = arith.constant 0 : index
    %21 = vector.load %arg4[%c0_16, %c0_17] : memref<392x128xf32, #tpu.memory_space<vmem>>, vector<392x128xf32>
    tpu.vector_store %arg4[%c0_16, %c0_17], %20 {strides = array<i32>} : memref<392x128xf32, #tpu.memory_space<vmem>>, vector<392x128xf32>,
    return
  }
  func.func @transform_0(%arg0: i32) -> (i32, i32, i32) {
    %c0_i32 = arith.constant 0 : i32
    %c0_i32_0 = arith.constant 0 : i32
    %c0_i32_1 = arith.constant 0 : i32
    return %c0_i32, %arg0, %c0_i32_0 : i32, i32, i32
  }
  func.func @transform_1(%arg0: i32) -> (i32, i32) {
    %c0_i32 = arith.constant 0 : i32
    %c0_i32_0 = arith.constant 0 : i32
    %c0_i32_1 = arith.constant 0 : i32
    return %c0_i32, %c0_i32_0 : i32, i32
  }
  func.func @transform_2(%arg0: i32) -> (i32, i32) {
    %c0_i32 = arith.constant 0 : i32
    %c0_i32_0 = arith.constant 0 : i32
    %c0_i32_1 = arith.constant 0 : i32
    return %c0_i32, %c0_i32_0 : i32, i32
  }
  func.func @transform_3(%arg0: i32) -> (i32, i32) {
    %c0_i32 = arith.constant 0 : i32
    %c0_i32_0 = arith.constant 0 : i32
    return %arg0, %c0_i32 : i32, i32
  }
}

module attributes {stable_mosaic.version = 11 : i64} {
  func.func @_conv_relu_pool_kernel(%arg0: i32, %arg1: memref<4x50x150xbf16, #tpu.memory_space<vmem>>, %arg2: memref<150x128xbf16, #tpu.memory_space<vmem>>, %arg3: memref<1x128xf32, #tpu.memory_space<vmem>>, %arg4: memref<50x128xf32, #tpu.memory_space<vmem>>) attributes {dimension_semantics = [#tpu.dimension_semantics<parallel>], iteration_bounds = array<i64: 1>, scalar_prefetch = 0 : i64, scratch_operands = 0 : i64, tpu.core_type = #tpu.core_type<tc>, window_params = [{transform_indices = @transform_0, window_bounds = array<i64: 4, 50, 150>}, {pipeline_mode = #tpu.pipeline_mode<synchronous>, transform_indices = @transform_1, window_bounds = array<i64: 150, 128>}, {pipeline_mode = #tpu.pipeline_mode<synchronous>, transform_indices = @transform_2, window_bounds = array<i64: 1, 128>}, {transform_indices = @transform_3, window_bounds = array<i64: 50, 128>}]} {
    %c0 = arith.constant 0 : index
    %c0_0 = arith.constant 0 : index
    %0 = vector.load %arg2[%c0, %c0_0] : memref<150x128xbf16, #tpu.memory_space<vmem>>, vector<150x128xbf16>
    %c0_1 = arith.constant 0 : index
    %c0_2 = arith.constant 0 : index
    %c0_3 = arith.constant 0 : index
    %1 = vector.load %arg1[%c0_1, %c0_2, %c0_3] : memref<4x50x150xbf16, #tpu.memory_space<vmem>>, vector<1x50x150xbf16>
    %2 = vector.shape_cast %1 : vector<1x50x150xbf16> to vector<50x150xbf16>
    %cst = arith.constant dense<0.000000e+00> : vector<50x128xf32>
    %3 = tpu.matmul %2, %0, %cst {dimension_numbers = #tpu.dot_dimension_numbers<[1], [0], [0], [1], [0, 0, 1, 1], [], []>} : vector<50x150xbf16>, vector<150x128xbf16>, vector<50x128xf32> -> vector<50x128xf32>
    %c1 = arith.constant 1 : index
    %c0_4 = arith.constant 0 : index
    %c0_5 = arith.constant 0 : index
    %4 = vector.load %arg1[%c1, %c0_4, %c0_5] : memref<4x50x150xbf16, #tpu.memory_space<vmem>>, vector<1x50x150xbf16>
    %5 = vector.shape_cast %4 : vector<1x50x150xbf16> to vector<50x150xbf16>
    %cst_6 = arith.constant dense<0.000000e+00> : vector<50x128xf32>
    %6 = tpu.matmul %5, %0, %cst_6 {dimension_numbers = #tpu.dot_dimension_numbers<[1], [0], [0], [1], [0, 0, 1, 1], [], []>} : vector<50x150xbf16>, vector<150x128xbf16>, vector<50x128xf32> -> vector<50x128xf32>
    %c2 = arith.constant 2 : index
    %c0_7 = arith.constant 0 : index
    %c0_8 = arith.constant 0 : index
    %7 = vector.load %arg1[%c2, %c0_7, %c0_8] : memref<4x50x150xbf16, #tpu.memory_space<vmem>>, vector<1x50x150xbf16>
    %8 = vector.shape_cast %7 : vector<1x50x150xbf16> to vector<50x150xbf16>
    %cst_9 = arith.constant dense<0.000000e+00> : vector<50x128xf32>
    %9 = tpu.matmul %8, %0, %cst_9 {dimension_numbers = #tpu.dot_dimension_numbers<[1], [0], [0], [1], [0, 0, 1, 1], [], []>} : vector<50x150xbf16>, vector<150x128xbf16>, vector<50x128xf32> -> vector<50x128xf32>
    %c3 = arith.constant 3 : index
    %c0_10 = arith.constant 0 : index
    %c0_11 = arith.constant 0 : index
    %10 = vector.load %arg1[%c3, %c0_10, %c0_11] : memref<4x50x150xbf16, #tpu.memory_space<vmem>>, vector<1x50x150xbf16>
    %11 = vector.shape_cast %10 : vector<1x50x150xbf16> to vector<50x150xbf16>
    %cst_12 = arith.constant dense<0.000000e+00> : vector<50x128xf32>
    %12 = tpu.matmul %11, %0, %cst_12 {dimension_numbers = #tpu.dot_dimension_numbers<[1], [0], [0], [1], [0, 0, 1, 1], [], []>} : vector<50x150xbf16>, vector<150x128xbf16>, vector<50x128xf32> -> vector<50x128xf32>
    %13 = arith.maximumf %3, %6 : vector<50x128xf32>
    %14 = arith.maximumf %9, %12 : vector<50x128xf32>
    %15 = arith.maximumf %13, %14 : vector<50x128xf32>
    %c0_13 = arith.constant 0 : index
    %c0_14 = arith.constant 0 : index
    %16 = vector.load %arg3[%c0_13, %c0_14] : memref<1x128xf32, #tpu.memory_space<vmem>>, vector<1x128xf32>
    %17 = vector.broadcast %16 : vector<1x128xf32> to vector<50x128xf32>
    %18 = arith.addf %15, %17 : vector<50x128xf32>
    %cst_15 = arith.constant 0.000000e+00 : f32
    %19 = vector.broadcast %cst_15 : f32 to vector<50x128xf32>
    %20 = arith.maximumf %18, %19 : vector<50x128xf32>
    %c0_16 = arith.constant 0 : index
    %c0_17 = arith.constant 0 : index
    %21 = vector.load %arg4[%c0_16, %c0_17] : memref<50x128xf32, #tpu.memory_space<vmem>>, vector<50x128xf32>
    tpu.vector_store %arg4[%c0_16, %c0_17], %20 {strides = array<i32>} : memref<50x128xf32, #tpu.memory_space<vmem>>, vector<50x128xf32>,
    return
  }
  func.func @transform_0(%arg0: i32) -> (i32, i32, i32) {
    %c0_i32 = arith.constant 0 : i32
    %c0_i32_0 = arith.constant 0 : i32
    %c0_i32_1 = arith.constant 0 : i32
    return %c0_i32, %arg0, %c0_i32_0 : i32, i32, i32
  }
  func.func @transform_1(%arg0: i32) -> (i32, i32) {
    %c0_i32 = arith.constant 0 : i32
    %c0_i32_0 = arith.constant 0 : i32
    %c0_i32_1 = arith.constant 0 : i32
    return %c0_i32, %c0_i32_0 : i32, i32
  }
  func.func @transform_2(%arg0: i32) -> (i32, i32) {
    %c0_i32 = arith.constant 0 : i32
    %c0_i32_0 = arith.constant 0 : i32
    %c0_i32_1 = arith.constant 0 : i32
    return %c0_i32, %c0_i32_0 : i32, i32
  }
  func.func @transform_3(%arg0: i32) -> (i32, i32) {
    %c0_i32 = arith.constant 0 : i32
    %c0_i32_0 = arith.constant 0 : i32
    return %arg0, %c0_i32 : i32, i32
  }
}

module attributes {stable_mosaic.version = 11 : i64} {
  func.func @_fc_fused_kernel(%arg0: i32, %arg1: memref<2x3200xbf16, #tpu.memory_space<vmem>>, %arg2: memref<3200x128xbf16, #tpu.memory_space<vmem>>, %arg3: memref<1x128xf32, #tpu.memory_space<vmem>>, %arg4: memref<128x128xbf16, #tpu.memory_space<vmem>>, %arg5: memref<1x128xf32, #tpu.memory_space<vmem>>, %arg6: memref<128x128xbf16, #tpu.memory_space<vmem>>, %arg7: memref<1x128xf32, #tpu.memory_space<vmem>>, %arg8: memref<2x128xf32, #tpu.memory_space<vmem>>) attributes {dimension_semantics = [#tpu.dimension_semantics<parallel>], iteration_bounds = array<i64: 1>, scalar_prefetch = 0 : i64, scratch_operands = 0 : i64, tpu.core_type = #tpu.core_type<tc>, window_params = [{transform_indices = @transform_0, window_bounds = array<i64: 2, 3200>}, {pipeline_mode = #tpu.pipeline_mode<synchronous>, transform_indices = @transform_1, window_bounds = array<i64: 3200, 128>}, {pipeline_mode = #tpu.pipeline_mode<synchronous>, transform_indices = @transform_2, window_bounds = array<i64: 1, 128>}, {pipeline_mode = #tpu.pipeline_mode<synchronous>, transform_indices = @transform_3, window_bounds = array<i64: 128, 128>}, {pipeline_mode = #tpu.pipeline_mode<synchronous>, transform_indices = @transform_4, window_bounds = array<i64: 1, 128>}, {pipeline_mode = #tpu.pipeline_mode<synchronous>, transform_indices = @transform_5, window_bounds = array<i64: 128, 128>}, {pipeline_mode = #tpu.pipeline_mode<synchronous>, transform_indices = @transform_6, window_bounds = array<i64: 1, 128>}, {transform_indices = @transform_7, window_bounds = array<i64: 2, 128>}]} {
    %c0 = arith.constant 0 : index
    %c0_0 = arith.constant 0 : index
    %0 = vector.load %arg1[%c0, %c0_0] : memref<2x3200xbf16, #tpu.memory_space<vmem>>, vector<2x3200xbf16>
    %c0_1 = arith.constant 0 : index
    %c0_2 = arith.constant 0 : index
    %1 = vector.load %arg2[%c0_1, %c0_2] : memref<3200x128xbf16, #tpu.memory_space<vmem>>, vector<3200x128xbf16>
    %cst = arith.constant dense<0.000000e+00> : vector<2x128xf32>
    %2 = tpu.matmul %0, %1, %cst {dimension_numbers = #tpu.dot_dimension_numbers<[1], [0], [0], [1], [0, 0, 1, 1], [], []>} : vector<2x3200xbf16>, vector<3200x128xbf16>, vector<2x128xf32> -> vector<2x128xf32>
    %c0_3 = arith.constant 0 : index
    %c0_4 = arith.constant 0 : index
    %3 = vector.load %arg3[%c0_3, %c0_4] : memref<1x128xf32, #tpu.memory_space<vmem>>, vector<1x128xf32>
    %4 = vector.broadcast %3 : vector<1x128xf32> to vector<2x128xf32>
    %5 = arith.addf %2, %4 : vector<2x128xf32>
    %cst_5 = arith.constant 0.000000e+00 : f32
    %6 = vector.broadcast %cst_5 : f32 to vector<2x128xf32>
    %7 = arith.maximumf %5, %6 : vector<2x128xf32>
    %8 = arith.truncf %7 : vector<2x128xf32> to vector<2x128xbf16>
    %c0_6 = arith.constant 0 : index
    %c0_7 = arith.constant 0 : index
    %9 = vector.load %arg4[%c0_6, %c0_7] : memref<128x128xbf16, #tpu.memory_space<vmem>>, vector<128x128xbf16>
    %cst_8 = arith.constant dense<0.000000e+00> : vector<2x128xf32>
    %10 = tpu.matmul %8, %9, %cst_8 {dimension_numbers = #tpu.dot_dimension_numbers<[1], [0], [0], [1], [0, 0, 1, 1], [], []>} : vector<2x128xbf16>, vector<128x128xbf16>, vector<2x128xf32> -> vector<2x128xf32>
    %c0_9 = arith.constant 0 : index
    %c0_10 = arith.constant 0 : index
    %11 = vector.load %arg5[%c0_9, %c0_10] : memref<1x128xf32, #tpu.memory_space<vmem>>, vector<1x128xf32>
    %12 = vector.broadcast %11 : vector<1x128xf32> to vector<2x128xf32>
    %13 = arith.addf %10, %12 : vector<2x128xf32>
    %cst_11 = arith.constant 0.000000e+00 : f32
    %14 = vector.broadcast %cst_11 : f32 to vector<2x128xf32>
    %15 = arith.maximumf %13, %14 : vector<2x128xf32>
    %16 = arith.truncf %15 : vector<2x128xf32> to vector<2x128xbf16>
    %c0_12 = arith.constant 0 : index
    %c0_13 = arith.constant 0 : index
    %17 = vector.load %arg6[%c0_12, %c0_13] : memref<128x128xbf16, #tpu.memory_space<vmem>>, vector<128x128xbf16>
    %cst_14 = arith.constant dense<0.000000e+00> : vector<2x128xf32>
    %18 = tpu.matmul %16, %17, %cst_14 {dimension_numbers = #tpu.dot_dimension_numbers<[1], [0], [0], [1], [0, 0, 1, 1], [], []>} : vector<2x128xbf16>, vector<128x128xbf16>, vector<2x128xf32> -> vector<2x128xf32>
    %c0_15 = arith.constant 0 : index
    %c0_16 = arith.constant 0 : index
    %19 = vector.load %arg7[%c0_15, %c0_16] : memref<1x128xf32, #tpu.memory_space<vmem>>, vector<1x128xf32>
    %20 = vector.broadcast %19 : vector<1x128xf32> to vector<2x128xf32>
    %21 = arith.addf %18, %20 : vector<2x128xf32>
    %c0_17 = arith.constant 0 : index
    %c0_18 = arith.constant 0 : index
    %22 = vector.load %arg8[%c0_17, %c0_18] : memref<2x128xf32, #tpu.memory_space<vmem>>, vector<2x128xf32>
    tpu.vector_store %arg8[%c0_17, %c0_18], %21 {strides = array<i32>} : memref<2x128xf32, #tpu.memory_space<vmem>>, vector<2x128xf32>,
    return
  }
  func.func @transform_0(%arg0: i32) -> (i32, i32) {
    %c0_i32 = arith.constant 0 : i32
    %c0_i32_0 = arith.constant 0 : i32
    return %arg0, %c0_i32 : i32, i32
  }
  func.func @transform_1(%arg0: i32) -> (i32, i32) {
    %c0_i32 = arith.constant 0 : i32
    %c0_i32_0 = arith.constant 0 : i32
    %c0_i32_1 = arith.constant 0 : i32
    return %c0_i32, %c0_i32_0 : i32, i32
  }
  func.func @transform_2(%arg0: i32) -> (i32, i32) {
    %c0_i32 = arith.constant 0 : i32
    %c0_i32_0 = arith.constant 0 : i32
    %c0_i32_1 = arith.constant 0 : i32
    return %c0_i32, %c0_i32_0 : i32, i32
  }
  func.func @transform_3(%arg0: i32) -> (i32, i32) {
    %c0_i32 = arith.constant 0 : i32
    %c0_i32_0 = arith.constant 0 : i32
    %c0_i32_1 = arith.constant 0 : i32
    return %c0_i32, %c0_i32_0 : i32, i32
  }
  func.func @transform_4(%arg0: i32) -> (i32, i32) {
    %c0_i32 = arith.constant 0 : i32
    %c0_i32_0 = arith.constant 0 : i32
    %c0_i32_1 = arith.constant 0 : i32
    return %c0_i32, %c0_i32_0 : i32, i32
  }
  func.func @transform_5(%arg0: i32) -> (i32, i32) {
    %c0_i32 = arith.constant 0 : i32
    %c0_i32_0 = arith.constant 0 : i32
    %c0_i32_1 = arith.constant 0 : i32
    return %c0_i32, %c0_i32_0 : i32, i32
  }
  func.func @transform_6(%arg0: i32) -> (i32, i32) {
    %c0_i32 = arith.constant 0 : i32
    %c0_i32_0 = arith.constant 0 : i32
    %c0_i32_1 = arith.constant 0 : i32
    return %c0_i32, %c0_i32_0 : i32, i32
  }
  func.func @transform_7(%arg0: i32) -> (i32, i32) {
    %c0_i32 = arith.constant 0 : i32
    %c0_i32_0 = arith.constant 0 : i32
    return %arg0, %c0_i32 : i32, i32
  }
}

</mosaic_0001>

<llo_original>
// kernel: net_forward.3
$region0: #{net_forward.3}
  #allocation0 [shape = 'u32[]', space=smem, size = 0x4, offset = 0x4, fixed_abs, tag = 'smem constant byte address 0x4 - core index']
  #allocation1 [shape = 'u32[72,128]{1,0:T(1,128)}', space=vmem, size = 0x9000, scoped, tag = 'internal scratch']
  %s0 = inlined_call_operand.vmem [shape: bf16[4,392,75], index: 0, kind: input, shape index: {}]
  %s1 = inlined_call_operand.vmem [shape: bf16[75,128], index: 1, kind: input, shape index: {}]
  %s2 = inlined_call_operand.vmem [shape: f32[1,128], index: 2, kind: input, shape index: {}]
  %s3 = inlined_call_operand.vmem [shape: f32[392,128], index: 3, kind: output, shape index: {}]
  %s4 = sld [smem:[#allocation0]]
  $region22: #{net_forward.3} parent=0
    _
  %s6 = ssub.s32 1, %s4
  %s7 = scalar_select 0, %s6, %s4
  // Predicated region
  $region2: #{net_forward.3} parent=0 // pred_check
    _
  $region3: #{net_forward.3} parent=0 // pred_check_branch
    %9 = sbr.rel (0) target = $region5
  $region4: #{net_forward.3} parent=0 // pred_region
    _
  $region5: #{net_forward.3} parent=0 // pred_fallthru
    _
  // Predicated region
  $region6: #{net_forward.3} parent=0 // pred_check
    _
  $region7: #{net_forward.3} parent=0 // pred_check_branch
    %11 = sbr.rel (0) target = $region9
  $region8: #{net_forward.3} parent=0 // pred_region
    _
  $region9: #{net_forward.3} parent=0 // pred_fallthru
    _
  // Predicated region
  $region10: #{net_forward.3} parent=0 // pred_check
    _
  $region11: #{net_forward.3} parent=0 // pred_check_branch
    %13 = sbr.rel (0) target = $region13
  $region12: #{net_forward.3} parent=0 // pred_region
    _
  $region13: #{net_forward.3} parent=0 // pred_fallthru
    _
  %v15 = vld [vmem:[%s1] sm:$0xf]
  %v16 = vld [vmem:[%s1 + $0x4] sm:$0xf]
  %v17 = vld [vmem:[%s1 + $0x8] sm:$0xf]
  %v18 = vld [vmem:[%s1 + $0xc] sm:$0xf]
  %v19 = vld [vmem:[%s1 + $0x10] sm:$0xf]
  %v20 = vld [vmem:[%s1 + $0x14] sm:$0xf]
  %v21 = vld [vmem:[%s1 + $0x18] sm:$0xf]
  %v22 = vld [vmem:[%s1 + $0x1c] sm:$0xf]
  %v23 = vld [vmem:[%s1 + $0x20] sm:$0xf]
  %v24 = vld [vmem:[%s1 + $0x24] sm:$0x3]
  %v25 = vld [vmem:[%s0] sm:$0xf]
  %v26 = vld [vmem:[%s0 + $0x4] sm:$0xf]
  %v27 = vld [vmem:[%s0 + $0x8] sm:$0xf]
  %v28 = vld [vmem:[%s0 + $0xc] sm:$0xf]
  %v29 = vld [vmem:[%s0 + $0x10] sm:$0xf]
  %v30 = vld [vmem:[%s0 + $0x14] sm:$0xf]
  %v31 = vld [vmem:[%s0 + $0x18] sm:$0xf]
  %v32 = vld [vmem:[%s0 + $0x1c] sm:$0xf]
  %v33 = vld [vmem:[%s0 + $0x20] sm:$0xf]
  %v34 = vld [vmem:[%s0 + $0x24] sm:$0xf]
  %v35 = vld [vmem:[%s0 + $0x28] sm:$0xf]
  %v36 = vld [vmem:[%s0 + $0x2c] sm:$0xf]
  %v37 = vld [vmem:[%s0 + $0x30] sm:$0xf]
  %v38 = vld [vmem:[%s0 + $0x34] sm:$0xf]
  %v39 = vld [vmem:[%s0 + $0x38] sm:$0xf]
  %v40 = vld [vmem:[%s0 + $0x3c] sm:$0xf]
  %v41 = vld [vmem:[%s0 + $0x40] sm:$0xf]
  %v42 = vld [vmem:[%s0 + $0x44] sm:$0xf]
  %v43 = vld [vmem:[%s0 + $0x48] sm:$0xf]
  %v44 = vld [vmem:[%s0 + $0x4c] sm:$0xf]
  %v45 = vld [vmem:[%s0 + $0x50] sm:$0xf]
  %v46 = vld [vmem:[%s0 + $0x54] sm:$0xf]
  %v47 = vld [vmem:[%s0 + $0x58] sm:$0xf]
  %v48 = vld [vmem:[%s0 + $0x5c] sm:$0xf]
  %v49 = vld [vmem:[%s0 + $0x60] sm:$0xf]
  %v50 = vld [vmem:[%s0 + $0x64] sm:$0xf]
  %v51 = vld [vmem:[%s0 + $0x68] sm:$0xf]
  %v52 = vld [vmem:[%s0 + $0x6c] sm:$0xf]
  %v53 = vld [vmem:[%s0 + $0x70] sm:$0xf]
  %v54 = vld [vmem:[%s0 + $0x74] sm:$0xf]
  %v55 = vld [vmem:[%s0 + $0x78] sm:$0xf]
  %v56 = vld [vmem:[%s0 + $0x7c] sm:$0xf]
  %v57 = vld [vmem:[%s0 + $0x80] sm:$0xf]
  %v58 = vld [vmem:[%s0 + $0x84] sm:$0xf]
  %v59 = vld [vmem:[%s0 + $0x88] sm:$0xf]
  %v60 = vld [vmem:[%s0 + $0x8c] sm:$0xf]
  %v61 = vld [vmem:[%s0 + $0x90] sm:$0xf]
  %v62 = vld [vmem:[%s0 + $0x94] sm:$0xf]
  %v63 = vld [vmem:[%s0 + $0x98] sm:$0xf]
  %v64 = vld [vmem:[%s0 + $0x9c] sm:$0xf]
  %v65 = vld [vmem:[%s0 + $0xa0] sm:$0xf]
  %v66 = vld [vmem:[%s0 + $0xa4] sm:$0xf]
  %v67 = vld [vmem:[%s0 + $0xa8] sm:$0xf]
  %v68 = vld [vmem:[%s0 + $0xac] sm:$0xf]
  %v69 = vld [vmem:[%s0 + $0xb0] sm:$0xf]
  %v70 = vld [vmem:[%s0 + $0xb4] sm:$0xf]
  %v71 = vld [vmem:[%s0 + $0xb8] sm:$0xf]
  %v72 = vld [vmem:[%s0 + $0xbc] sm:$0xf]
  %v73 = vld [vmem:[%s0 + $0xc0] sm:$0xf]
  %v123 = vunpack.c.l.b16 %v25
  %v124 = vunpack.c.l.b16 %v26
  %v125 = vunpack.c.l.b16 %v27
  %v126 = vunpack.c.l.b16 %v28
  %v127 = vunpack.c.l.b16 %v29
  %v128 = vunpack.c.l.b16 %v30
  %v129 = vunpack.c.l.b16 %v31
  %v130 = vunpack.c.l.b16 %v32
  %v131 = vunpack.c.l.b16 %v33
  %v132 = vunpack.c.l.b16 %v34
  %v133 = vunpack.c.l.b16 %v35
  %v134 = vunpack.c.l.b16 %v36
  %v135 = vunpack.c.l.b16 %v37
  %v136 = vunpack.c.l.b16 %v38
  %v137 = vunpack.c.l.b16 %v39
  %v138 = vunpack.c.l.b16 %v40
  %v139 = vunpack.c.l.b16 %v41
  %v140 = vunpack.c.l.b16 %v42
  %v141 = vunpack.c.l.b16 %v43
  %v142 = vunpack.c.l.b16 %v44
  %v143 = vunpack.c.l.b16 %v45
  %v144 = vunpack.c.l.b16 %v46
  %v145 = vunpack.c.l.b16 %v47
  %v146 = vunpack.c.l.b16 %v48
  %v147 = vunpack.c.l.b16 %v49
  %v148 = vunpack.c.l.b16 %v50
  %v149 = vunpack.c.l.b16 %v51
  %v150 = vunpack.c.l.b16 %v52
  %v151 = vunpack.c.l.b16 %v53
  %v152 = vunpack.c.l.b16 %v54
  %v153 = vunpack.c.l.b16 %v55
  %v154 = vunpack.c.l.b16 %v56
  %v155 = vunpack.c.l.b16 %v57
  %v156 = vunpack.c.l.b16 %v58
  %v157 = vunpack.c.l.b16 %v59
  %v158 = vunpack.c.l.b16 %v60
  %v159 = vunpack.c.l.b16 %v61
  %v160 = vunpack.c.l.b16 %v62
  %v161 = vunpack.c.l.b16 %v63
  %v162 = vunpack.c.l.b16 %v64
  %v163 = vunpack.c.l.b16 %v65
  %v164 = vunpack.c.l.b16 %v66
  %v165 = vunpack.c.l.b16 %v67
  %v166 = vunpack.c.l.b16 %v68
  %v167 = vunpack.c.l.b16 %v69
  %v168 = vunpack.c.l.b16 %v70
  %v169 = vunpack.c.l.b16 %v71
  %v170 = vunpack.c.l.b16 %v72
  %v171 = vunpack.c.l.b16 %v73
  %v172 = vpack.c.b16 %v124, %v123
  %v173 = vpack.c.b16 %v126, %v125
  %v174 = vpack.c.b16 %v128, %v127
  %v175 = vpack.c.b16 %v130, %v129
  %v176 = vpack.c.b16 %v132, %v131
  %v177 = vpack.c.b16 %v134, %v133
  %v178 = vpack.c.b16 %v136, %v135
  %v179 = vpack.c.b16 %v138, %v137
  %v180 = vpack.c.b16 %v140, %v139
  %v181 = vpack.c.b16 %v142, %v141
  %v182 = vpack.c.b16 %v144, %v143
  %v183 = vpack.c.b16 %v146, %v145
  %v184 = vpack.c.b16 %v148, %v147
  %v185 = vpack.c.b16 %v150, %v149
  %v186 = vpack.c.b16 %v152, %v151
  %v187 = vpack.c.b16 %v154, %v153
  %v188 = vpack.c.b16 %v156, %v155
  %v189 = vpack.c.b16 %v158, %v157
  %v190 = vpack.c.b16 %v160, %v159
  %v191 = vpack.c.b16 %v162, %v161
  %v192 = vpack.c.b16 %v164, %v163
  %v193 = vpack.c.b16 %v166, %v165
  %v194 = vpack.c.b16 %v168, %v167
  %v195 = vpack.c.b16 %v170, %v169
  %v196 = vpack.c.b16 %v171, %v171
  %v207 = vunpack.c.l.b16 %v15
  %v208 = vunpack.c.l.b16 %v16
  %v209 = vunpack.c.l.b16 %v17
  %v210 = vunpack.c.l.b16 %v18
  %v211 = vunpack.c.l.b16 %v19
  %v212 = vunpack.c.l.b16 %v20
  %v213 = vunpack.c.l.b16 %v21
  %v214 = vunpack.c.l.b16 %v22
  %v215 = vunpack.c.l.b16 %v23
  %v216 = vunpack.c.l.b16 %v24
  %v217 = vpack.c.b16 %v208, %v207
  %v218 = vpack.c.b16 %v210, %v209
  %v219 = vpack.c.b16 %v212, %v211
  %v220 = vpack.c.b16 %v214, %v213
  %v221 = vpack.c.b16 %v216, %v215
  %vm226 = vcmask 613376
  %v228 = vsel %vm226, %v172, 0
  %v231 = vsel %vm226, %v173, 0
  %v234 = vsel %vm226, %v174, 0
  %v237 = vsel %vm226, %v175, 0
  %v240 = vsel %vm226, %v176, 0
  %v243 = vsel %vm226, %v177, 0
  %v246 = vsel %vm226, %v178, 0
  %v249 = vsel %vm226, %v179, 0
  %v252 = vsel %vm226, %v180, 0
  %v255 = vsel %vm226, %v181, 0
  %v258 = vsel %vm226, %v182, 0
  %v261 = vsel %vm226, %v183, 0
  %v264 = vsel %vm226, %v184, 0
  %v267 = vsel %vm226, %v185, 0
  %v270 = vsel %vm226, %v186, 0
  %v273 = vsel %vm226, %v187, 0
  %v276 = vsel %vm226, %v188, 0
  %v279 = vsel %vm226, %v189, 0
  %v282 = vsel %vm226, %v190, 0
  %v285 = vsel %vm226, %v191, 0
  %v288 = vsel %vm226, %v192, 0
  %v291 = vsel %vm226, %v193, 0
  %v294 = vsel %vm226, %v194, 0
  %v297 = vsel %vm226, %v195, 0
  %v300 = vsel %vm226, %v196, 0
  %vm302 = vcmask 1044480
  %vm303 = vcmask 1045504
  %v304 = vsel %vm302, 4294967295, 65535
  %v305 = vsel %vm303, %v304, 0
  %v307 = vand.u32 %v221, %v305
  %309 = vmatpush.bf16.msra.mxu0 0
  %310 = vmatpush.bf16.msra.mxu0 0
  %311 = vmatpush.bf16.msra.mxu0 0
  %312 = vmatpush.bf16.msra.mxu0 %v307
  %313 = vmatpush.bf16.msra.mxu0 %v220
  %314 = vmatpush.bf16.msra.mxu0 %v219
  %315 = vmatpush.bf16.msra.mxu0 %v218
  %316 = vmatpush.bf16.msra.mxu0 %v217
  %317 = vmatmul.bf16.gmra.mxu0 %v228
  %v318 = vpop.f32.mrf.mxu0
  %v319 = vadd.f32 0.0, %v318
  %v320 = vpop.f32.mrf.mxu0
  %v321 = vadd.f32 0.0, %v320
  %322 = vmatmul.bf16.gmra.mxu0 %v231
  %v323 = vpop.f32.mrf.mxu0
  %v324 = vadd.f32 0.0, %v323
  %v325 = vpop.f32.mrf.mxu0
  %v326 = vadd.f32 0.0, %v325
  %327 = vmatmul.bf16.gmra.mxu0 %v234
  %v328 = vpop.f32.mrf.mxu0
  %v329 = vadd.f32 0.0, %v328
  %v330 = vpop.f32.mrf.mxu0
  %v331 = vadd.f32 0.0, %v330
  %332 = vmatmul.bf16.gmra.mxu0 %v237
  %v333 = vpop.f32.mrf.mxu0
  %v334 = vadd.f32 0.0, %v333
  %v335 = vpop.f32.mrf.mxu0
  %v336 = vadd.f32 0.0, %v335
  %337 = vmatmul.bf16.gmra.mxu0 %v240
  %v338 = vpop.f32.mrf.mxu0
  %v339 = vadd.f32 0.0, %v338
  %v340 = vpop.f32.mrf.mxu0
  %v341 = vadd.f32 0.0, %v340
  %342 = vmatmul.bf16.gmra.mxu0 %v243
  %v343 = vpop.f32.mrf.mxu0
  %v344 = vadd.f32 0.0, %v343
  %v345 = vpop.f32.mrf.mxu0
  %v346 = vadd.f32 0.0, %v345
  %347 = vmatmul.bf16.gmra.mxu0 %v246
  %v348 = vpop.f32.mrf.mxu0
  %v349 = vadd.f32 0.0, %v348
  %v350 = vpop.f32.mrf.mxu0
  %v351 = vadd.f32 0.0, %v350
  %352 = vmatmul.bf16.gmra.mxu0 %v249
  %v353 = vpop.f32.mrf.mxu0
  %v354 = vadd.f32 0.0, %v353
  %v355 = vpop.f32.mrf.mxu0
  %v356 = vadd.f32 0.0, %v355
  %357 = vmatmul.bf16.gmra.mxu0 %v252
  %v358 = vpop.f32.mrf.mxu0
  %v359 = vadd.f32 0.0, %v358
  %v360 = vpop.f32.mrf.mxu0
  %v361 = vadd.f32 0.0, %v360
  %362 = vmatmul.bf16.gmra.mxu0 %v255
  %v363 = vpop.f32.mrf.mxu0
  %v364 = vadd.f32 0.0, %v363
  %v365 = vpop.f32.mrf.mxu0
  %v366 = vadd.f32 0.0, %v365
  %367 = vmatmul.bf16.gmra.mxu0 %v258
  %v368 = vpop.f32.mrf.mxu0
  %v369 = vadd.f32 0.0, %v368
  %v370 = vpop.f32.mrf.mxu0
  %v371 = vadd.f32 0.0, %v370
  %372 = vmatmul.bf16.gmra.mxu0 %v261
  %v373 = vpop.f32.mrf.mxu0
  %v374 = vadd.f32 0.0, %v373
  %v375 = vpop.f32.mrf.mxu0
  %v376 = vadd.f32 0.0, %v375
  %377 = vmatmul.bf16.gmra.mxu0 %v264
  %v378 = vpop.f32.mrf.mxu0
  %v379 = vadd.f32 0.0, %v378
  %v380 = vpop.f32.mrf.mxu0
  %v381 = vadd.f32 0.0, %v380
  %382 = vmatmul.bf16.gmra.mxu0 %v267
  %v383 = vpop.f32.mrf.mxu0
  %v384 = vadd.f32 0.0, %v383
  %v385 = vpop.f32.mrf.mxu0
  %v386 = vadd.f32 0.0, %v385
  %387 = vmatmul.bf16.gmra.mxu0 %v270
  %v388 = vpop.f32.mrf.mxu0
  %v389 = vadd.f32 0.0, %v388
  %v390 = vpop.f32.mrf.mxu0
  %v391 = vadd.f32 0.0, %v390
  %392 = vmatmul.bf16.gmra.mxu0 %v273
  %v393 = vpop.f32.mrf.mxu0
  %v394 = vadd.f32 0.0, %v393
  %v395 = vpop.f32.mrf.mxu0
  %v396 = vadd.f32 0.0, %v395
  %397 = vmatmul.bf16.gmra.mxu0 %v276
  %v398 = vpop.f32.mrf.mxu0
  %v399 = vadd.f32 0.0, %v398
  %v400 = vpop.f32.mrf.mxu0
  %v401 = vadd.f32 0.0, %v400
  %402 = vmatmul.bf16.gmra.mxu0 %v279
  %v403 = vpop.f32.mrf.mxu0
  %v404 = vadd.f32 0.0, %v403
  %v405 = vpop.f32.mrf.mxu0
  %v406 = vadd.f32 0.0, %v405
  %407 = vmatmul.bf16.gmra.mxu0 %v282
  %v408 = vpop.f32.mrf.mxu0
  %v409 = vadd.f32 0.0, %v408
  %v410 = vpop.f32.mrf.mxu0
  %v411 = vadd.f32 0.0, %v410
  %412 = vmatmul.bf16.gmra.mxu0 %v285
  %v413 = vpop.f32.mrf.mxu0
  %v414 = vadd.f32 0.0, %v413
  %v415 = vpop.f32.mrf.mxu0
  %v416 = vadd.f32 0.0, %v415
  %417 = vmatmul.bf16.gmra.mxu0 %v288
  %v418 = vpop.f32.mrf.mxu0
  %v419 = vadd.f32 0.0, %v418
  %v420 = vpop.f32.mrf.mxu0
  %v421 = vadd.f32 0.0, %v420
  %422 = vmatmul.bf16.gmra.mxu0 %v291
  %v423 = vpop.f32.mrf.mxu0
  %v424 = vadd.f32 0.0, %v423
  %v425 = vpop.f32.mrf.mxu0
  %v426 = vadd.f32 0.0, %v425
  %427 = vmatmul.bf16.gmra.mxu0 %v294
  %v428 = vpop.f32.mrf.mxu0
  %v429 = vadd.f32 0.0, %v428
  %v430 = vpop.f32.mrf.mxu0
  %v431 = vadd.f32 0.0, %v430
  %432 = vmatmul.bf16.gmra.mxu0 %v297
  %v433 = vpop.f32.mrf.mxu0
  %v434 = vadd.f32 0.0, %v433
  %v435 = vpop.f32.mrf.mxu0
  %v436 = vadd.f32 0.0, %v435
  %437 = vmatmul.bf16.gmra.mxu0 %v300
  %v438 = vpop.f32.mrf.mxu0
  %v439 = vadd.f32 0.0, %v438
  %v440 = vpop.f32.mrf.mxu0
  %441 = vdwg.mxu0
  %s442 = scalar_lea.vmem %s0, 196
  %v443 = vld [vmem:[%s442] sm:$0xf]
  %v444 = vld [vmem:[%s442 + $0x4] sm:$0xf]
  %v445 = vld [vmem:[%s442 + $0x8] sm:$0xf]
  %v446 = vld [vmem:[%s442 + $0xc] sm:$0xf]
  %v447 = vld [vmem:[%s442 + $0x10] sm:$0xf]
  %v448 = vld [vmem:[%s442 + $0x14] sm:$0xf]
  %v449 = vld [vmem:[%s442 + $0x18] sm:$0xf]
  %v450 = vld [vmem:[%s442 + $0x1c] sm:$0xf]
  %v451 = vld [vmem:[%s442 + $0x20] sm:$0xf]
  %v452 = vld [vmem:[%s442 + $0x24] sm:$0xf]
  %v453 = vld [vmem:[%s442 + $0x28] sm:$0xf]
  %v454 = vld [vmem:[%s442 + $0x2c] sm:$0xf]
  %v455 = vld [vmem:[%s442 + $0x30] sm:$0xf]
  %v456 = vld [vmem:[%s442 + $0x34] sm:$0xf]
  %v457 = vld [vmem:[%s442 + $0x38] sm:$0xf]
  %v458 = vld [vmem:[%s442 + $0x3c] sm:$0xf]
  %v459 = vld [vmem:[%s442 + $0x40] sm:$0xf]
  %v460 = vld [vmem:[%s442 + $0x44] sm:$0xf]
  %v461 = vld [vmem:[%s442 + $0x48] sm:$0xf]
  %v462 = vld [vmem:[%s442 + $0x4c] sm:$0xf]
  %v463 = vld [vmem:[%s442 + $0x50] sm:$0xf]
  %v464 = vld [vmem:[%s442 + $0x54] sm:$0xf]
  %v465 = vld [vmem:[%s442 + $0x58] sm:$0xf]
  %v466 = vld [vmem:[%s442 + $0x5c] sm:$0xf]
  %v467 = vld [vmem:[%s442 + $0x60] sm:$0xf]
  %v468 = vld [vmem:[%s442 + $0x64] sm:$0xf]
  %v469 = vld [vmem:[%s442 + $0x68] sm:$0xf]
  %v470 = vld [vmem:[%s442 + $0x6c] sm:$0xf]
  %v471 = vld [vmem:[%s442 + $0x70] sm:$0xf]
  %v472 = vld [vmem:[%s442 + $0x74] sm:$0xf]
  %v473 = vld [vmem:[%s442 + $0x78] sm:$0xf]
  %v474 = vld [vmem:[%s442 + $0x7c] sm:$0xf]
  %v475 = vld [vmem:[%s442 + $0x80] sm:$0xf]
  %v476 = vld [vmem:[%s442 + $0x84] sm:$0xf]
  %v477 = vld [vmem:[%s442 + $0x88] sm:$0xf]
  %v478 = vld [vmem:[%s442 + $0x8c] sm:$0xf]
  %v479 = vld [vmem:[%s442 + $0x90] sm:$0xf]
  %v480 = vld [vmem:[%s442 + $0x94] sm:$0xf]
  %v481 = vld [vmem:[%s442 + $0x98] sm:$0xf]
  %v482 = vld [vmem:[%s442 + $0x9c] sm:$0xf]
  %v483 = vld [vmem:[%s442 + $0xa0] sm:$0xf]
  %v484 = vld [vmem:[%s442 + $0xa4] sm:$0xf]
  %v485 = vld [vmem:[%s442 + $0xa8] sm:$0xf]
  %v486 = vld [vmem:[%s442 + $0xac] sm:$0xf]
  %v487 = vld [vmem:[%s442 + $0xb0] sm:$0xf]
  %v488 = vld [vmem:[%s442 + $0xb4] sm:$0xf]
  %v489 = vld [vmem:[%s442 + $0xb8] sm:$0xf]
  %v490 = vld [vmem:[%s442 + $0xbc] sm:$0xf]
  %v491 = vld [vmem:[%s442 + $0xc0] sm:$0xf]
  %v541 = vunpack.c.l.b16 %v443
  %v542 = vunpack.c.l.b16 %v444
  %v543 = vunpack.c.l.b16 %v445
  %v544 = vunpack.c.l.b16 %v446
  %v545 = vunpack.c.l.b16 %v447
  %v546 = vunpack.c.l.b16 %v448
  %v547 = vunpack.c.l.b16 %v449
  %v548 = vunpack.c.l.b16 %v450
  %v549 = vunpack.c.l.b16 %v451
  %v550 = vunpack.c.l.b16 %v452
  %v551 = vunpack.c.l.b16 %v453
  %v552 = vunpack.c.l.b16 %v454
  %v553 = vunpack.c.l.b16 %v455
  %v554 = vunpack.c.l.b16 %v456
  %v555 = vunpack.c.l.b16 %v457
  %v556 = vunpack.c.l.b16 %v458
  %v557 = vunpack.c.l.b16 %v459
  %v558 = vunpack.c.l.b16 %v460
  %v559 = vunpack.c.l.b16 %v461
  %v560 = vunpack.c.l.b16 %v462
  %v561 = vunpack.c.l.b16 %v463
  %v562 = vunpack.c.l.b16 %v464
  %v563 = vunpack.c.l.b16 %v465
  %v564 = vunpack.c.l.b16 %v466
  %v565 = vunpack.c.l.b16 %v467
  %v566 = vunpack.c.l.b16 %v468
  %v567 = vunpack.c.l.b16 %v469
  %v568 = vunpack.c.l.b16 %v470
  %v569 = vunpack.c.l.b16 %v471
  %v570 = vunpack.c.l.b16 %v472
  %v571 = vunpack.c.l.b16 %v473
  %v572 = vunpack.c.l.b16 %v474
  %v573 = vunpack.c.l.b16 %v475
  %v574 = vunpack.c.l.b16 %v476
  %v575 = vunpack.c.l.b16 %v477
  %v576 = vunpack.c.l.b16 %v478
  %v577 = vunpack.c.l.b16 %v479
  %v578 = vunpack.c.l.b16 %v480
  %v579 = vunpack.c.l.b16 %v481
  %v580 = vunpack.c.l.b16 %v482
  %v581 = vunpack.c.l.b16 %v483
  %v582 = vunpack.c.l.b16 %v484
  %v583 = vunpack.c.l.b16 %v485
  %v584 = vunpack.c.l.b16 %v486
  %v585 = vunpack.c.l.b16 %v487
  %v586 = vunpack.c.l.b16 %v488
  %v587 = vunpack.c.l.b16 %v489
  %v588 = vunpack.c.l.b16 %v490
  %v589 = vunpack.c.l.b16 %v491
  %v590 = vpack.c.b16 %v542, %v541
  %v591 = vpack.c.b16 %v544, %v543
  %v592 = vpack.c.b16 %v546, %v545
  %v593 = vpack.c.b16 %v548, %v547
  %v594 = vpack.c.b16 %v550, %v549
  %v595 = vpack.c.b16 %v552, %v551
  %v596 = vpack.c.b16 %v554, %v553
  %v597 = vpack.c.b16 %v556, %v555
  %v598 = vpack.c.b16 %v558, %v557
  %v599 = vpack.c.b16 %v560, %v559
  %v600 = vpack.c.b16 %v562, %v561
  %v601 = vpack.c.b16 %v564, %v563
  %v602 = vpack.c.b16 %v566, %v565
  %v603 = vpack.c.b16 %v568, %v567
  %v604 = vpack.c.b16 %v570, %v569
  %v605 = vpack.c.b16 %v572, %v571
  %v606 = vpack.c.b16 %v574, %v573
  %v607 = vpack.c.b16 %v576, %v575
  %v608 = vpack.c.b16 %v578, %v577
  %v609 = vpack.c.b16 %v580, %v579
  %v610 = vpack.c.b16 %v582, %v581
  %v611 = vpack.c.b16 %v584, %v583
  %v612 = vpack.c.b16 %v586, %v585
  %v613 = vpack.c.b16 %v588, %v587
  %v614 = vpack.c.b16 %v589, %v589
  %v616 = vsel %vm226, %v590, 0
  %v619 = vsel %vm226, %v591, 0
  %v622 = vsel %vm226, %v592, 0
  %v625 = vsel %vm226, %v593, 0
  %v628 = vsel %vm226, %v594, 0
  %v631 = vsel %vm226, %v595, 0
  %v634 = vsel %vm226, %v596, 0
  %v637 = vsel %vm226, %v597, 0
  %v640 = vsel %vm226, %v598, 0
  %v643 = vsel %vm226, %v599, 0
  %v646 = vsel %vm226, %v600, 0
  %v649 = vsel %vm226, %v601, 0
  %v652 = vsel %vm226, %v602, 0
  %v655 = vsel %vm226, %v603, 0
  %v658 = vsel %vm226, %v604, 0
  %v661 = vsel %vm226, %v605, 0
  %v664 = vsel %vm226, %v606, 0
  %v667 = vsel %vm226, %v607, 0
  %v670 = vsel %vm226, %v608, 0
  %v673 = vsel %vm226, %v609, 0
  %v676 = vsel %vm226, %v610, 0
  %v679 = vsel %vm226, %v611, 0
  %v682 = vsel %vm226, %v612, 0
  %v685 = vsel %vm226, %v613, 0
  %v688 = vsel %vm226, %v614, 0
  %690 = vmatpush.bf16.msra.mxu0 0
  %691 = vmatpush.bf16.msra.mxu0 0
  %692 = vmatpush.bf16.msra.mxu0 0
  %693 = vmatpush.bf16.msra.mxu0 %v307
  %694 = vmatpush.bf16.msra.mxu0 %v220
  %695 = vmatpush.bf16.msra.mxu0 %v219
  %696 = vmatpush.bf16.msra.mxu0 %v218
  %697 = vmatpush.bf16.msra.mxu0 %v217
  %698 = vmatmul.bf16.gmra.mxu0 %v616
  %v699 = vpop.f32.mrf.mxu0
  %v700 = vadd.f32 0.0, %v699
  %v701 = vpop.f32.mrf.mxu0
  %v702 = vadd.f32 0.0, %v701
  %703 = vmatmul.bf16.gmra.mxu0 %v619
  %v704 = vpop.f32.mrf.mxu0
  %v705 = vadd.f32 0.0, %v704
  %v706 = vpop.f32.mrf.mxu0
  %v707 = vadd.f32 0.0, %v706
  %708 = vmatmul.bf16.gmra.mxu0 %v622
  %v709 = vpop.f32.mrf.mxu0
  %v710 = vadd.f32 0.0, %v709
  %v711 = vpop.f32.mrf.mxu0
  %v712 = vadd.f32 0.0, %v711
  %713 = vmatmul.bf16.gmra.mxu0 %v625
  %v714 = vpop.f32.mrf.mxu0
  %v715 = vadd.f32 0.0, %v714
  %v716 = vpop.f32.mrf.mxu0
  %v717 = vadd.f32 0.0, %v716
  %718 = vmatmul.bf16.gmra.mxu0 %v628
  %v719 = vpop.f32.mrf.mxu0
  %v720 = vadd.f32 0.0, %v719
  %v721 = vpop.f32.mrf.mxu0
  %v722 = vadd.f32 0.0, %v721
  %723 = vmatmul.bf16.gmra.mxu0 %v631
  %v724 = vpop.f32.mrf.mxu0
  %v725 = vadd.f32 0.0, %v724
  %v726 = vpop.f32.mrf.mxu0
  %v727 = vadd.f32 0.0, %v726
  %728 = vmatmul.bf16.gmra.mxu0 %v634
  %v729 = vpop.f32.mrf.mxu0
  %v730 = vadd.f32 0.0, %v729
  %v731 = vpop.f32.mrf.mxu0
  %v732 = vadd.f32 0.0, %v731
  %733 = vmatmul.bf16.gmra.mxu0 %v637
  %v734 = vpop.f32.mrf.mxu0
  %v735 = vadd.f32 0.0, %v734
  %v736 = vpop.f32.mrf.mxu0
  %v737 = vadd.f32 0.0, %v736
  %738 = vmatmul.bf16.gmra.mxu0 %v640
  %v739 = vpop.f32.mrf.mxu0
  %v740 = vadd.f32 0.0, %v739
  %v741 = vpop.f32.mrf.mxu0
  %v742 = vadd.f32 0.0, %v741
  %743 = vmatmul.bf16.gmra.mxu0 %v643
  %v744 = vpop.f32.mrf.mxu0
  %v745 = vadd.f32 0.0, %v744
  %v746 = vpop.f32.mrf.mxu0
  %v747 = vadd.f32 0.0, %v746
  %748 = vmatmul.bf16.gmra.mxu0 %v646
  %v749 = vpop.f32.mrf.mxu0
  %v750 = vadd.f32 0.0, %v749
  %v751 = vpop.f32.mrf.mxu0
  %v752 = vadd.f32 0.0, %v751
  %753 = vmatmul.bf16.gmra.mxu0 %v649
  %v754 = vpop.f32.mrf.mxu0
  %v755 = vadd.f32 0.0, %v754
  %v756 = vpop.f32.mrf.mxu0
  %v757 = vadd.f32 0.0, %v756
  %758 = vmatmul.bf16.gmra.mxu0 %v652
  %v759 = vpop.f32.mrf.mxu0
  %v760 = vadd.f32 0.0, %v759
  %v761 = vpop.f32.mrf.mxu0
  %v762 = vadd.f32 0.0, %v761
  %763 = vmatmul.bf16.gmra.mxu0 %v655
  %v764 = vpop.f32.mrf.mxu0
  %v765 = vadd.f32 0.0, %v764
  %v766 = vpop.f32.mrf.mxu0
  %v767 = vadd.f32 0.0, %v766
  %768 = vmatmul.bf16.gmra.mxu0 %v658
  %v769 = vpop.f32.mrf.mxu0
  %v770 = vadd.f32 0.0, %v769
  %v771 = vpop.f32.mrf.mxu0
  %v772 = vadd.f32 0.0, %v771
  %773 = vmatmul.bf16.gmra.mxu0 %v661
  %v774 = vpop.f32.mrf.mxu0
  %v775 = vadd.f32 0.0, %v774
  %v776 = vpop.f32.mrf.mxu0
  %v777 = vadd.f32 0.0, %v776
  %778 = vmatmul.bf16.gmra.mxu0 %v664
  %v779 = vpop.f32.mrf.mxu0
  %v780 = vadd.f32 0.0, %v779
  %v781 = vpop.f32.mrf.mxu0
  %v782 = vadd.f32 0.0, %v781
  %783 = vmatmul.bf16.gmra.mxu0 %v667
  %v784 = vpop.f32.mrf.mxu0
  %v785 = vadd.f32 0.0, %v784
  %v786 = vpop.f32.mrf.mxu0
  %v787 = vadd.f32 0.0, %v786
  %788 = vmatmul.bf16.gmra.mxu0 %v670
  %v789 = vpop.f32.mrf.mxu0
  %v790 = vadd.f32 0.0, %v789
  %v791 = vpop.f32.mrf.mxu0
  %v792 = vadd.f32 0.0, %v791
  %793 = vmatmul.bf16.gmra.mxu0 %v673
  %v794 = vpop.f32.mrf.mxu0
  %v795 = vadd.f32 0.0, %v794
  %v796 = vpop.f32.mrf.mxu0
  %v797 = vadd.f32 0.0, %v796
  %798 = vmatmul.bf16.gmra.mxu0 %v676
  %v799 = vpop.f32.mrf.mxu0
  %v800 = vadd.f32 0.0, %v799
  %v801 = vpop.f32.mrf.mxu0
  %v802 = vadd.f32 0.0, %v801
  %803 = vmatmul.bf16.gmra.mxu0 %v679
  %v804 = vpop.f32.mrf.mxu0
  %v805 = vadd.f32 0.0, %v804
  %v806 = vpop.f32.mrf.mxu0
  %v807 = vadd.f32 0.0, %v806
  %808 = vmatmul.bf16.gmra.mxu0 %v682
  %v809 = vpop.f32.mrf.mxu0
  %v810 = vadd.f32 0.0, %v809
  %v811 = vpop.f32.mrf.mxu0
  %v812 = vadd.f32 0.0, %v811
  %813 = vmatmul.bf16.gmra.mxu0 %v685
  %v814 = vpop.f32.mrf.mxu0
  %v815 = vadd.f32 0.0, %v814
  %v816 = vpop.f32.mrf.mxu0
  %v817 = vadd.f32 0.0, %v816
  %818 = vmatmul.bf16.gmra.mxu0 %v688
  %v819 = vpop.f32.mrf.mxu0
  %v820 = vadd.f32 0.0, %v819
  %v821 = vpop.f32.mrf.mxu0
  %822 = vdwg.mxu0
  %s823 = scalar_lea.vmem %s0, 392
  %v824 = vld [vmem:[%s823] sm:$0xf]
  %v825 = vld [vmem:[%s823 + $0x4] sm:$0xf]
  %v826 = vld [vmem:[%s823 + $0x8] sm:$0xf]
  %v827 = vld [vmem:[%s823 + $0xc] sm:$0xf]
  %v828 = vld [vmem:[%s823 + $0x10] sm:$0xf]
  %v829 = vld [vmem:[%s823 + $0x14] sm:$0xf]
  %v830 = vld [vmem:[%s823 + $0x18] sm:$0xf]
  %v831 = vld [vmem:[%s823 + $0x1c] sm:$0xf]
  %v832 = vld [vmem:[%s823 + $0x20] sm:$0xf]
  %v833 = vld [vmem:[%s823 + $0x24] sm:$0xf]
  %v834 = vld [vmem:[%s823 + $0x28] sm:$0xf]
  %v835 = vld [vmem:[%s823 + $0x2c] sm:$0xf]
  %v836 = vld [vmem:[%s823 + $0x30] sm:$0xf]
  %v837 = vld [vmem:[%s823 + $0x34] sm:$0xf]
  %v838 = vld [vmem:[%s823 + $0x38] sm:$0xf]
  %v839 = vld [vmem:[%s823 + $0x3c] sm:$0xf]
  %v840 = vld [vmem:[%s823 + $0x40] sm:$0xf]
  %v841 = vld [vmem:[%s823 + $0x44] sm:$0xf]
  %v842 = vld [vmem:[%s823 + $0x48] sm:$0xf]
  %v843 = vld [vmem:[%s823 + $0x4c] sm:$0xf]
  %v844 = vld [vmem:[%s823 + $0x50] sm:$0xf]
  %v845 = vld [vmem:[%s823 + $0x54] sm:$0xf]
  %v846 = vld [vmem:[%s823 + $0x58] sm:$0xf]
  %v847 = vld [vmem:[%s823 + $0x5c] sm:$0xf]
  %v848 = vld [vmem:[%s823 + $0x60] sm:$0xf]
  %v849 = vld [vmem:[%s823 + $0x64] sm:$0xf]
  %v850 = vld [vmem:[%s823 + $0x68] sm:$0xf]
  %v851 = vld [vmem:[%s823 + $0x6c] sm:$0xf]
  %v852 = vld [vmem:[%s823 + $0x70] sm:$0xf]
  %v853 = vld [vmem:[%s823 + $0x74] sm:$0xf]
  %v854 = vld [vmem:[%s823 + $0x78] sm:$0xf]
  %v855 = vld [vmem:[%s823 + $0x7c] sm:$0xf]
  %v856 = vld [vmem:[%s823 + $0x80] sm:$0xf]
  %v857 = vld [vmem:[%s823 + $0x84] sm:$0xf]
  %v858 = vld [vmem:[%s823 + $0x88] sm:$0xf]
  %v859 = vld [vmem:[%s823 + $0x8c] sm:$0xf]
  %v860 = vld [vmem:[%s823 + $0x90] sm:$0xf]
  %v861 = vld [vmem:[%s823 + $0x94] sm:$0xf]
  %v862 = vld [vmem:[%s823 + $0x98] sm:$0xf]
  %v863 = vld [vmem:[%s823 + $0x9c] sm:$0xf]
  %v864 = vld [vmem:[%s823 + $0xa0] sm:$0xf]
  %v865 = vld [vmem:[%s823 + $0xa4] sm:$0xf]
  %v866 = vld [vmem:[%s823 + $0xa8] sm:$0xf]
  %v867 = vld [vmem:[%s823 + $0xac] sm:$0xf]
  %v868 = vld [vmem:[%s823 + $0xb0] sm:$0xf]
  %v869 = vld [vmem:[%s823 + $0xb4] sm:$0xf]
  %v870 = vld [vmem:[%s823 + $0xb8] sm:$0xf]
  %v871 = vld [vmem:[%s823 + $0xbc] sm:$0xf]
  %v872 = vld [vmem:[%s823 + $0xc0] sm:$0xf]
  %v922 = vunpack.c.l.b16 %v824
  %v923 = vunpack.c.l.b16 %v825
  %v924 = vunpack.c.l.b16 %v826
  %v925 = vunpack.c.l.b16 %v827
  %v926 = vunpack.c.l.b16 %v828
  %v927 = vunpack.c.l.b16 %v829
  %v928 = vunpack.c.l.b16 %v830
  %v929 = vunpack.c.l.b16 %v831
  %v930 = vunpack.c.l.b16 %v832
  %v931 = vunpack.c.l.b16 %v833
  %v932 = vunpack.c.l.b16 %v834
  %v933 = vunpack.c.l.b16 %v835
  %v934 = vunpack.c.l.b16 %v836
  %v935 = vunpack.c.l.b16 %v837
  %v936 = vunpack.c.l.b16 %v838
  %v937 = vunpack.c.l.b16 %v839
  %v938 = vunpack.c.l.b16 %v840
  %v939 = vunpack.c.l.b16 %v841
  %v940 = vunpack.c.l.b16 %v842
  %v941 = vunpack.c.l.b16 %v843
  %v942 = vunpack.c.l.b16 %v844
  %v943 = vunpack.c.l.b16 %v845
  %v944 = vunpack.c.l.b16 %v846
  %v945 = vunpack.c.l.b16 %v847
  %v946 = vunpack.c.l.b16 %v848
  %v947 = vunpack.c.l.b16 %v849
  %v948 = vunpack.c.l.b16 %v850
  %v949 = vunpack.c.l.b16 %v851
  %v950 = vunpack.c.l.b16 %v852
  %v951 = vunpack.c.l.b16 %v853
  %v952 = vunpack.c.l.b16 %v854
  %v953 = vunpack.c.l.b16 %v855
  %v954 = vunpack.c.l.b16 %v856
  %v955 = vunpack.c.l.b16 %v857
  %v956 = vunpack.c.l.b16 %v858
  %v957 = vunpack.c.l.b16 %v859
  %v958 = vunpack.c.l.b16 %v860
  %v959 = vunpack.c.l.b16 %v861
  %v960 = vunpack.c.l.b16 %v862
  %v961 = vunpack.c.l.b16 %v863
  %v962 = vunpack.c.l.b16 %v864
  %v963 = vunpack.c.l.b16 %v865
  %v964 = vunpack.c.l.b16 %v866
  %v965 = vunpack.c.l.b16 %v867
  %v966 = vunpack.c.l.b16 %v868
  %v967 = vunpack.c.l.b16 %v869
  %v968 = vunpack.c.l.b16 %v870
  %v969 = vunpack.c.l.b16 %v871
  %v970 = vunpack.c.l.b16 %v872
  %v971 = vpack.c.b16 %v923, %v922
  %v972 = vpack.c.b16 %v925, %v924
  %v973 = vpack.c.b16 %v927, %v926
  %v974 = vpack.c.b16 %v929, %v928
  %v975 = vpack.c.b16 %v931, %v930
  %v976 = vpack.c.b16 %v933, %v932
  %v977 = vpack.c.b16 %v935, %v934
  %v978 = vpack.c.b16 %v937, %v936
  %v979 = vpack.c.b16 %v939, %v938
  %v980 = vpack.c.b16 %v941, %v940
  %v981 = vpack.c.b16 %v943, %v942
  %v982 = vpack.c.b16 %v945, %v944
  %v983 = vpack.c.b16 %v947, %v946
  %v984 = vpack.c.b16 %v949, %v948
  %v985 = vpack.c.b16 %v951, %v950
  %v986 = vpack.c.b16 %v953, %v952
  %v987 = vpack.c.b16 %v955, %v954
  %v988 = vpack.c.b16 %v957, %v956
  %v989 = vpack.c.b16 %v959, %v958
  %v990 = vpack.c.b16 %v961, %v960
  %v991 = vpack.c.b16 %v963, %v962
  %v992 = vpack.c.b16 %v965, %v964
  %v993 = vpack.c.b16 %v967, %v966
  %v994 = vpack.c.b16 %v969, %v968
  %v995 = vpack.c.b16 %v970, %v970
  %v997 = vsel %vm226, %v971, 0
  %v1000 = vsel %vm226, %v972, 0
  %v1003 = vsel %vm226, %v973, 0
  %v1006 = vsel %vm226, %v974, 0
  %v1009 = vsel %vm226, %v975, 0
  %v1012 = vsel %vm226, %v976, 0
  %v1015 = vsel %vm226, %v977, 0
  %v1018 = vsel %vm226, %v978, 0
  %v1021 = vsel %vm226, %v979, 0
  %v1024 = vsel %vm226, %v980, 0
  %v1027 = vsel %vm226, %v981, 0
  %v1030 = vsel %vm226, %v982, 0
  %v1033 = vsel %vm226, %v983, 0
  %v1036 = vsel %vm226, %v984, 0
  %v1039 = vsel %vm226, %v985, 0
  %v1042 = vsel %vm226, %v986, 0
  %v1045 = vsel %vm226, %v987, 0
  %v1048 = vsel %vm226, %v988, 0
  %v1051 = vsel %vm226, %v989, 0
  %v1054 = vsel %vm226, %v990, 0
  %v1057 = vsel %vm226, %v991, 0
  %v1060 = vsel %vm226, %v992, 0
  %v1063 = vsel %vm226, %v993, 0
  %v1066 = vsel %vm226, %v994, 0
  %v1069 = vsel %vm226, %v995, 0
  %1071 = vmatpush.bf16.msra.mxu0 0
  %1072 = vmatpush.bf16.msra.mxu0 0
  %1073 = vmatpush.bf16.msra.mxu0 0
  %1074 = vmatpush.bf16.msra.mxu0 %v307
  %1075 = vmatpush.bf16.msra.mxu0 %v220
  %1076 = vmatpush.bf16.msra.mxu0 %v219
  %1077 = vmatpush.bf16.msra.mxu0 %v218
  %1078 = vmatpush.bf16.msra.mxu0 %v217
  %1079 = vmatmul.bf16.gmra.mxu0 %v997
  %v1080 = vpop.f32.mrf.mxu0
  %v1081 = vadd.f32 0.0, %v1080
  %v1082 = vpop.f32.mrf.mxu0
  %v1083 = vadd.f32 0.0, %v1082
  %1084 = vmatmul.bf16.gmra.mxu0 %v1000
  %v1085 = vpop.f32.mrf.mxu0
  %v1086 = vadd.f32 0.0, %v1085
  %v1087 = vpop.f32.mrf.mxu0
  %v1088 = vadd.f32 0.0, %v1087
  %1089 = vmatmul.bf16.gmra.mxu0 %v1003
  %v1090 = vpop.f32.mrf.mxu0
  %v1091 = vadd.f32 0.0, %v1090
  %v1092 = vpop.f32.mrf.mxu0
  %v1093 = vadd.f32 0.0, %v1092
  %1094 = vmatmul.bf16.gmra.mxu0 %v1006
  %v1095 = vpop.f32.mrf.mxu0
  %v1096 = vadd.f32 0.0, %v1095
  %v1097 = vpop.f32.mrf.mxu0
  %v1098 = vadd.f32 0.0, %v1097
  %1099 = vmatmul.bf16.gmra.mxu0 %v1009
  %v1100 = vpop.f32.mrf.mxu0
  %v1101 = vadd.f32 0.0, %v1100
  %v1102 = vpop.f32.mrf.mxu0
  %v1103 = vadd.f32 0.0, %v1102
  %1104 = vmatmul.bf16.gmra.mxu0 %v1012
  %v1105 = vpop.f32.mrf.mxu0
  %v1106 = vadd.f32 0.0, %v1105
  %v1107 = vpop.f32.mrf.mxu0
  %v1108 = vadd.f32 0.0, %v1107
  %1109 = vmatmul.bf16.gmra.mxu0 %v1015
  %v1110 = vpop.f32.mrf.mxu0
  %v1111 = vadd.f32 0.0, %v1110
  %v1112 = vpop.f32.mrf.mxu0
  %v1113 = vadd.f32 0.0, %v1112
  %1114 = vmatmul.bf16.gmra.mxu0 %v1018
  %v1115 = vpop.f32.mrf.mxu0
  %v1116 = vadd.f32 0.0, %v1115
  %v1117 = vpop.f32.mrf.mxu0
  %v1118 = vadd.f32 0.0, %v1117
  %1119 = vmatmul.bf16.gmra.mxu0 %v1021
  %v1120 = vpop.f32.mrf.mxu0
  %v1121 = vadd.f32 0.0, %v1120
  %v1122 = vpop.f32.mrf.mxu0
  %v1123 = vadd.f32 0.0, %v1122
  %1124 = vmatmul.bf16.gmra.mxu0 %v1024
  %v1125 = vpop.f32.mrf.mxu0
  %v1126 = vadd.f32 0.0, %v1125
  %v1127 = vpop.f32.mrf.mxu0
  %v1128 = vadd.f32 0.0, %v1127
  %1129 = vmatmul.bf16.gmra.mxu0 %v1027
  %v1130 = vpop.f32.mrf.mxu0
  %v1131 = vadd.f32 0.0, %v1130
  %v1132 = vpop.f32.mrf.mxu0
  %v1133 = vadd.f32 0.0, %v1132
  %1134 = vmatmul.bf16.gmra.mxu0 %v1030
  %v1135 = vpop.f32.mrf.mxu0
  %v1136 = vadd.f32 0.0, %v1135
  %v1137 = vpop.f32.mrf.mxu0
  %v1138 = vadd.f32 0.0, %v1137
  %1139 = vmatmul.bf16.gmra.mxu0 %v1033
  %v1140 = vpop.f32.mrf.mxu0
  %v1141 = vadd.f32 0.0, %v1140
  %v1142 = vpop.f32.mrf.mxu0
  %v1143 = vadd.f32 0.0, %v1142
  %1144 = vmatmul.bf16.gmra.mxu0 %v1036
  %v1145 = vpop.f32.mrf.mxu0
  %v1146 = vadd.f32 0.0, %v1145
  %v1147 = vpop.f32.mrf.mxu0
  %v1148 = vadd.f32 0.0, %v1147
  %1149 = vmatmul.bf16.gmra.mxu0 %v1039
  %v1150 = vpop.f32.mrf.mxu0
  %v1151 = vadd.f32 0.0, %v1150
  %v1152 = vpop.f32.mrf.mxu0
  %v1153 = vadd.f32 0.0, %v1152
  %1154 = vmatmul.bf16.gmra.mxu0 %v1042
  %v1155 = vpop.f32.mrf.mxu0
  %v1156 = vadd.f32 0.0, %v1155
  %v1157 = vpop.f32.mrf.mxu0
  %v1158 = vadd.f32 0.0, %v1157
  %1159 = vmatmul.bf16.gmra.mxu0 %v1045
  %v1160 = vpop.f32.mrf.mxu0
  %v1161 = vadd.f32 0.0, %v1160
  %v1162 = vpop.f32.mrf.mxu0
  %v1163 = vadd.f32 0.0, %v1162
  %1164 = vmatmul.bf16.gmra.mxu0 %v1048
  %v1165 = vpop.f32.mrf.mxu0
  %v1166 = vadd.f32 0.0, %v1165
  %v1167 = vpop.f32.mrf.mxu0
  %v1168 = vadd.f32 0.0, %v1167
  %1169 = vmatmul.bf16.gmra.mxu0 %v1051
  %v1170 = vpop.f32.mrf.mxu0
  %v1171 = vadd.f32 0.0, %v1170
  %v1172 = vpop.f32.mrf.mxu0
  %v1173 = vadd.f32 0.0, %v1172
  %1174 = vmatmul.bf16.gmra.mxu0 %v1054
  %v1175 = vpop.f32.mrf.mxu0
  %v1176 = vadd.f32 0.0, %v1175
  %v1177 = vpop.f32.mrf.mxu0
  %v1178 = vadd.f32 0.0, %v1177
  %1179 = vmatmul.bf16.gmra.mxu0 %v1057
  %v1180 = vpop.f32.mrf.mxu0
  %v1181 = vadd.f32 0.0, %v1180
  %v1182 = vpop.f32.mrf.mxu0
  %v1183 = vadd.f32 0.0, %v1182
  %1184 = vmatmul.bf16.gmra.mxu0 %v1060
  %v1185 = vpop.f32.mrf.mxu0
  %v1186 = vadd.f32 0.0, %v1185
  %v1187 = vpop.f32.mrf.mxu0
  %v1188 = vadd.f32 0.0, %v1187
  %1189 = vmatmul.bf16.gmra.mxu0 %v1063
  %v1190 = vpop.f32.mrf.mxu0
  %v1191 = vadd.f32 0.0, %v1190
  %v1192 = vpop.f32.mrf.mxu0
  %v1193 = vadd.f32 0.0, %v1192
  %1194 = vmatmul.bf16.gmra.mxu0 %v1066
  %v1195 = vpop.f32.mrf.mxu0
  %v1196 = vadd.f32 0.0, %v1195
  %v1197 = vpop.f32.mrf.mxu0
  %v1198 = vadd.f32 0.0, %v1197
  %1199 = vmatmul.bf16.gmra.mxu0 %v1069
  %v1200 = vpop.f32.mrf.mxu0
  %v1201 = vadd.f32 0.0, %v1200
  %v1202 = vpop.f32.mrf.mxu0
  %1203 = vdwg.mxu0
  %s1204 = scalar_lea.vmem %s0, 588
  %v1205 = vld [vmem:[%s1204] sm:$0xf]
  %v1206 = vld [vmem:[%s1204 + $0x4] sm:$0xf]
  %v1207 = vld [vmem:[%s1204 + $0x8] sm:$0xf]
  %v1208 = vld [vmem:[%s1204 + $0xc] sm:$0xf]
  %v1209 = vld [vmem:[%s1204 + $0x10] sm:$0xf]
  %v1210 = vld [vmem:[%s1204 + $0x14] sm:$0xf]
  %v1211 = vld [vmem:[%s1204 + $0x18] sm:$0xf]
  %v1212 = vld [vmem:[%s1204 + $0x1c] sm:$0xf]
  %v1213 = vld [vmem:[%s1204 + $0x20] sm:$0xf]
  %v1214 = vld [vmem:[%s1204 + $0x24] sm:$0xf]
  %v1215 = vld [vmem:[%s1204 + $0x28] sm:$0xf]
  %v1216 = vld [vmem:[%s1204 + $0x2c] sm:$0xf]
  %v1217 = vld [vmem:[%s1204 + $0x30] sm:$0xf]
  %v1218 = vld [vmem:[%s1204 + $0x34] sm:$0xf]
  %v1219 = vld [vmem:[%s1204 + $0x38] sm:$0xf]
  %v1220 = vld [vmem:[%s1204 + $0x3c] sm:$0xf]
  %v1221 = vld [vmem:[%s1204 + $0x40] sm:$0xf]
  %v1222 = vld [vmem:[%s1204 + $0x44] sm:$0xf]
  %v1223 = vld [vmem:[%s1204 + $0x48] sm:$0xf]
  %v1224 = vld [vmem:[%s1204 + $0x4c] sm:$0xf]
  %v1225 = vld [vmem:[%s1204 + $0x50] sm:$0xf]
  %v1226 = vld [vmem:[%s1204 + $0x54] sm:$0xf]
  %v1227 = vld [vmem:[%s1204 + $0x58] sm:$0xf]
  %v1228 = vld [vmem:[%s1204 + $0x5c] sm:$0xf]
  %v1229 = vld [vmem:[%s1204 + $0x60] sm:$0xf]
  %v1230 = vld [vmem:[%s1204 + $0x64] sm:$0xf]
  %v1231 = vld [vmem:[%s1204 + $0x68] sm:$0xf]
  %v1232 = vld [vmem:[%s1204 + $0x6c] sm:$0xf]
  %v1233 = vld [vmem:[%s1204 + $0x70] sm:$0xf]
  %v1234 = vld [vmem:[%s1204 + $0x74] sm:$0xf]
  %v1235 = vld [vmem:[%s1204 + $0x78] sm:$0xf]
  %v1236 = vld [vmem:[%s1204 + $0x7c] sm:$0xf]
  %v1237 = vld [vmem:[%s1204 + $0x80] sm:$0xf]
  %v1238 = vld [vmem:[%s1204 + $0x84] sm:$0xf]
  %v1239 = vld [vmem:[%s1204 + $0x88] sm:$0xf]
  %v1240 = vld [vmem:[%s1204 + $0x8c] sm:$0xf]
  %v1241 = vld [vmem:[%s1204 + $0x90] sm:$0xf]
  %v1242 = vld [vmem:[%s1204 + $0x94] sm:$0xf]
  %v1243 = vld [vmem:[%s1204 + $0x98] sm:$0xf]
  %v1244 = vld [vmem:[%s1204 + $0x9c] sm:$0xf]
  %v1245 = vld [vmem:[%s1204 + $0xa0] sm:$0xf]
  %v1246 = vld [vmem:[%s1204 + $0xa4] sm:$0xf]
  %v1247 = vld [vmem:[%s1204 + $0xa8] sm:$0xf]
  %v1248 = vld [vmem:[%s1204 + $0xac] sm:$0xf]
  %v1249 = vld [vmem:[%s1204 + $0xb0] sm:$0xf]
  %v1250 = vld [vmem:[%s1204 + $0xb4] sm:$0xf]
  %v1251 = vld [vmem:[%s1204 + $0xb8] sm:$0xf]
  %v1252 = vld [vmem:[%s1204 + $0xbc] sm:$0xf]
  %v1253 = vld [vmem:[%s1204 + $0xc0] sm:$0xf]
  %v1303 = vunpack.c.l.b16 %v1205
  %v1304 = vunpack.c.l.b16 %v1206
  %v1305 = vunpack.c.l.b16 %v1207
  %v1306 = vunpack.c.l.b16 %v1208
  %v1307 = vunpack.c.l.b16 %v1209
  %v1308 = vunpack.c.l.b16 %v1210
  %v1309 = vunpack.c.l.b16 %v1211
  %v1310 = vunpack.c.l.b16 %v1212
  %v1311 = vunpack.c.l.b16 %v1213
  %v1312 = vunpack.c.l.b16 %v1214
  %v1313 = vunpack.c.l.b16 %v1215
  %v1314 = vunpack.c.l.b16 %v1216
  %v1315 = vunpack.c.l.b16 %v1217
  %v1316 = vunpack.c.l.b16 %v1218
  %v1317 = vunpack.c.l.b16 %v1219
  %v1318 = vunpack.c.l.b16 %v1220
  %v1319 = vunpack.c.l.b16 %v1221
  %v1320 = vunpack.c.l.b16 %v1222
  %v1321 = vunpack.c.l.b16 %v1223
  %v1322 = vunpack.c.l.b16 %v1224
  %v1323 = vunpack.c.l.b16 %v1225
  %v1324 = vunpack.c.l.b16 %v1226
  %v1325 = vunpack.c.l.b16 %v1227
  %v1326 = vunpack.c.l.b16 %v1228
  %v1327 = vunpack.c.l.b16 %v1229
  %v1328 = vunpack.c.l.b16 %v1230
  %v1329 = vunpack.c.l.b16 %v1231
  %v1330 = vunpack.c.l.b16 %v1232
  %v1331 = vunpack.c.l.b16 %v1233
  %v1332 = vunpack.c.l.b16 %v1234
  %v1333 = vunpack.c.l.b16 %v1235
  %v1334 = vunpack.c.l.b16 %v1236
  %v1335 = vunpack.c.l.b16 %v1237
  %v1336 = vunpack.c.l.b16 %v1238
  %v1337 = vunpack.c.l.b16 %v1239
  %v1338 = vunpack.c.l.b16 %v1240
  %v1339 = vunpack.c.l.b16 %v1241
  %v1340 = vunpack.c.l.b16 %v1242
  %v1341 = vunpack.c.l.b16 %v1243
  %v1342 = vunpack.c.l.b16 %v1244
  %v1343 = vunpack.c.l.b16 %v1245
  %v1344 = vunpack.c.l.b16 %v1246
  %v1345 = vunpack.c.l.b16 %v1247
  %v1346 = vunpack.c.l.b16 %v1248
  %v1347 = vunpack.c.l.b16 %v1249
  %v1348 = vunpack.c.l.b16 %v1250
  %v1349 = vunpack.c.l.b16 %v1251
  %v1350 = vunpack.c.l.b16 %v1252
  %v1351 = vunpack.c.l.b16 %v1253
  %v1352 = vpack.c.b16 %v1304, %v1303
  %v1353 = vpack.c.b16 %v1306, %v1305
  %v1354 = vpack.c.b16 %v1308, %v1307
  %v1355 = vpack.c.b16 %v1310, %v1309
  %v1356 = vpack.c.b16 %v1312, %v1311
  %v1357 = vpack.c.b16 %v1314, %v1313
  %v1358 = vpack.c.b16 %v1316, %v1315
  %v1359 = vpack.c.b16 %v1318, %v1317
  %v1360 = vpack.c.b16 %v1320, %v1319
  %v1361 = vpack.c.b16 %v1322, %v1321
  %v1362 = vpack.c.b16 %v1324, %v1323
  %v1363 = vpack.c.b16 %v1326, %v1325
  %v1364 = vpack.c.b16 %v1328, %v1327
  %v1365 = vpack.c.b16 %v1330, %v1329
  %v1366 = vpack.c.b16 %v1332, %v1331
  %v1367 = vpack.c.b16 %v1334, %v1333
  %v1368 = vpack.c.b16 %v1336, %v1335
  %v1369 = vpack.c.b16 %v1338, %v1337
  %v1370 = vpack.c.b16 %v1340, %v1339
  %v1371 = vpack.c.b16 %v1342, %v1341
  %v1372 = vpack.c.b16 %v1344, %v1343
  %v1373 = vpack.c.b16 %v1346, %v1345
  %v1374 = vpack.c.b16 %v1348, %v1347
  %v1375 = vpack.c.b16 %v1350, %v1349
  %v1376 = vpack.c.b16 %v1351, %v1351
  %v1378 = vsel %vm226, %v1352, 0
  %v1381 = vsel %vm226, %v1353, 0
  %v1384 = vsel %vm226, %v1354, 0
  %v1387 = vsel %vm226, %v1355, 0
  %v1390 = vsel %vm226, %v1356, 0
  %v1393 = vsel %vm226, %v1357, 0
  %v1396 = vsel %vm226, %v1358, 0
  %v1399 = vsel %vm226, %v1359, 0
  %v1402 = vsel %vm226, %v1360, 0
  %v1405 = vsel %vm226, %v1361, 0
  %v1408 = vsel %vm226, %v1362, 0
  %v1411 = vsel %vm226, %v1363, 0
  %v1414 = vsel %vm226, %v1364, 0
  %v1417 = vsel %vm226, %v1365, 0
  %v1420 = vsel %vm226, %v1366, 0
  %v1423 = vsel %vm226, %v1367, 0
  %v1426 = vsel %vm226, %v1368, 0
  %v1429 = vsel %vm226, %v1369, 0
  %v1432 = vsel %vm226, %v1370, 0
  %v1435 = vsel %vm226, %v1371, 0
  %v1438 = vsel %vm226, %v1372, 0
  %v1441 = vsel %vm226, %v1373, 0
  %v1444 = vsel %vm226, %v1374, 0
  %v1447 = vsel %vm226, %v1375, 0
  %v1450 = vsel %vm226, %v1376, 0
  %1452 = vmatpush.bf16.msra.mxu0 0
  %1453 = vmatpush.bf16.msra.mxu0 0
  %1454 = vmatpush.bf16.msra.mxu0 0
  %1455 = vmatpush.bf16.msra.mxu0 %v307
  %1456 = vmatpush.bf16.msra.mxu0 %v220
  %1457 = vmatpush.bf16.msra.mxu0 %v219
  %1458 = vmatpush.bf16.msra.mxu0 %v218
  %1459 = vmatpush.bf16.msra.mxu0 %v217
  %1460 = vmatmul.bf16.gmra.mxu0 %v1378
  %v1461 = vpop.f32.mrf.mxu0
  %v1462 = vadd.f32 0.0, %v1461
  %v1463 = vpop.f32.mrf.mxu0
  %v1464 = vadd.f32 0.0, %v1463
  %1465 = vmatmul.bf16.gmra.mxu0 %v1381
  %v1466 = vpop.f32.mrf.mxu0
  %v1467 = vadd.f32 0.0, %v1466
  %v1468 = vpop.f32.mrf.mxu0
  %v1469 = vadd.f32 0.0, %v1468
  %1470 = vmatmul.bf16.gmra.mxu0 %v1384
  %v1471 = vpop.f32.mrf.mxu0
  %v1472 = vadd.f32 0.0, %v1471
  %v1473 = vpop.f32.mrf.mxu0
  %v1474 = vadd.f32 0.0, %v1473
  %1475 = vmatmul.bf16.gmra.mxu0 %v1387
  %v1476 = vpop.f32.mrf.mxu0
  %v1477 = vadd.f32 0.0, %v1476
  %v1478 = vpop.f32.mrf.mxu0
  %v1479 = vadd.f32 0.0, %v1478
  %1480 = vmatmul.bf16.gmra.mxu0 %v1390
  %v1481 = vpop.f32.mrf.mxu0
  %v1482 = vadd.f32 0.0, %v1481
  %v1483 = vpop.f32.mrf.mxu0
  %v1484 = vadd.f32 0.0, %v1483
  %1485 = vmatmul.bf16.gmra.mxu0 %v1393
  %v1486 = vpop.f32.mrf.mxu0
  %v1487 = vadd.f32 0.0, %v1486
  %v1488 = vpop.f32.mrf.mxu0
  %v1489 = vadd.f32 0.0, %v1488
  %1490 = vmatmul.bf16.gmra.mxu0 %v1396
  %v1491 = vpop.f32.mrf.mxu0
  %v1492 = vadd.f32 0.0, %v1491
  %v1493 = vpop.f32.mrf.mxu0
  %v1494 = vadd.f32 0.0, %v1493
  %1495 = vmatmul.bf16.gmra.mxu0 %v1399
  %v1496 = vpop.f32.mrf.mxu0
  %v1497 = vadd.f32 0.0, %v1496
  %v1498 = vpop.f32.mrf.mxu0
  %v1499 = vadd.f32 0.0, %v1498
  %1500 = vmatmul.bf16.gmra.mxu0 %v1402
  %v1501 = vpop.f32.mrf.mxu0
  %v1502 = vadd.f32 0.0, %v1501
  %v1503 = vpop.f32.mrf.mxu0
  %v1504 = vadd.f32 0.0, %v1503
  %1505 = vmatmul.bf16.gmra.mxu0 %v1405
  %v1506 = vpop.f32.mrf.mxu0
  %v1507 = vadd.f32 0.0, %v1506
  %v1508 = vpop.f32.mrf.mxu0
  %v1509 = vadd.f32 0.0, %v1508
  %1510 = vmatmul.bf16.gmra.mxu0 %v1408
  %v1511 = vpop.f32.mrf.mxu0
  %v1512 = vadd.f32 0.0, %v1511
  %v1513 = vpop.f32.mrf.mxu0
  %v1514 = vadd.f32 0.0, %v1513
  %1515 = vmatmul.bf16.gmra.mxu0 %v1411
  %v1516 = vpop.f32.mrf.mxu0
  %v1517 = vadd.f32 0.0, %v1516
  %v1518 = vpop.f32.mrf.mxu0
  %v1519 = vadd.f32 0.0, %v1518
  %1520 = vmatmul.bf16.gmra.mxu0 %v1414
  %v1521 = vpop.f32.mrf.mxu0
  %v1522 = vadd.f32 0.0, %v1521
  %v1523 = vpop.f32.mrf.mxu0
  %v1524 = vadd.f32 0.0, %v1523
  %1525 = vmatmul.bf16.gmra.mxu0 %v1417
  %v1526 = vpop.f32.mrf.mxu0
  %v1527 = vadd.f32 0.0, %v1526
  %v1528 = vpop.f32.mrf.mxu0
  %v1529 = vadd.f32 0.0, %v1528
  %1530 = vmatmul.bf16.gmra.mxu0 %v1420
  %v1531 = vpop.f32.mrf.mxu0
  %v1532 = vadd.f32 0.0, %v1531
  %v1533 = vpop.f32.mrf.mxu0
  %v1534 = vadd.f32 0.0, %v1533
  %1535 = vmatmul.bf16.gmra.mxu0 %v1423
  %v1536 = vpop.f32.mrf.mxu0
  %v1537 = vadd.f32 0.0, %v1536
  %v1538 = vpop.f32.mrf.mxu0
  %v1539 = vadd.f32 0.0, %v1538
  %1540 = vmatmul.bf16.gmra.mxu0 %v1426
  %v1541 = vpop.f32.mrf.mxu0
  %v1542 = vadd.f32 0.0, %v1541
  %v1543 = vpop.f32.mrf.mxu0
  %v1544 = vadd.f32 0.0, %v1543
  %1545 = vmatmul.bf16.gmra.mxu0 %v1429
  %v1546 = vpop.f32.mrf.mxu0
  %v1547 = vadd.f32 0.0, %v1546
  %v1548 = vpop.f32.mrf.mxu0
  %v1549 = vadd.f32 0.0, %v1548
  %1550 = vmatmul.bf16.gmra.mxu0 %v1432
  %v1551 = vpop.f32.mrf.mxu0
  %v1552 = vadd.f32 0.0, %v1551
  %v1553 = vpop.f32.mrf.mxu0
  %v1554 = vadd.f32 0.0, %v1553
  %1555 = vmatmul.bf16.gmra.mxu0 %v1435
  %v1556 = vpop.f32.mrf.mxu0
  %v1557 = vadd.f32 0.0, %v1556
  %v1558 = vpop.f32.mrf.mxu0
  %v1559 = vadd.f32 0.0, %v1558
  %1560 = vmatmul.bf16.gmra.mxu0 %v1438
  %v1561 = vpop.f32.mrf.mxu0
  %v1562 = vadd.f32 0.0, %v1561
  %v1563 = vpop.f32.mrf.mxu0
  %v1564 = vadd.f32 0.0, %v1563
  %1565 = vmatmul.bf16.gmra.mxu0 %v1441
  %v1566 = vpop.f32.mrf.mxu0
  %v1567 = vadd.f32 0.0, %v1566
  %v1568 = vpop.f32.mrf.mxu0
  %v1569 = vadd.f32 0.0, %v1568
  %1570 = vmatmul.bf16.gmra.mxu0 %v1444
  %v1571 = vpop.f32.mrf.mxu0
  %v1572 = vadd.f32 0.0, %v1571
  %v1573 = vpop.f32.mrf.mxu0
  %v1574 = vadd.f32 0.0, %v1573
  %1575 = vmatmul.bf16.gmra.mxu0 %v1447
  %v1576 = vpop.f32.mrf.mxu0
  %v1577 = vadd.f32 0.0, %v1576
  %v1578 = vpop.f32.mrf.mxu0
  %v1579 = vadd.f32 0.0, %v1578
  %1580 = vmatmul.bf16.gmra.mxu0 %v1450
  %v1581 = vpop.f32.mrf.mxu0
  %v1582 = vadd.f32 0.0, %v1581
  %v1583 = vpop.f32.mrf.mxu0
  %1584 = vdwg.mxu0
  %v1585 = vmax.f32 %v319, %v700
  %v1586 = vmax.f32 %v321, %v702
  %v1587 = vmax.f32 %v324, %v705
  %v1588 = vmax.f32 %v326, %v707
  %v1589 = vmax.f32 %v329, %v710
  %v1590 = vmax.f32 %v331, %v712
  %v1591 = vmax.f32 %v334, %v715
  %v1592 = vmax.f32 %v336, %v717
  %v1593 = vmax.f32 %v339, %v720
  %v1594 = vmax.f32 %v341, %v722
  %v1595 = vmax.f32 %v344, %v725
  %v1596 = vmax.f32 %v346, %v727
  %v1597 = vmax.f32 %v349, %v730
  %v1598 = vmax.f32 %v351, %v732
  %v1599 = vmax.f32 %v354, %v735
  %v1600 = vmax.f32 %v356, %v737
  %v1601 = vmax.f32 %v359, %v740
  %v1602 = vmax.f32 %v361, %v742
  %v1603 = vmax.f32 %v364, %v745
  %v1604 = vmax.f32 %v366, %v747
  %v1605 = vmax.f32 %v369, %v750
  %v1606 = vmax.f32 %v371, %v752
  %v1607 = vmax.f32 %v374, %v755
  %v1608 = vmax.f32 %v376, %v757
  %v1609 = vmax.f32 %v379, %v760
  %v1610 = vmax.f32 %v381, %v762
  %v1611 = vmax.f32 %v384, %v765
  %v1612 = vmax.f32 %v386, %v767
  %v1613 = vmax.f32 %v389, %v770
  %v1614 = vmax.f32 %v391, %v772
  %v1615 = vmax.f32 %v394, %v775
  %v1616 = vmax.f32 %v396, %v777
  %v1617 = vmax.f32 %v399, %v780
  %v1618 = vmax.f32 %v401, %v782
  %v1619 = vmax.f32 %v404, %v785
  %v1620 = vmax.f32 %v406, %v787
  %v1621 = vmax.f32 %v409, %v790
  %v1622 = vmax.f32 %v411, %v792
  %v1623 = vmax.f32 %v414, %v795
  %v1624 = vmax.f32 %v416, %v797
  %v1625 = vmax.f32 %v419, %v800
  %v1626 = vmax.f32 %v421, %v802
  %v1627 = vmax.f32 %v424, %v805
  %v1628 = vmax.f32 %v426, %v807
  %v1629 = vmax.f32 %v429, %v810
  %v1630 = vmax.f32 %v431, %v812
  %v1631 = vmax.f32 %v434, %v815
  %v1632 = vmax.f32 %v436, %v817
  %v1633 = vmax.f32 %v439, %v820
  %v1634 = vmax.f32 %v1081, %v1462
  %v1635 = vmax.f32 %v1083, %v1464
  %v1636 = vmax.f32 %v1086, %v1467
  %v1637 = vmax.f32 %v1088, %v1469
  %v1638 = vmax.f32 %v1091, %v1472
  %v1639 = vmax.f32 %v1093, %v1474
  %v1640 = vmax.f32 %v1096, %v1477
  %v1641 = vmax.f32 %v1098, %v1479
  %v1642 = vmax.f32 %v1101, %v1482
  %v1643 = vmax.f32 %v1103, %v1484
  %v1644 = vmax.f32 %v1106, %v1487
  %v1645 = vmax.f32 %v1108, %v1489
  %v1646 = vmax.f32 %v1111, %v1492
  %v1647 = vmax.f32 %v1113, %v1494
  %v1648 = vmax.f32 %v1116, %v1497
  %v1649 = vmax.f32 %v1118, %v1499
  %v1650 = vmax.f32 %v1121, %v1502
  %v1651 = vmax.f32 %v1123, %v1504
  %v1652 = vmax.f32 %v1126, %v1507
  %v1653 = vmax.f32 %v1128, %v1509
  %v1654 = vmax.f32 %v1131, %v1512
  %v1655 = vmax.f32 %v1133, %v1514
  %v1656 = vmax.f32 %v1136, %v1517
  %v1657 = vmax.f32 %v1138, %v1519
  %v1658 = vmax.f32 %v1141, %v1522
  %v1659 = vmax.f32 %v1143, %v1524
  %v1660 = vmax.f32 %v1146, %v1527
  %v1661 = vmax.f32 %v1148, %v1529
  %v1662 = vmax.f32 %v1151, %v1532
  %v1663 = vmax.f32 %v1153, %v1534
  %v1664 = vmax.f32 %v1156, %v1537
  %v1665 = vmax.f32 %v1158, %v1539
  %v1666 = vmax.f32 %v1161, %v1542
  %v1667 = vmax.f32 %v1163, %v1544
  %v1668 = vmax.f32 %v1166, %v1547
  %v1669 = vmax.f32 %v1168, %v1549
  %v1670 = vmax.f32 %v1171, %v1552
  %v1671 = vmax.f32 %v1173, %v1554
  %v1672 = vmax.f32 %v1176, %v1557
  %v1673 = vmax.f32 %v1178, %v1559
  %v1674 = vmax.f32 %v1181, %v1562
  %v1675 = vmax.f32 %v1183, %v1564
  %v1676 = vmax.f32 %v1186, %v1567
  %v1677 = vmax.f32 %v1188, %v1569
  %v1678 = vmax.f32 %v1191, %v1572
  %v1679 = vmax.f32 %v1193, %v1574
  %v1680 = vmax.f32 %v1196, %v1577
  %v1681 = vmax.f32 %v1198, %v1579
  %v1682 = vmax.f32 %v1201, %v1582
  %v1683 = vmax.f32 %v1585, %v1634
  %v1684 = vmax.f32 %v1586, %v1635
  %v1685 = vmax.f32 %v1587, %v1636
  %v1686 = vmax.f32 %v1588, %v1637
  %v1687 = vmax.f32 %v1589, %v1638
  %v1688 = vmax.f32 %v1590, %v1639
  %v1689 = vmax.f32 %v1591, %v1640
  %v1690 = vmax.f32 %v1592, %v1641
  %v1691 = vmax.f32 %v1593, %v1642
  %v1692 = vmax.f32 %v1594, %v1643
  %v1693 = vmax.f32 %v1595, %v1644
  %v1694 = vmax.f32 %v1596, %v1645
  %v1695 = vmax.f32 %v1597, %v1646
  %v1696 = vmax.f32 %v1598, %v1647
  %v1697 = vmax.f32 %v1599, %v1648
  %v1698 = vmax.f32 %v1600, %v1649
  %v1699 = vmax.f32 %v1601, %v1650
  %v1700 = vmax.f32 %v1602, %v1651
  %v1701 = vmax.f32 %v1603, %v1652
  %v1702 = vmax.f32 %v1604, %v1653
  %v1703 = vmax.f32 %v1605, %v1654
  %v1704 = vmax.f32 %v1606, %v1655
  %v1705 = vmax.f32 %v1607, %v1656
  %v1706 = vmax.f32 %v1608, %v1657
  %v1707 = vmax.f32 %v1609, %v1658
  %v1708 = vmax.f32 %v1610, %v1659
  %v1709 = vmax.f32 %v1611, %v1660
  %v1710 = vmax.f32 %v1612, %v1661
  %v1711 = vmax.f32 %v1613, %v1662
  %v1712 = vmax.f32 %v1614, %v1663
  %v1713 = vmax.f32 %v1615, %v1664
  %v1714 = vmax.f32 %v1616, %v1665
  %v1715 = vmax.f32 %v1617, %v1666
  %v1716 = vmax.f32 %v1618, %v1667
  %v1717 = vmax.f32 %v1619, %v1668
  %v1718 = vmax.f32 %v1620, %v1669
  %v1719 = vmax.f32 %v1621, %v1670
  %v1720 = vmax.f32 %v1622, %v1671
  %v1721 = vmax.f32 %v1623, %v1672
  %v1722 = vmax.f32 %v1624, %v1673
  %v1723 = vmax.f32 %v1625, %v1674
  %v1724 = vmax.f32 %v1626, %v1675
  %v1725 = vmax.f32 %v1627, %v1676
  %v1726 = vmax.f32 %v1628, %v1677
  %v1727 = vmax.f32 %v1629, %v1678
  %v1728 = vmax.f32 %v1630, %v1679
  %v1729 = vmax.f32 %v1631, %v1680
  %v1730 = vmax.f32 %v1632, %v1681
  %v1731 = vmax.f32 %v1633, %v1682
  %v1732 = vld [vmem:[%s2] sm:$0x1]
  %v1734 = vperm.slane %v1732, 0
  %v1736 = vadd.f32 %v1683, %v1734
  %v1737 = vadd.f32 %v1684, %v1734
  %v1738 = vadd.f32 %v1685, %v1734
  %v1739 = vadd.f32 %v1686, %v1734
  %v1740 = vadd.f32 %v1687, %v1734
  %v1741 = vadd.f32 %v1688, %v1734
  %v1742 = vadd.f32 %v1689, %v1734
  %v1743 = vadd.f32 %v1690, %v1734
  %v1744 = vadd.f32 %v1691, %v1734
  %v1745 = vadd.f32 %v1692, %v1734
  %v1746 = vadd.f32 %v1693, %v1734
  %v1747 = vadd.f32 %v1694, %v1734
  %v1748 = vadd.f32 %v1695, %v1734
  %v1749 = vadd.f32 %v1696, %v1734
  %v1750 = vadd.f32 %v1697, %v1734
  %v1751 = vadd.f32 %v1698, %v1734
  %v1752 = vadd.f32 %v1699, %v1734
  %v1753 = vadd.f32 %v1700, %v1734
  %v1754 = vadd.f32 %v1701, %v1734
  %v1755 = vadd.f32 %v1702, %v1734
  %v1756 = vadd.f32 %v1703, %v1734
  %v1757 = vadd.f32 %v1704, %v1734
  %v1758 = vadd.f32 %v1705, %v1734
  %v1759 = vadd.f32 %v1706, %v1734
  %v1760 = vadd.f32 %v1707, %v1734
  %v1761 = vadd.f32 %v1708, %v1734
  %v1762 = vadd.f32 %v1709, %v1734
  %v1763 = vadd.f32 %v1710, %v1734
  %v1764 = vadd.f32 %v1711, %v1734
  %v1765 = vadd.f32 %v1712, %v1734
  %v1766 = vadd.f32 %v1713, %v1734
  %v1767 = vadd.f32 %v1714, %v1734
  %v1768 = vadd.f32 %v1715, %v1734
  %v1769 = vadd.f32 %v1716, %v1734
  %v1770 = vadd.f32 %v1717, %v1734
  %v1771 = vadd.f32 %v1718, %v1734
  %v1772 = vadd.f32 %v1719, %v1734
  %v1773 = vadd.f32 %v1720, %v1734
  %v1774 = vadd.f32 %v1721, %v1734
  %v1775 = vadd.f32 %v1722, %v1734
  %v1776 = vadd.f32 %v1723, %v1734
  %v1777 = vadd.f32 %v1724, %v1734
  %v1778 = vadd.f32 %v1725, %v1734
  %v1779 = vadd.f32 %v1726, %v1734
  %v1780 = vadd.f32 %v1727, %v1734
  %v1781 = vadd.f32 %v1728, %v1734
  %v1782 = vadd.f32 %v1729, %v1734
  %v1783 = vadd.f32 %v1730, %v1734
  %v1784 = vadd.f32 %v1731, %v1734
  %v1785 = vmax.f32 %v1736, 0.0
  %v1786 = vmax.f32 %v1737, 0.0
  %v1787 = vmax.f32 %v1738, 0.0
  %v1788 = vmax.f32 %v1739, 0.0
  %v1789 = vmax.f32 %v1740, 0.0
  %v1790 = vmax.f32 %v1741, 0.0
  %v1791 = vmax.f32 %v1742, 0.0
  %v1792 = vmax.f32 %v1743, 0.0
  %v1793 = vmax.f32 %v1744, 0.0
  %v1794 = vmax.f32 %v1745, 0.0
  %v1795 = vmax.f32 %v1746, 0.0
  %v1796 = vmax.f32 %v1747, 0.0
  %v1797 = vmax.f32 %v1748, 0.0
  %v1798 = vmax.f32 %v1749, 0.0
  %v1799 = vmax.f32 %v1750, 0.0
  %v1800 = vmax.f32 %v1751, 0.0
  %v1801 = vmax.f32 %v1752, 0.0
  %v1802 = vmax.f32 %v1753, 0.0
  %v1803 = vmax.f32 %v1754, 0.0
  %v1804 = vmax.f32 %v1755, 0.0
  %v1805 = vmax.f32 %v1756, 0.0
  %v1806 = vmax.f32 %v1757, 0.0
  %v1807 = vmax.f32 %v1758, 0.0
  %v1808 = vmax.f32 %v1759, 0.0
  %v1809 = vmax.f32 %v1760, 0.0
  %v1810 = vmax.f32 %v1761, 0.0
  %v1811 = vmax.f32 %v1762, 0.0
  %v1812 = vmax.f32 %v1763, 0.0
  %v1813 = vmax.f32 %v1764, 0.0
  %v1814 = vmax.f32 %v1765, 0.0
  %v1815 = vmax.f32 %v1766, 0.0
  %v1816 = vmax.f32 %v1767, 0.0
  %v1817 = vmax.f32 %v1768, 0.0
  %v1818 = vmax.f32 %v1769, 0.0
  %v1819 = vmax.f32 %v1770, 0.0
  %v1820 = vmax.f32 %v1771, 0.0
  %v1821 = vmax.f32 %v1772, 0.0
  %v1822 = vmax.f32 %v1773, 0.0
  %v1823 = vmax.f32 %v1774, 0.0
  %v1824 = vmax.f32 %v1775, 0.0
  %v1825 = vmax.f32 %v1776, 0.0
  %v1826 = vmax.f32 %v1777, 0.0
  %v1827 = vmax.f32 %v1778, 0.0
  %v1828 = vmax.f32 %v1779, 0.0
  %v1829 = vmax.f32 %v1780, 0.0
  %v1830 = vmax.f32 %v1781, 0.0
  %v1831 = vmax.f32 %v1782, 0.0
  %v1832 = vmax.f32 %v1783, 0.0
  %v1833 = vmax.f32 %v1784, 0.0
  %1834 = vst [vmem:[%s3] sm:$0xff] %v1785
  %1835 = vst [vmem:[%s3 + $0x8] sm:$0xff] %v1786
  %1836 = vst [vmem:[%s3 + $0x10] sm:$0xff] %v1787
  %1837 = vst [vmem:[%s3 + $0x18] sm:$0xff] %v1788
  %1838 = vst [vmem:[%s3 + $0x20] sm:$0xff] %v1789
  %1839 = vst [vmem:[%s3 + $0x28] sm:$0xff] %v1790
  %1840 = vst [vmem:[%s3 + $0x30] sm:$0xff] %v1791
  %1841 = vst [vmem:[%s3 + $0x38] sm:$0xff] %v1792
  %1842 = vst [vmem:[%s3 + $0x40] sm:$0xff] %v1793
  %1843 = vst [vmem:[%s3 + $0x48] sm:$0xff] %v1794
  %1844 = vst [vmem:[%s3 + $0x50] sm:$0xff] %v1795
  %1845 = vst [vmem:[%s3 + $0x58] sm:$0xff] %v1796
  %1846 = vst [vmem:[%s3 + $0x60] sm:$0xff] %v1797
  %1847 = vst [vmem:[%s3 + $0x68] sm:$0xff] %v1798
  %1848 = vst [vmem:[%s3 + $0x70] sm:$0xff] %v1799
  %1849 = vst [vmem:[%s3 + $0x78] sm:$0xff] %v1800
  %1850 = vst [vmem:[%s3 + $0x80] sm:$0xff] %v1801
  %1851 = vst [vmem:[%s3 + $0x88] sm:$0xff] %v1802
  %1852 = vst [vmem:[%s3 + $0x90] sm:$0xff] %v1803
  %1853 = vst [vmem:[%s3 + $0x98] sm:$0xff] %v1804
  %1854 = vst [vmem:[%s3 + $0xa0] sm:$0xff] %v1805
  %1855 = vst [vmem:[%s3 + $0xa8] sm:$0xff] %v1806
  %1856 = vst [vmem:[%s3 + $0xb0] sm:$0xff] %v1807
  %1857 = vst [vmem:[%s3 + $0xb8] sm:$0xff] %v1808
  %1858 = vst [vmem:[%s3 + $0xc0] sm:$0xff] %v1809
  %1859 = vst [vmem:[%s3 + $0xc8] sm:$0xff] %v1810
  %1860 = vst [vmem:[%s3 + $0xd0] sm:$0xff] %v1811
  %1861 = vst [vmem:[%s3 + $0xd8] sm:$0xff] %v1812
  %1862 = vst [vmem:[%s3 + $0xe0] sm:$0xff] %v1813
  %1863 = vst [vmem:[%s3 + $0xe8] sm:$0xff] %v1814
  %1864 = vst [vmem:[%s3 + $0xf0] sm:$0xff] %v1815
  %1865 = vst [vmem:[%s3 + $0xf8] sm:$0xff] %v1816
  %1866 = vst [vmem:[%s3 + $0x100] sm:$0xff] %v1817
  %1867 = vst [vmem:[%s3 + $0x108] sm:$0xff] %v1818
  %1868 = vst [vmem:[%s3 + $0x110] sm:$0xff] %v1819
  %1869 = vst [vmem:[%s3 + $0x118] sm:$0xff] %v1820
  %1870 = vst [vmem:[%s3 + $0x120] sm:$0xff] %v1821
  %1871 = vst [vmem:[%s3 + $0x128] sm:$0xff] %v1822
  %1872 = vst [vmem:[%s3 + $0x130] sm:$0xff] %v1823
  %1873 = vst [vmem:[%s3 + $0x138] sm:$0xff] %v1824
  %1874 = vst [vmem:[%s3 + $0x140] sm:$0xff] %v1825
  %1875 = vst [vmem:[%s3 + $0x148] sm:$0xff] %v1826
  %1876 = vst [vmem:[%s3 + $0x150] sm:$0xff] %v1827
  %1877 = vst [vmem:[%s3 + $0x158] sm:$0xff] %v1828
  %1878 = vst [vmem:[%s3 + $0x160] sm:$0xff] %v1829
  %1879 = vst [vmem:[%s3 + $0x168] sm:$0xff] %v1830
  %1880 = vst [vmem:[%s3 + $0x170] sm:$0xff] %v1831
  %1881 = vst [vmem:[%s3 + $0x178] sm:$0xff] %v1832
  %1882 = vst [vmem:[%s3 + $0x180] sm:$0xff] %v1833
  // Predicated region
  $region14: #{net_forward.3} parent=0 // pred_check
    _
  $region15: #{net_forward.3} parent=0 // pred_check_branch
    %1884 = sbr.rel (0) target = $region17
  $region16: #{net_forward.3} parent=0 // pred_region
    _
  $region17: #{net_forward.3} parent=0 // pred_fallthru
    _
  // Predicated region
  $region18: #{net_forward.3} parent=0 // pred_check
    _
  $region19: #{net_forward.3} parent=0 // pred_check_branch
    %1886 = sbr.rel (0) target = $region21
  $region20: #{net_forward.3} parent=0 // pred_region
    _
  $region21: #{net_forward.3} parent=0 // pred_fallthru
    _

// kernel: net_forward.4
$region0: #{net_forward.4}
  #allocation0 [shape = 'u32[]', space=smem, size = 0x4, offset = 0x4, fixed_abs, tag = 'smem constant byte address 0x4 - core index']
  #allocation1 [shape = 'u32[72,128]{1,0:T(1,128)}', space=vmem, size = 0x9000, scoped, tag = 'internal scratch']
  %s0 = inlined_call_operand.vmem [shape: bf16[4,50,150], index: 0, kind: input, shape index: {}]
  %s1 = inlined_call_operand.vmem [shape: bf16[150,128], index: 1, kind: input, shape index: {}]
  %s2 = inlined_call_operand.vmem [shape: f32[1,128], index: 2, kind: input, shape index: {}]
  %s3 = inlined_call_operand.vmem [shape: f32[50,128], index: 3, kind: output, shape index: {}]
  %s4 = sld [smem:[#allocation0]]
  $region22: #{net_forward.4} parent=0
    _
  %s6 = ssub.s32 1, %s4
  %s7 = scalar_select 0, %s6, %s4
  // Predicated region
  $region2: #{net_forward.4} parent=0 // pred_check
    _
  $region3: #{net_forward.4} parent=0 // pred_check_branch
    %9 = sbr.rel (0) target = $region5
  $region4: #{net_forward.4} parent=0 // pred_region
    _
  $region5: #{net_forward.4} parent=0 // pred_fallthru
    _
  // Predicated region
  $region6: #{net_forward.4} parent=0 // pred_check
    _
  $region7: #{net_forward.4} parent=0 // pred_check_branch
    %11 = sbr.rel (0) target = $region9
  $region8: #{net_forward.4} parent=0 // pred_region
    _
  $region9: #{net_forward.4} parent=0 // pred_fallthru
    _
  // Predicated region
  $region10: #{net_forward.4} parent=0 // pred_check
    _
  $region11: #{net_forward.4} parent=0 // pred_check_branch
    %13 = sbr.rel (0) target = $region13
  $region12: #{net_forward.4} parent=0 // pred_region
    _
  $region13: #{net_forward.4} parent=0 // pred_fallthru
    _
  %v15 = vld [vmem:[%s1] sm:$0xf]
  %v16 = vld [vmem:[%s1 + $0x4] sm:$0xf]
  %v17 = vld [vmem:[%s1 + $0x8] sm:$0xf]
  %v18 = vld [vmem:[%s1 + $0xc] sm:$0xf]
  %v19 = vld [vmem:[%s1 + $0x10] sm:$0xf]
  %v20 = vld [vmem:[%s1 + $0x14] sm:$0xf]
  %v21 = vld [vmem:[%s1 + $0x18] sm:$0xf]
  %v22 = vld [vmem:[%s1 + $0x1c] sm:$0xf]
  %v23 = vld [vmem:[%s1 + $0x20] sm:$0xf]
  %v24 = vld [vmem:[%s1 + $0x24] sm:$0xf]
  %v25 = vld [vmem:[%s1 + $0x28] sm:$0xf]
  %v26 = vld [vmem:[%s1 + $0x2c] sm:$0xf]
  %v27 = vld [vmem:[%s1 + $0x30] sm:$0xf]
  %v28 = vld [vmem:[%s1 + $0x34] sm:$0xf]
  %v29 = vld [vmem:[%s1 + $0x38] sm:$0xf]
  %v30 = vld [vmem:[%s1 + $0x3c] sm:$0xf]
  %v31 = vld [vmem:[%s1 + $0x40] sm:$0xf]
  %v32 = vld [vmem:[%s1 + $0x44] sm:$0xf]
  %v33 = vld [vmem:[%s1 + $0x48] sm:$0x7]
  %v34 = vld [vmem:[%s0] sm:$0xff]
  %v35 = vld [vmem:[%s0 + $0x8] sm:$0xff]
  %v36 = vld [vmem:[%s0 + $0x10] sm:$0xff]
  %v37 = vld [vmem:[%s0 + $0x18] sm:$0xff]
  %v38 = vld [vmem:[%s0 + $0x20] sm:$0xff]
  %v39 = vld [vmem:[%s0 + $0x28] sm:$0xff]
  %v40 = vld [vmem:[%s0 + $0x30] sm:$0x11]
  %v48 = vunpack.c.l.b16 %v34
  %v49 = vunpack.c.h.b16 %v34
  %v50 = vunpack.c.l.b16 %v35
  %v51 = vunpack.c.h.b16 %v35
  %v52 = vunpack.c.l.b16 %v36
  %v53 = vunpack.c.h.b16 %v36
  %v54 = vunpack.c.l.b16 %v37
  %v55 = vunpack.c.h.b16 %v37
  %v56 = vunpack.c.l.b16 %v38
  %v57 = vunpack.c.h.b16 %v38
  %v58 = vunpack.c.l.b16 %v39
  %v59 = vunpack.c.h.b16 %v39
  %v60 = vunpack.c.l.b16 %v40
  %v61 = vunpack.c.h.b16 %v40
  %v62 = vpack.c.b16 %v50, %v48
  %v63 = vpack.c.b16 %v51, %v49
  %v64 = vpack.c.b16 %v54, %v52
  %v65 = vpack.c.b16 %v55, %v53
  %v66 = vpack.c.b16 %v58, %v56
  %v67 = vpack.c.b16 %v59, %v57
  %v68 = vpack.c.b16 %v60, %v60
  %v69 = vpack.c.b16 %v61, %v61
  %v93 = vunpack.c.l.b16 %v15
  %v94 = vunpack.c.l.b16 %v16
  %v95 = vunpack.c.l.b16 %v17
  %v96 = vunpack.c.l.b16 %v18
  %v97 = vunpack.c.l.b16 %v19
  %v98 = vunpack.c.l.b16 %v20
  %v99 = vunpack.c.l.b16 %v21
  %v100 = vunpack.c.l.b16 %v22
  %v101 = vunpack.c.l.b16 %v23
  %v102 = vunpack.c.l.b16 %v24
  %v103 = vunpack.c.l.b16 %v25
  %v104 = vunpack.c.l.b16 %v26
  %v105 = vunpack.c.l.b16 %v27
  %v106 = vunpack.c.l.b16 %v28
  %v107 = vunpack.c.l.b16 %v29
  %v108 = vunpack.c.l.b16 %v30
  %v109 = vunpack.c.l.b16 %v31
  %v110 = vunpack.c.l.b16 %v32
  %v111 = vunpack.c.l.b16 %v33
  %v112 = vpack.c.b16 %v94, %v93
  %v113 = vpack.c.b16 %v96, %v95
  %v114 = vpack.c.b16 %v98, %v97
  %v115 = vpack.c.b16 %v100, %v99
  %v116 = vpack.c.b16 %v102, %v101
  %v117 = vpack.c.b16 %v104, %v103
  %v118 = vpack.c.b16 %v106, %v105
  %v119 = vpack.c.b16 %v108, %v107
  %v120 = vpack.c.b16 %v110, %v109
  %v121 = vpack.c.b16 %v111, %v111
  %vm131 = vcmask 179200
  %v133 = vsel %vm131, %v63, 0
  %v136 = vsel %vm131, %v65, 0
  %v139 = vsel %vm131, %v67, 0
  %v142 = vsel %vm131, %v69, 0
  %vm144 = vcmask 1042432
  %v146 = vsel %vm144, %v121, 0
  %148 = vmatpush.bf16.msra.mxu0 %v119
  %149 = vmatpush.bf16.msra.mxu0 %v118
  %150 = vmatpush.bf16.msra.mxu0 %v117
  %151 = vmatpush.bf16.msra.mxu0 %v116
  %152 = vmatpush.bf16.msra.mxu0 %v115
  %153 = vmatpush.bf16.msra.mxu0 %v114
  %154 = vmatpush.bf16.msra.mxu0 %v113
  %155 = vmatpush.bf16.msra.mxu0 %v112
  %156 = vmatmul.bf16.gmra.mxu0 %v62
  %v157 = vpop.f32.mrf.mxu0
  %v158 = vadd.f32 0.0, %v157
  %v159 = vpop.f32.mrf.mxu0
  %v160 = vadd.f32 0.0, %v159
  %161 = vmatmul.bf16.gmra.mxu0 %v64
  %v162 = vpop.f32.mrf.mxu0
  %v163 = vadd.f32 0.0, %v162
  %v164 = vpop.f32.mrf.mxu0
  %v165 = vadd.f32 0.0, %v164
  %166 = vmatmul.bf16.gmra.mxu0 %v66
  %v167 = vpop.f32.mrf.mxu0
  %v168 = vadd.f32 0.0, %v167
  %v169 = vpop.f32.mrf.mxu0
  %v170 = vadd.f32 0.0, %v169
  %171 = vmatmul.bf16.gmra.mxu0 %v68
  %v172 = vpop.f32.mrf.mxu0
  %v173 = vadd.f32 0.0, %v172
  %v174 = vpop.f32.mrf.mxu0
  %175 = vdwg.mxu0
  %176 = vmatpush.bf16.msra.mxu0 0
  %177 = vmatpush.bf16.msra.mxu0 0
  %178 = vmatpush.bf16.msra.mxu0 0
  %179 = vmatpush.bf16.msra.mxu0 0
  %180 = vmatpush.bf16.msra.mxu0 0
  %181 = vmatpush.bf16.msra.mxu0 0
  %182 = vmatpush.bf16.msra.mxu0 %v146
  %183 = vmatpush.bf16.msra.mxu0 %v120
  %184 = vmatmul.bf16.gmra.mxu0 %v133
  %v185 = vpop.f32.mrf.mxu0
  %v186 = vadd.f32 %v158, %v185
  %v187 = vpop.f32.mrf.mxu0
  %v188 = vadd.f32 %v160, %v187
  %189 = vmatmul.bf16.gmra.mxu0 %v136
  %v190 = vpop.f32.mrf.mxu0
  %v191 = vadd.f32 %v163, %v190
  %v192 = vpop.f32.mrf.mxu0
  %v193 = vadd.f32 %v165, %v192
  %194 = vmatmul.bf16.gmra.mxu0 %v139
  %v195 = vpop.f32.mrf.mxu0
  %v196 = vadd.f32 %v168, %v195
  %v197 = vpop.f32.mrf.mxu0
  %v198 = vadd.f32 %v170, %v197
  %199 = vmatmul.bf16.gmra.mxu0 %v142
  %v200 = vpop.f32.mrf.mxu0
  %v201 = vadd.f32 %v173, %v200
  %v202 = vpop.f32.mrf.mxu0
  %203 = vdwg.mxu0
  %s204 = scalar_lea.vmem %s0, 56
  %v205 = vld [vmem:[%s204] sm:$0xff]
  %v206 = vld [vmem:[%s204 + $0x8] sm:$0xff]
  %v207 = vld [vmem:[%s204 + $0x10] sm:$0xff]
  %v208 = vld [vmem:[%s204 + $0x18] sm:$0xff]
  %v209 = vld [vmem:[%s204 + $0x20] sm:$0xff]
  %v210 = vld [vmem:[%s204 + $0x28] sm:$0xff]
  %v211 = vld [vmem:[%s204 + $0x30] sm:$0x11]
  %v219 = vunpack.c.l.b16 %v205
  %v220 = vunpack.c.h.b16 %v205
  %v221 = vunpack.c.l.b16 %v206
  %v222 = vunpack.c.h.b16 %v206
  %v223 = vunpack.c.l.b16 %v207
  %v224 = vunpack.c.h.b16 %v207
  %v225 = vunpack.c.l.b16 %v208
  %v226 = vunpack.c.h.b16 %v208
  %v227 = vunpack.c.l.b16 %v209
  %v228 = vunpack.c.h.b16 %v209
  %v229 = vunpack.c.l.b16 %v210
  %v230 = vunpack.c.h.b16 %v210
  %v231 = vunpack.c.l.b16 %v211
  %v232 = vunpack.c.h.b16 %v211
  %v233 = vpack.c.b16 %v221, %v219
  %v234 = vpack.c.b16 %v222, %v220
  %v235 = vpack.c.b16 %v225, %v223
  %v236 = vpack.c.b16 %v226, %v224
  %v237 = vpack.c.b16 %v229, %v227
  %v238 = vpack.c.b16 %v230, %v228
  %v239 = vpack.c.b16 %v231, %v231
  %v240 = vpack.c.b16 %v232, %v232
  %v246 = vsel %vm131, %v234, 0
  %v249 = vsel %vm131, %v236, 0
  %v252 = vsel %vm131, %v238, 0
  %v255 = vsel %vm131, %v240, 0
  %257 = vmatpush.bf16.msra.mxu0 %v119
  %258 = vmatpush.bf16.msra.mxu0 %v118
  %259 = vmatpush.bf16.msra.mxu0 %v117
  %260 = vmatpush.bf16.msra.mxu0 %v116
  %261 = vmatpush.bf16.msra.mxu0 %v115
  %262 = vmatpush.bf16.msra.mxu0 %v114
  %263 = vmatpush.bf16.msra.mxu0 %v113
  %264 = vmatpush.bf16.msra.mxu0 %v112
  %265 = vmatmul.bf16.gmra.mxu0 %v233
  %v266 = vpop.f32.mrf.mxu0
  %v267 = vadd.f32 0.0, %v266
  %v268 = vpop.f32.mrf.mxu0
  %v269 = vadd.f32 0.0, %v268
  %270 = vmatmul.bf16.gmra.mxu0 %v235
  %v271 = vpop.f32.mrf.mxu0
  %v272 = vadd.f32 0.0, %v271
  %v273 = vpop.f32.mrf.mxu0
  %v274 = vadd.f32 0.0, %v273
  %275 = vmatmul.bf16.gmra.mxu0 %v237
  %v276 = vpop.f32.mrf.mxu0
  %v277 = vadd.f32 0.0, %v276
  %v278 = vpop.f32.mrf.mxu0
  %v279 = vadd.f32 0.0, %v278
  %280 = vmatmul.bf16.gmra.mxu0 %v239
  %v281 = vpop.f32.mrf.mxu0
  %v282 = vadd.f32 0.0, %v281
  %v283 = vpop.f32.mrf.mxu0
  %284 = vdwg.mxu0
  %285 = vmatpush.bf16.msra.mxu0 0
  %286 = vmatpush.bf16.msra.mxu0 0
  %287 = vmatpush.bf16.msra.mxu0 0
  %288 = vmatpush.bf16.msra.mxu0 0
  %289 = vmatpush.bf16.msra.mxu0 0
  %290 = vmatpush.bf16.msra.mxu0 0
  %291 = vmatpush.bf16.msra.mxu0 %v146
  %292 = vmatpush.bf16.msra.mxu0 %v120
  %293 = vmatmul.bf16.gmra.mxu0 %v246
  %v294 = vpop.f32.mrf.mxu0
  %v295 = vadd.f32 %v267, %v294
  %v296 = vpop.f32.mrf.mxu0
  %v297 = vadd.f32 %v269, %v296
  %298 = vmatmul.bf16.gmra.mxu0 %v249
  %v299 = vpop.f32.mrf.mxu0
  %v300 = vadd.f32 %v272, %v299
  %v301 = vpop.f32.mrf.mxu0
  %v302 = vadd.f32 %v274, %v301
  %303 = vmatmul.bf16.gmra.mxu0 %v252
  %v304 = vpop.f32.mrf.mxu0
  %v305 = vadd.f32 %v277, %v304
  %v306 = vpop.f32.mrf.mxu0
  %v307 = vadd.f32 %v279, %v306
  %308 = vmatmul.bf16.gmra.mxu0 %v255
  %v309 = vpop.f32.mrf.mxu0
  %v310 = vadd.f32 %v282, %v309
  %v311 = vpop.f32.mrf.mxu0
  %312 = vdwg.mxu0
  %s313 = scalar_lea.vmem %s0, 112
  %v314 = vld [vmem:[%s313] sm:$0xff]
  %v315 = vld [vmem:[%s313 + $0x8] sm:$0xff]
  %v316 = vld [vmem:[%s313 + $0x10] sm:$0xff]
  %v317 = vld [vmem:[%s313 + $0x18] sm:$0xff]
  %v318 = vld [vmem:[%s313 + $0x20] sm:$0xff]
  %v319 = vld [vmem:[%s313 + $0x28] sm:$0xff]
  %v320 = vld [vmem:[%s313 + $0x30] sm:$0x11]
  %v328 = vunpack.c.l.b16 %v314
  %v329 = vunpack.c.h.b16 %v314
  %v330 = vunpack.c.l.b16 %v315
  %v331 = vunpack.c.h.b16 %v315
  %v332 = vunpack.c.l.b16 %v316
  %v333 = vunpack.c.h.b16 %v316
  %v334 = vunpack.c.l.b16 %v317
  %v335 = vunpack.c.h.b16 %v317
  %v336 = vunpack.c.l.b16 %v318
  %v337 = vunpack.c.h.b16 %v318
  %v338 = vunpack.c.l.b16 %v319
  %v339 = vunpack.c.h.b16 %v319
  %v340 = vunpack.c.l.b16 %v320
  %v341 = vunpack.c.h.b16 %v320
  %v342 = vpack.c.b16 %v330, %v328
  %v343 = vpack.c.b16 %v331, %v329
  %v344 = vpack.c.b16 %v334, %v332
  %v345 = vpack.c.b16 %v335, %v333
  %v346 = vpack.c.b16 %v338, %v336
  %v347 = vpack.c.b16 %v339, %v337
  %v348 = vpack.c.b16 %v340, %v340
  %v349 = vpack.c.b16 %v341, %v341
  %v355 = vsel %vm131, %v343, 0
  %v358 = vsel %vm131, %v345, 0
  %v361 = vsel %vm131, %v347, 0
  %v364 = vsel %vm131, %v349, 0
  %366 = vmatpush.bf16.msra.mxu0 %v119
  %367 = vmatpush.bf16.msra.mxu0 %v118
  %368 = vmatpush.bf16.msra.mxu0 %v117
  %369 = vmatpush.bf16.msra.mxu0 %v116
  %370 = vmatpush.bf16.msra.mxu0 %v115
  %371 = vmatpush.bf16.msra.mxu0 %v114
  %372 = vmatpush.bf16.msra.mxu0 %v113
  %373 = vmatpush.bf16.msra.mxu0 %v112
  %374 = vmatmul.bf16.gmra.mxu0 %v342
  %v375 = vpop.f32.mrf.mxu0
  %v376 = vadd.f32 0.0, %v375
  %v377 = vpop.f32.mrf.mxu0
  %v378 = vadd.f32 0.0, %v377
  %379 = vmatmul.bf16.gmra.mxu0 %v344
  %v380 = vpop.f32.mrf.mxu0
  %v381 = vadd.f32 0.0, %v380
  %v382 = vpop.f32.mrf.mxu0
  %v383 = vadd.f32 0.0, %v382
  %384 = vmatmul.bf16.gmra.mxu0 %v346
  %v385 = vpop.f32.mrf.mxu0
  %v386 = vadd.f32 0.0, %v385
  %v387 = vpop.f32.mrf.mxu0
  %v388 = vadd.f32 0.0, %v387
  %389 = vmatmul.bf16.gmra.mxu0 %v348
  %v390 = vpop.f32.mrf.mxu0
  %v391 = vadd.f32 0.0, %v390
  %v392 = vpop.f32.mrf.mxu0
  %393 = vdwg.mxu0
  %394 = vmatpush.bf16.msra.mxu0 0
  %395 = vmatpush.bf16.msra.mxu0 0
  %396 = vmatpush.bf16.msra.mxu0 0
  %397 = vmatpush.bf16.msra.mxu0 0
  %398 = vmatpush.bf16.msra.mxu0 0
  %399 = vmatpush.bf16.msra.mxu0 0
  %400 = vmatpush.bf16.msra.mxu0 %v146
  %401 = vmatpush.bf16.msra.mxu0 %v120
  %402 = vmatmul.bf16.gmra.mxu0 %v355
  %v403 = vpop.f32.mrf.mxu0
  %v404 = vadd.f32 %v376, %v403
  %v405 = vpop.f32.mrf.mxu0
  %v406 = vadd.f32 %v378, %v405
  %407 = vmatmul.bf16.gmra.mxu0 %v358
  %v408 = vpop.f32.mrf.mxu0
  %v409 = vadd.f32 %v381, %v408
  %v410 = vpop.f32.mrf.mxu0
  %v411 = vadd.f32 %v383, %v410
  %412 = vmatmul.bf16.gmra.mxu0 %v361
  %v413 = vpop.f32.mrf.mxu0
  %v414 = vadd.f32 %v386, %v413
  %v415 = vpop.f32.mrf.mxu0
  %v416 = vadd.f32 %v388, %v415
  %417 = vmatmul.bf16.gmra.mxu0 %v364
  %v418 = vpop.f32.mrf.mxu0
  %v419 = vadd.f32 %v391, %v418
  %v420 = vpop.f32.mrf.mxu0
  %421 = vdwg.mxu0
  %s422 = scalar_lea.vmem %s0, 168
  %v423 = vld [vmem:[%s422] sm:$0xff]
  %v424 = vld [vmem:[%s422 + $0x8] sm:$0xff]
  %v425 = vld [vmem:[%s422 + $0x10] sm:$0xff]
  %v426 = vld [vmem:[%s422 + $0x18] sm:$0xff]
  %v427 = vld [vmem:[%s422 + $0x20] sm:$0xff]
  %v428 = vld [vmem:[%s422 + $0x28] sm:$0xff]
  %v429 = vld [vmem:[%s422 + $0x30] sm:$0x11]
  %v437 = vunpack.c.l.b16 %v423
  %v438 = vunpack.c.h.b16 %v423
  %v439 = vunpack.c.l.b16 %v424
  %v440 = vunpack.c.h.b16 %v424
  %v441 = vunpack.c.l.b16 %v425
  %v442 = vunpack.c.h.b16 %v425
  %v443 = vunpack.c.l.b16 %v426
  %v444 = vunpack.c.h.b16 %v426
  %v445 = vunpack.c.l.b16 %v427
  %v446 = vunpack.c.h.b16 %v427
  %v447 = vunpack.c.l.b16 %v428
  %v448 = vunpack.c.h.b16 %v428
  %v449 = vunpack.c.l.b16 %v429
  %v450 = vunpack.c.h.b16 %v429
  %v451 = vpack.c.b16 %v439, %v437
  %v452 = vpack.c.b16 %v440, %v438
  %v453 = vpack.c.b16 %v443, %v441
  %v454 = vpack.c.b16 %v444, %v442
  %v455 = vpack.c.b16 %v447, %v445
  %v456 = vpack.c.b16 %v448, %v446
  %v457 = vpack.c.b16 %v449, %v449
  %v458 = vpack.c.b16 %v450, %v450
  %v464 = vsel %vm131, %v452, 0
  %v467 = vsel %vm131, %v454, 0
  %v470 = vsel %vm131, %v456, 0
  %v473 = vsel %vm131, %v458, 0
  %475 = vmatpush.bf16.msra.mxu0 %v119
  %476 = vmatpush.bf16.msra.mxu0 %v118
  %477 = vmatpush.bf16.msra.mxu0 %v117
  %478 = vmatpush.bf16.msra.mxu0 %v116
  %479 = vmatpush.bf16.msra.mxu0 %v115
  %480 = vmatpush.bf16.msra.mxu0 %v114
  %481 = vmatpush.bf16.msra.mxu0 %v113
  %482 = vmatpush.bf16.msra.mxu0 %v112
  %483 = vmatmul.bf16.gmra.mxu0 %v451
  %v484 = vpop.f32.mrf.mxu0
  %v485 = vadd.f32 0.0, %v484
  %v486 = vpop.f32.mrf.mxu0
  %v487 = vadd.f32 0.0, %v486
  %488 = vmatmul.bf16.gmra.mxu0 %v453
  %v489 = vpop.f32.mrf.mxu0
  %v490 = vadd.f32 0.0, %v489
  %v491 = vpop.f32.mrf.mxu0
  %v492 = vadd.f32 0.0, %v491
  %493 = vmatmul.bf16.gmra.mxu0 %v455
  %v494 = vpop.f32.mrf.mxu0
  %v495 = vadd.f32 0.0, %v494
  %v496 = vpop.f32.mrf.mxu0
  %v497 = vadd.f32 0.0, %v496
  %498 = vmatmul.bf16.gmra.mxu0 %v457
  %v499 = vpop.f32.mrf.mxu0
  %v500 = vadd.f32 0.0, %v499
  %v501 = vpop.f32.mrf.mxu0
  %502 = vdwg.mxu0
  %503 = vmatpush.bf16.msra.mxu0 0
  %504 = vmatpush.bf16.msra.mxu0 0
  %505 = vmatpush.bf16.msra.mxu0 0
  %506 = vmatpush.bf16.msra.mxu0 0
  %507 = vmatpush.bf16.msra.mxu0 0
  %508 = vmatpush.bf16.msra.mxu0 0
  %509 = vmatpush.bf16.msra.mxu0 %v146
  %510 = vmatpush.bf16.msra.mxu0 %v120
  %511 = vmatmul.bf16.gmra.mxu0 %v464
  %v512 = vpop.f32.mrf.mxu0
  %v513 = vadd.f32 %v485, %v512
  %v514 = vpop.f32.mrf.mxu0
  %v515 = vadd.f32 %v487, %v514
  %516 = vmatmul.bf16.gmra.mxu0 %v467
  %v517 = vpop.f32.mrf.mxu0
  %v518 = vadd.f32 %v490, %v517
  %v519 = vpop.f32.mrf.mxu0
  %v520 = vadd.f32 %v492, %v519
  %521 = vmatmul.bf16.gmra.mxu0 %v470
  %v522 = vpop.f32.mrf.mxu0
  %v523 = vadd.f32 %v495, %v522
  %v524 = vpop.f32.mrf.mxu0
  %v525 = vadd.f32 %v497, %v524
  %526 = vmatmul.bf16.gmra.mxu0 %v473
  %v527 = vpop.f32.mrf.mxu0
  %v528 = vadd.f32 %v500, %v527
  %v529 = vpop.f32.mrf.mxu0
  %530 = vdwg.mxu0
  %v531 = vmax.f32 %v186, %v295
  %v532 = vmax.f32 %v188, %v297
  %v533 = vmax.f32 %v191, %v300
  %v534 = vmax.f32 %v193, %v302
  %v535 = vmax.f32 %v196, %v305
  %v536 = vmax.f32 %v198, %v307
  %v537 = vmax.f32 %v201, %v310
  %v538 = vmax.f32 %v404, %v513
  %v539 = vmax.f32 %v406, %v515
  %v540 = vmax.f32 %v409, %v518
  %v541 = vmax.f32 %v411, %v520
  %v542 = vmax.f32 %v414, %v523
  %v543 = vmax.f32 %v416, %v525
  %v544 = vmax.f32 %v419, %v528
  %v545 = vmax.f32 %v531, %v538
  %v546 = vmax.f32 %v532, %v539
  %v547 = vmax.f32 %v533, %v540
  %v548 = vmax.f32 %v534, %v541
  %v549 = vmax.f32 %v535, %v542
  %v550 = vmax.f32 %v536, %v543
  %v551 = vmax.f32 %v537, %v544
  %v552 = vld [vmem:[%s2] sm:$0x1]
  %v554 = vperm.slane %v552, 0
  %v556 = vadd.f32 %v545, %v554
  %v557 = vadd.f32 %v546, %v554
  %v558 = vadd.f32 %v547, %v554
  %v559 = vadd.f32 %v548, %v554
  %v560 = vadd.f32 %v549, %v554
  %v561 = vadd.f32 %v550, %v554
  %v562 = vadd.f32 %v551, %v554
  %v563 = vmax.f32 %v556, 0.0
  %v564 = vmax.f32 %v557, 0.0
  %v565 = vmax.f32 %v558, 0.0
  %v566 = vmax.f32 %v559, 0.0
  %v567 = vmax.f32 %v560, 0.0
  %v568 = vmax.f32 %v561, 0.0
  %v569 = vmax.f32 %v562, 0.0
  %570 = vst [vmem:[%s3] sm:$0xff] %v563
  %571 = vst [vmem:[%s3 + $0x8] sm:$0xff] %v564
  %572 = vst [vmem:[%s3 + $0x10] sm:$0xff] %v565
  %573 = vst [vmem:[%s3 + $0x18] sm:$0xff] %v566
  %574 = vst [vmem:[%s3 + $0x20] sm:$0xff] %v567
  %575 = vst [vmem:[%s3 + $0x28] sm:$0xff] %v568
  %576 = vst [vmem:[%s3 + $0x30] sm:$0x3] %v569
  // Predicated region
  $region14: #{net_forward.4} parent=0 // pred_check
    _
  $region15: #{net_forward.4} parent=0 // pred_check_branch
    %578 = sbr.rel (0) target = $region17
  $region16: #{net_forward.4} parent=0 // pred_region
    _
  $region17: #{net_forward.4} parent=0 // pred_fallthru
    _
  // Predicated region
  $region18: #{net_forward.4} parent=0 // pred_check
    _
  $region19: #{net_forward.4} parent=0 // pred_check_branch
    %580 = sbr.rel (0) target = $region21
  $region20: #{net_forward.4} parent=0 // pred_region
    _
  $region21: #{net_forward.4} parent=0 // pred_fallthru
    _

// kernel: net_forward.5
$region0: #{net_forward.5}
  #allocation0 [shape = 'u32[]', space=smem, size = 0x4, offset = 0x4, fixed_abs, tag = 'smem constant byte address 0x4 - core index']
  #allocation1 [shape = 'u32[72,128]{1,0:T(1,128)}', space=vmem, size = 0x9000, scoped, tag = 'internal scratch']
  %s0 = inlined_call_operand.vmem [shape: bf16[2,3200], index: 0, kind: input, shape index: {}]
  %s1 = inlined_call_operand.vmem [shape: bf16[3200,128], index: 1, kind: input, shape index: {}]
  %s2 = inlined_call_operand.vmem [shape: f32[1,128], index: 2, kind: input, shape index: {}]
  %s3 = inlined_call_operand.vmem [shape: bf16[128,128], index: 3, kind: input, shape index: {}]
  %s4 = inlined_call_operand.vmem [shape: f32[1,128], index: 4, kind: input, shape index: {}]
  %s5 = inlined_call_operand.vmem [shape: bf16[128,128], index: 5, kind: input, shape index: {}]
  %s6 = inlined_call_operand.vmem [shape: f32[1,128], index: 6, kind: input, shape index: {}]
  %s7 = inlined_call_operand.hbm [shape: f32[2,128], index: 7, kind: output, shape index: {}]
  %s8 = sld [smem:[#allocation0]]
  $region38: #{net_forward.5} parent=0
    _
  %s10 = ssub.s32 1, %s8
  %s11 = scalar_select 0, %s10, %s8
  $region1: #{net_forward.5} parent=0
    #allocation2 [shape = 'u8[1024]{0}', space=vmem, size = 0x400, scoped, tag = 'output window, operand 0, single buffered']
    #allocation3 [shape = 's32[1]{0}', space=sflag, size = 0x4, scoped, tag = 'scoped memory for net_forward.5']
    %12 = vsyncpa [#allocation3], 0
    // Predicated region
    $region2: #{net_forward.5} parent=1 // pred_check
      _
    $region3: #{net_forward.5} parent=1 // pred_check_branch
      %14 = sbr.rel (0) target = $region5
    $region4: #{net_forward.5} parent=1 // pred_region
      _
    $region5: #{net_forward.5} parent=1 // pred_fallthru
      _
    // Predicated region
    $region6: #{net_forward.5} parent=1 // pred_check
      _
    $region7: #{net_forward.5} parent=1 // pred_check_branch
      %16 = sbr.rel (0) target = $region9
    $region8: #{net_forward.5} parent=1 // pred_region
      _
    $region9: #{net_forward.5} parent=1 // pred_fallthru
      _
    // Predicated region
    $region10: #{net_forward.5} parent=1 // pred_check
      _
    $region11: #{net_forward.5} parent=1 // pred_check_branch
      %18 = sbr.rel (0) target = $region13
    $region12: #{net_forward.5} parent=1 // pred_region
      _
    $region13: #{net_forward.5} parent=1 // pred_fallthru
      _
    // Predicated region
    $region14: #{net_forward.5} parent=1 // pred_check
      _
    $region15: #{net_forward.5} parent=1 // pred_check_branch
      %20 = sbr.rel (0) target = $region17
    $region16: #{net_forward.5} parent=1 // pred_region
      _
    $region17: #{net_forward.5} parent=1 // pred_fallthru
      _
    // Predicated region
    $region18: #{net_forward.5} parent=1 // pred_check
      _
    $region19: #{net_forward.5} parent=1 // pred_check_branch
      %22 = sbr.rel (0) target = $region21
    $region20: #{net_forward.5} parent=1 // pred_region
      _
    $region21: #{net_forward.5} parent=1 // pred_fallthru
      _
    // Predicated region
    $region22: #{net_forward.5} parent=1 // pred_check
      _
    $region23: #{net_forward.5} parent=1 // pred_check_branch
      %24 = sbr.rel (0) target = $region25
    $region24: #{net_forward.5} parent=1 // pred_region
      _
    $region25: #{net_forward.5} parent=1 // pred_fallthru
      _
    // Predicated region
    $region26: #{net_forward.5} parent=1 // pred_check
      _
    $region27: #{net_forward.5} parent=1 // pred_check_branch
      %26 = sbr.rel (0) target = $region29
    $region28: #{net_forward.5} parent=1 // pred_region
      _
    $region29: #{net_forward.5} parent=1 // pred_fallthru
      _
    %v27 = vld [vmem:[%s0] sm:$0xff]
    %v28 = vld [vmem:[%s0 + $0x8] sm:$0xff]
    %v29 = vld [vmem:[%s0 + $0x10] sm:$0xff]
    %v30 = vld [vmem:[%s0 + $0x18] sm:$0x1]
    %v31 = vld [vmem:[%s1] sm:$0xf]
    %v32 = vld [vmem:[%s1 + $0x4] sm:$0xf]
    %v33 = vld [vmem:[%s1 + $0x8] sm:$0xf]
    %v34 = vld [vmem:[%s1 + $0xc] sm:$0xf]
    %v35 = vld [vmem:[%s1 + $0x10] sm:$0xf]
    %v36 = vld [vmem:[%s1 + $0x14] sm:$0xf]
    %v37 = vld [vmem:[%s1 + $0x18] sm:$0xf]
    %v38 = vld [vmem:[%s1 + $0x1c] sm:$0xf]
    %v39 = vld [vmem:[%s1 + $0x20] sm:$0xf]
    %v40 = vld [vmem:[%s1 + $0x24] sm:$0xf]
    %v41 = vld [vmem:[%s1 + $0x28] sm:$0xf]
    %v42 = vld [vmem:[%s1 + $0x2c] sm:$0xf]
    %v43 = vld [vmem:[%s1 + $0x30] sm:$0xf]
    %v44 = vld [vmem:[%s1 + $0x34] sm:$0xf]
    %v45 = vld [vmem:[%s1 + $0x38] sm:$0xf]
    %v46 = vld [vmem:[%s1 + $0x3c] sm:$0xf]
    %v47 = vld [vmem:[%s1 + $0x40] sm:$0xf]
    %v48 = vld [vmem:[%s1 + $0x44] sm:$0xf]
    %v49 = vld [vmem:[%s1 + $0x48] sm:$0xf]
    %v50 = vld [vmem:[%s1 + $0x4c] sm:$0xf]
    %v51 = vld [vmem:[%s1 + $0x50] sm:$0xf]
    %v52 = vld [vmem:[%s1 + $0x54] sm:$0xf]
    %v53 = vld [vmem:[%s1 + $0x58] sm:$0xf]
    %v54 = vld [vmem:[%s1 + $0x5c] sm:$0xf]
    %v55 = vld [vmem:[%s1 + $0x60] sm:$0xf]
    %v56 = vld [vmem:[%s1 + $0x64] sm:$0xf]
    %v57 = vld [vmem:[%s1 + $0x68] sm:$0xf]
    %v58 = vld [vmem:[%s1 + $0x6c] sm:$0xf]
    %v59 = vld [vmem:[%s1 + $0x70] sm:$0xf]
    %v60 = vld [vmem:[%s1 + $0x74] sm:$0xf]
    %v61 = vld [vmem:[%s1 + $0x78] sm:$0xf]
    %v62 = vld [vmem:[%s1 + $0x7c] sm:$0xf]
    %v63 = vld [vmem:[%s1 + $0x80] sm:$0xf]
    %v64 = vld [vmem:[%s1 + $0x84] sm:$0xf]
    %v65 = vld [vmem:[%s1 + $0x88] sm:$0xf]
    %v66 = vld [vmem:[%s1 + $0x8c] sm:$0xf]
    %v67 = vld [vmem:[%s1 + $0x90] sm:$0xf]
    %v68 = vld [vmem:[%s1 + $0x94] sm:$0xf]
    %v69 = vld [vmem:[%s1 + $0x98] sm:$0xf]
    %v70 = vld [vmem:[%s1 + $0x9c] sm:$0xf]
    %v71 = vld [vmem:[%s1 + $0xa0] sm:$0xf]
    %v72 = vld [vmem:[%s1 + $0xa4] sm:$0xf]
    %v73 = vld [vmem:[%s1 + $0xa8] sm:$0xf]
    %v74 = vld [vmem:[%s1 + $0xac] sm:$0xf]
    %v75 = vld [vmem:[%s1 + $0xb0] sm:$0xf]
    %v76 = vld [vmem:[%s1 + $0xb4] sm:$0xf]
    %v77 = vld [vmem:[%s1 + $0xb8] sm:$0xf]
    %v78 = vld [vmem:[%s1 + $0xbc] sm:$0xf]
    %v79 = vld [vmem:[%s1 + $0xc0] sm:$0xf]
    %v80 = vld [vmem:[%s1 + $0xc4] sm:$0xf]
    %v81 = vld [vmem:[%s1 + $0xc8] sm:$0xf]
    %v82 = vld [vmem:[%s1 + $0xcc] sm:$0xf]
    %v83 = vld [vmem:[%s1 + $0xd0] sm:$0xf]
    %v84 = vld [vmem:[%s1 + $0xd4] sm:$0xf]
    %v85 = vld [vmem:[%s1 + $0xd8] sm:$0xf]
    %v86 = vld [vmem:[%s1 + $0xdc] sm:$0xf]
    %v87 = vld [vmem:[%s1 + $0xe0] sm:$0xf]
    %v88 = vld [vmem:[%s1 + $0xe4] sm:$0xf]
    %v89 = vld [vmem:[%s1 + $0xe8] sm:$0xf]
    %v90 = vld [vmem:[%s1 + $0xec] sm:$0xf]
    %v91 = vld [vmem:[%s1 + $0xf0] sm:$0xf]
    %v92 = vld [vmem:[%s1 + $0xf4] sm:$0xf]
    %v93 = vld [vmem:[%s1 + $0xf8] sm:$0xf]
    %v94 = vld [vmem:[%s1 + $0xfc] sm:$0xf]
    %v95 = vld [vmem:[%s1 + $0x100] sm:$0xf]
    %v96 = vld [vmem:[%s1 + $0x104] sm:$0xf]
    %v97 = vld [vmem:[%s1 + $0x108] sm:$0xf]
    %v98 = vld [vmem:[%s1 + $0x10c] sm:$0xf]
    %v99 = vld [vmem:[%s1 + $0x110] sm:$0xf]
    %v100 = vld [vmem:[%s1 + $0x114] sm:$0xf]
    %v101 = vld [vmem:[%s1 + $0x118] sm:$0xf]
    %v102 = vld [vmem:[%s1 + $0x11c] sm:$0xf]
    %v103 = vld [vmem:[%s1 + $0x120] sm:$0xf]
    %v104 = vld [vmem:[%s1 + $0x124] sm:$0xf]
    %v105 = vld [vmem:[%s1 + $0x128] sm:$0xf]
    %v106 = vld [vmem:[%s1 + $0x12c] sm:$0xf]
    %v107 = vld [vmem:[%s1 + $0x130] sm:$0xf]
    %v108 = vld [vmem:[%s1 + $0x134] sm:$0xf]
    %v109 = vld [vmem:[%s1 + $0x138] sm:$0xf]
    %v110 = vld [vmem:[%s1 + $0x13c] sm:$0xf]
    %v111 = vld [vmem:[%s1 + $0x140] sm:$0xf]
    %v112 = vld [vmem:[%s1 + $0x144] sm:$0xf]
    %v113 = vld [vmem:[%s1 + $0x148] sm:$0xf]
    %v114 = vld [vmem:[%s1 + $0x14c] sm:$0xf]
    %v115 = vld [vmem:[%s1 + $0x150] sm:$0xf]
    %v116 = vld [vmem:[%s1 + $0x154] sm:$0xf]
    %v117 = vld [vmem:[%s1 + $0x158] sm:$0xf]
    %v118 = vld [vmem:[%s1 + $0x15c] sm:$0xf]
    %v119 = vld [vmem:[%s1 + $0x160] sm:$0xf]
    %v120 = vld [vmem:[%s1 + $0x164] sm:$0xf]
    %v121 = vld [vmem:[%s1 + $0x168] sm:$0xf]
    %v122 = vld [vmem:[%s1 + $0x16c] sm:$0xf]
    %v123 = vld [vmem:[%s1 + $0x170] sm:$0xf]
    %v124 = vld [vmem:[%s1 + $0x174] sm:$0xf]
    %v125 = vld [vmem:[%s1 + $0x178] sm:$0xf]
    %v126 = vld [vmem:[%s1 + $0x17c] sm:$0xf]
    %v127 = vld [vmem:[%s1 + $0x180] sm:$0xf]
    %v128 = vld [vmem:[%s1 + $0x184] sm:$0xf]
    %v129 = vld [vmem:[%s1 + $0x188] sm:$0xf]
    %v130 = vld [vmem:[%s1 + $0x18c] sm:$0xf]
    %v131 = vld [vmem:[%s1 + $0x190] sm:$0xf]
    %v132 = vld [vmem:[%s1 + $0x194] sm:$0xf]
    %v133 = vld [vmem:[%s1 + $0x198] sm:$0xf]
    %v134 = vld [vmem:[%s1 + $0x19c] sm:$0xf]
    %v135 = vld [vmem:[%s1 + $0x1a0] sm:$0xf]
    %v136 = vld [vmem:[%s1 + $0x1a4] sm:$0xf]
    %v137 = vld [vmem:[%s1 + $0x1a8] sm:$0xf]
    %v138 = vld [vmem:[%s1 + $0x1ac] sm:$0xf]
    %v139 = vld [vmem:[%s1 + $0x1b0] sm:$0xf]
    %v140 = vld [vmem:[%s1 + $0x1b4] sm:$0xf]
    %v141 = vld [vmem:[%s1 + $0x1b8] sm:$0xf]
    %v142 = vld [vmem:[%s1 + $0x1bc] sm:$0xf]
    %v143 = vld [vmem:[%s1 + $0x1c0] sm:$0xf]
    %v144 = vld [vmem:[%s1 + $0x1c4] sm:$0xf]
    %v145 = vld [vmem:[%s1 + $0x1c8] sm:$0xf]
    %v146 = vld [vmem:[%s1 + $0x1cc] sm:$0xf]
    %v147 = vld [vmem:[%s1 + $0x1d0] sm:$0xf]
    %v148 = vld [vmem:[%s1 + $0x1d4] sm:$0xf]
    %v149 = vld [vmem:[%s1 + $0x1d8] sm:$0xf]
    %v150 = vld [vmem:[%s1 + $0x1dc] sm:$0xf]
    %v151 = vld [vmem:[%s1 + $0x1e0] sm:$0xf]
    %v152 = vld [vmem:[%s1 + $0x1e4] sm:$0xf]
    %v153 = vld [vmem:[%s1 + $0x1e8] sm:$0xf]
    %v154 = vld [vmem:[%s1 + $0x1ec] sm:$0xf]
    %v155 = vld [vmem:[%s1 + $0x1f0] sm:$0xf]
    %v156 = vld [vmem:[%s1 + $0x1f4] sm:$0xf]
    %v157 = vld [vmem:[%s1 + $0x1f8] sm:$0xf]
    %v158 = vld [vmem:[%s1 + $0x1fc] sm:$0xf]
    %v159 = vld [vmem:[%s1 + $0x200] sm:$0xf]
    %v160 = vld [vmem:[%s1 + $0x204] sm:$0xf]
    %v161 = vld [vmem:[%s1 + $0x208] sm:$0xf]
    %v162 = vld [vmem:[%s1 + $0x20c] sm:$0xf]
    %v163 = vld [vmem:[%s1 + $0x210] sm:$0xf]
    %v164 = vld [vmem:[%s1 + $0x214] sm:$0xf]
    %v165 = vld [vmem:[%s1 + $0x218] sm:$0xf]
    %v166 = vld [vmem:[%s1 + $0x21c] sm:$0xf]
    %v167 = vld [vmem:[%s1 + $0x220] sm:$0xf]
    %v168 = vld [vmem:[%s1 + $0x224] sm:$0xf]
    %v169 = vld [vmem:[%s1 + $0x228] sm:$0xf]
    %v170 = vld [vmem:[%s1 + $0x22c] sm:$0xf]
    %v171 = vld [vmem:[%s1 + $0x230] sm:$0xf]
    %v172 = vld [vmem:[%s1 + $0x234] sm:$0xf]
    %v173 = vld [vmem:[%s1 + $0x238] sm:$0xf]
    %v174 = vld [vmem:[%s1 + $0x23c] sm:$0xf]
    %v175 = vld [vmem:[%s1 + $0x240] sm:$0xf]
    %v176 = vld [vmem:[%s1 + $0x244] sm:$0xf]
    %v177 = vld [vmem:[%s1 + $0x248] sm:$0xf]
    %v178 = vld [vmem:[%s1 + $0x24c] sm:$0xf]
    %v179 = vld [vmem:[%s1 + $0x250] sm:$0xf]
    %v180 = vld [vmem:[%s1 + $0x254] sm:$0xf]
    %v181 = vld [vmem:[%s1 + $0x258] sm:$0xf]
    %v182 = vld [vmem:[%s1 + $0x25c] sm:$0xf]
    %v183 = vld [vmem:[%s1 + $0x260] sm:$0xf]
    %v184 = vld [vmem:[%s1 + $0x264] sm:$0xf]
    %v185 = vld [vmem:[%s1 + $0x268] sm:$0xf]
    %v186 = vld [vmem:[%s1 + $0x26c] sm:$0xf]
    %v187 = vld [vmem:[%s1 + $0x270] sm:$0xf]
    %v188 = vld [vmem:[%s1 + $0x274] sm:$0xf]
    %v189 = vld [vmem:[%s1 + $0x278] sm:$0xf]
    %v190 = vld [vmem:[%s1 + $0x27c] sm:$0xf]
    %v191 = vld [vmem:[%s1 + $0x280] sm:$0xf]
    %v192 = vld [vmem:[%s1 + $0x284] sm:$0xf]
    %v193 = vld [vmem:[%s1 + $0x288] sm:$0xf]
    %v194 = vld [vmem:[%s1 + $0x28c] sm:$0xf]
    %v195 = vld [vmem:[%s1 + $0x290] sm:$0xf]
    %v196 = vld [vmem:[%s1 + $0x294] sm:$0xf]
    %v197 = vld [vmem:[%s1 + $0x298] sm:$0xf]
    %v198 = vld [vmem:[%s1 + $0x29c] sm:$0xf]
    %v199 = vld [vmem:[%s1 + $0x2a0] sm:$0xf]
    %v200 = vld [vmem:[%s1 + $0x2a4] sm:$0xf]
    %v201 = vld [vmem:[%s1 + $0x2a8] sm:$0xf]
    %v202 = vld [vmem:[%s1 + $0x2ac] sm:$0xf]
    %v203 = vld [vmem:[%s1 + $0x2b0] sm:$0xf]
    %v204 = vld [vmem:[%s1 + $0x2b4] sm:$0xf]
    %v205 = vld [vmem:[%s1 + $0x2b8] sm:$0xf]
    %v206 = vld [vmem:[%s1 + $0x2bc] sm:$0xf]
    %v207 = vld [vmem:[%s1 + $0x2c0] sm:$0xf]
    %v208 = vld [vmem:[%s1 + $0x2c4] sm:$0xf]
    %v209 = vld [vmem:[%s1 + $0x2c8] sm:$0xf]
    %v210 = vld [vmem:[%s1 + $0x2cc] sm:$0xf]
    %v211 = vld [vmem:[%s1 + $0x2d0] sm:$0xf]
    %v212 = vld [vmem:[%s1 + $0x2d4] sm:$0xf]
    %v213 = vld [vmem:[%s1 + $0x2d8] sm:$0xf]
    %v214 = vld [vmem:[%s1 + $0x2dc] sm:$0xf]
    %v215 = vld [vmem:[%s1 + $0x2e0] sm:$0xf]
    %v216 = vld [vmem:[%s1 + $0x2e4] sm:$0xf]
    %v217 = vld [vmem:[%s1 + $0x2e8] sm:$0xf]
    %v218 = vld [vmem:[%s1 + $0x2ec] sm:$0xf]
    %v219 = vld [vmem:[%s1 + $0x2f0] sm:$0xf]
    %v220 = vld [vmem:[%s1 + $0x2f4] sm:$0xf]
    %v221 = vld [vmem:[%s1 + $0x2f8] sm:$0xf]
    %v222 = vld [vmem:[%s1 + $0x2fc] sm:$0xf]
    %v223 = vld [vmem:[%s1 + $0x300] sm:$0xf]
    %v224 = vld [vmem:[%s1 + $0x304] sm:$0xf]
    %v225 = vld [vmem:[%s1 + $0x308] sm:$0xf]
    %v226 = vld [vmem:[%s1 + $0x30c] sm:$0xf]
    %v227 = vld [vmem:[%s1 + $0x310] sm:$0xf]
    %v228 = vld [vmem:[%s1 + $0x314] sm:$0xf]
    %v229 = vld [vmem:[%s1 + $0x318] sm:$0xf]
    %v230 = vld [vmem:[%s1 + $0x31c] sm:$0xf]
    %v231 = vld [vmem:[%s1 + $0x320] sm:$0xf]
    %v232 = vld [vmem:[%s1 + $0x324] sm:$0xf]
    %v233 = vld [vmem:[%s1 + $0x328] sm:$0xf]
    %v234 = vld [vmem:[%s1 + $0x32c] sm:$0xf]
    %v235 = vld [vmem:[%s1 + $0x330] sm:$0xf]
    %v236 = vld [vmem:[%s1 + $0x334] sm:$0xf]
    %v237 = vld [vmem:[%s1 + $0x338] sm:$0xf]
    %v238 = vld [vmem:[%s1 + $0x33c] sm:$0xf]
    %v239 = vld [vmem:[%s1 + $0x340] sm:$0xf]
    %v240 = vld [vmem:[%s1 + $0x344] sm:$0xf]
    %v241 = vld [vmem:[%s1 + $0x348] sm:$0xf]
    %v242 = vld [vmem:[%s1 + $0x34c] sm:$0xf]
    %v243 = vld [vmem:[%s1 + $0x350] sm:$0xf]
    %v244 = vld [vmem:[%s1 + $0x354] sm:$0xf]
    %v245 = vld [vmem:[%s1 + $0x358] sm:$0xf]
    %v246 = vld [vmem:[%s1 + $0x35c] sm:$0xf]
    %v247 = vld [vmem:[%s1 + $0x360] sm:$0xf]
    %v248 = vld [vmem:[%s1 + $0x364] sm:$0xf]
    %v249 = vld [vmem:[%s1 + $0x368] sm:$0xf]
    %v250 = vld [vmem:[%s1 + $0x36c] sm:$0xf]
    %v251 = vld [vmem:[%s1 + $0x370] sm:$0xf]
    %v252 = vld [vmem:[%s1 + $0x374] sm:$0xf]
    %v253 = vld [vmem:[%s1 + $0x378] sm:$0xf]
    %v254 = vld [vmem:[%s1 + $0x37c] sm:$0xf]
    %v255 = vld [vmem:[%s1 + $0x380] sm:$0xf]
    %v256 = vld [vmem:[%s1 + $0x384] sm:$0xf]
    %v257 = vld [vmem:[%s1 + $0x388] sm:$0xf]
    %v258 = vld [vmem:[%s1 + $0x38c] sm:$0xf]
    %v259 = vld [vmem:[%s1 + $0x390] sm:$0xf]
    %v260 = vld [vmem:[%s1 + $0x394] sm:$0xf]
    %v261 = vld [vmem:[%s1 + $0x398] sm:$0xf]
    %v262 = vld [vmem:[%s1 + $0x39c] sm:$0xf]
    %v263 = vld [vmem:[%s1 + $0x3a0] sm:$0xf]
    %v264 = vld [vmem:[%s1 + $0x3a4] sm:$0xf]
    %v265 = vld [vmem:[%s1 + $0x3a8] sm:$0xf]
    %v266 = vld [vmem:[%s1 + $0x3ac] sm:$0xf]
    %v267 = vld [vmem:[%s1 + $0x3b0] sm:$0xf]
    %v268 = vld [vmem:[%s1 + $0x3b4] sm:$0xf]
    %v269 = vld [vmem:[%s1 + $0x3b8] sm:$0xf]
    %v270 = vld [vmem:[%s1 + $0x3bc] sm:$0xf]
    %v271 = vld [vmem:[%s1 + $0x3c0] sm:$0xf]
    %v272 = vld [vmem:[%s1 + $0x3c4] sm:$0xf]
    %v273 = vld [vmem:[%s1 + $0x3c8] sm:$0xf]
    %v274 = vld [vmem:[%s1 + $0x3cc] sm:$0xf]
    %v275 = vld [vmem:[%s1 + $0x3d0] sm:$0xf]
    %v276 = vld [vmem:[%s1 + $0x3d4] sm:$0xf]
    %v277 = vld [vmem:[%s1 + $0x3d8] sm:$0xf]
    %v278 = vld [vmem:[%s1 + $0x3dc] sm:$0xf]
    %v279 = vld [vmem:[%s1 + $0x3e0] sm:$0xf]
    %v280 = vld [vmem:[%s1 + $0x3e4] sm:$0xf]
    %v281 = vld [vmem:[%s1 + $0x3e8] sm:$0xf]
    %v282 = vld [vmem:[%s1 + $0x3ec] sm:$0xf]
    %v283 = vld [vmem:[%s1 + $0x3f0] sm:$0xf]
    %v284 = vld [vmem:[%s1 + $0x3f4] sm:$0xf]
    %v285 = vld [vmem:[%s1 + $0x3f8] sm:$0xf]
    %v286 = vld [vmem:[%s1 + $0x3fc] sm:$0xf]
    %v287 = vld [vmem:[%s1 + $0x400] sm:$0xf]
    %v288 = vld [vmem:[%s1 + $0x404] sm:$0xf]
    %v289 = vld [vmem:[%s1 + $0x408] sm:$0xf]
    %v290 = vld [vmem:[%s1 + $0x40c] sm:$0xf]
    %v291 = vld [vmem:[%s1 + $0x410] sm:$0xf]
    %v292 = vld [vmem:[%s1 + $0x414] sm:$0xf]
    %v293 = vld [vmem:[%s1 + $0x418] sm:$0xf]
    %v294 = vld [vmem:[%s1 + $0x41c] sm:$0xf]
    %v295 = vld [vmem:[%s1 + $0x420] sm:$0xf]
    %v296 = vld [vmem:[%s1 + $0x424] sm:$0xf]
    %v297 = vld [vmem:[%s1 + $0x428] sm:$0xf]
    %v298 = vld [vmem:[%s1 + $0x42c] sm:$0xf]
    %v299 = vld [vmem:[%s1 + $0x430] sm:$0xf]
    %v300 = vld [vmem:[%s1 + $0x434] sm:$0xf]
    %v301 = vld [vmem:[%s1 + $0x438] sm:$0xf]
    %v302 = vld [vmem:[%s1 + $0x43c] sm:$0xf]
    %v303 = vld [vmem:[%s1 + $0x440] sm:$0xf]
    %v304 = vld [vmem:[%s1 + $0x444] sm:$0xf]
    %v305 = vld [vmem:[%s1 + $0x448] sm:$0xf]
    %v306 = vld [vmem:[%s1 + $0x44c] sm:$0xf]
    %v307 = vld [vmem:[%s1 + $0x450] sm:$0xf]
    %v308 = vld [vmem:[%s1 + $0x454] sm:$0xf]
    %v309 = vld [vmem:[%s1 + $0x458] sm:$0xf]
    %v310 = vld [vmem:[%s1 + $0x45c] sm:$0xf]
    %v311 = vld [vmem:[%s1 + $0x460] sm:$0xf]
    %v312 = vld [vmem:[%s1 + $0x464] sm:$0xf]
    %v313 = vld [vmem:[%s1 + $0x468] sm:$0xf]
    %v314 = vld [vmem:[%s1 + $0x46c] sm:$0xf]
    %v315 = vld [vmem:[%s1 + $0x470] sm:$0xf]
    %v316 = vld [vmem:[%s1 + $0x474] sm:$0xf]
    %v317 = vld [vmem:[%s1 + $0x478] sm:$0xf]
    %v318 = vld [vmem:[%s1 + $0x47c] sm:$0xf]
    %v319 = vld [vmem:[%s1 + $0x480] sm:$0xf]
    %v320 = vld [vmem:[%s1 + $0x484] sm:$0xf]
    %v321 = vld [vmem:[%s1 + $0x488] sm:$0xf]
    %v322 = vld [vmem:[%s1 + $0x48c] sm:$0xf]
    %v323 = vld [vmem:[%s1 + $0x490] sm:$0xf]
    %v324 = vld [vmem:[%s1 + $0x494] sm:$0xf]
    %v325 = vld [vmem:[%s1 + $0x498] sm:$0xf]
    %v326 = vld [vmem:[%s1 + $0x49c] sm:$0xf]
    %v327 = vld [vmem:[%s1 + $0x4a0] sm:$0xf]
    %v328 = vld [vmem:[%s1 + $0x4a4] sm:$0xf]
    %v329 = vld [vmem:[%s1 + $0x4a8] sm:$0xf]
    %v330 = vld [vmem:[%s1 + $0x4ac] sm:$0xf]
    %v331 = vld [vmem:[%s1 + $0x4b0] sm:$0xf]
    %v332 = vld [vmem:[%s1 + $0x4b4] sm:$0xf]
    %v333 = vld [vmem:[%s1 + $0x4b8] sm:$0xf]
    %v334 = vld [vmem:[%s1 + $0x4bc] sm:$0xf]
    %v335 = vld [vmem:[%s1 + $0x4c0] sm:$0xf]
    %v336 = vld [vmem:[%s1 + $0x4c4] sm:$0xf]
    %v337 = vld [vmem:[%s1 + $0x4c8] sm:$0xf]
    %v338 = vld [vmem:[%s1 + $0x4cc] sm:$0xf]
    %v339 = vld [vmem:[%s1 + $0x4d0] sm:$0xf]
    %v340 = vld [vmem:[%s1 + $0x4d4] sm:$0xf]
    %v341 = vld [vmem:[%s1 + $0x4d8] sm:$0xf]
    %v342 = vld [vmem:[%s1 + $0x4dc] sm:$0xf]
    %v343 = vld [vmem:[%s1 + $0x4e0] sm:$0xf]
    %v344 = vld [vmem:[%s1 + $0x4e4] sm:$0xf]
    %v345 = vld [vmem:[%s1 + $0x4e8] sm:$0xf]
    %v346 = vld [vmem:[%s1 + $0x4ec] sm:$0xf]
    %v347 = vld [vmem:[%s1 + $0x4f0] sm:$0xf]
    %v348 = vld [vmem:[%s1 + $0x4f4] sm:$0xf]
    %v349 = vld [vmem:[%s1 + $0x4f8] sm:$0xf]
    %v350 = vld [vmem:[%s1 + $0x4fc] sm:$0xf]
    %v351 = vld [vmem:[%s1 + $0x500] sm:$0xf]
    %v352 = vld [vmem:[%s1 + $0x504] sm:$0xf]
    %v353 = vld [vmem:[%s1 + $0x508] sm:$0xf]
    %v354 = vld [vmem:[%s1 + $0x50c] sm:$0xf]
    %v355 = vld [vmem:[%s1 + $0x510] sm:$0xf]
    %v356 = vld [vmem:[%s1 + $0x514] sm:$0xf]
    %v357 = vld [vmem:[%s1 + $0x518] sm:$0xf]
    %v358 = vld [vmem:[%s1 + $0x51c] sm:$0xf]
    %v359 = vld [vmem:[%s1 + $0x520] sm:$0xf]
    %v360 = vld [vmem:[%s1 + $0x524] sm:$0xf]
    %v361 = vld [vmem:[%s1 + $0x528] sm:$0xf]
    %v362 = vld [vmem:[%s1 + $0x52c] sm:$0xf]
    %v363 = vld [vmem:[%s1 + $0x530] sm:$0xf]
    %v364 = vld [vmem:[%s1 + $0x534] sm:$0xf]
    %v365 = vld [vmem:[%s1 + $0x538] sm:$0xf]
    %v366 = vld [vmem:[%s1 + $0x53c] sm:$0xf]
    %v367 = vld [vmem:[%s1 + $0x540] sm:$0xf]
    %v368 = vld [vmem:[%s1 + $0x544] sm:$0xf]
    %v369 = vld [vmem:[%s1 + $0x548] sm:$0xf]
    %v370 = vld [vmem:[%s1 + $0x54c] sm:$0xf]
    %v371 = vld [vmem:[%s1 + $0x550] sm:$0xf]
    %v372 = vld [vmem:[%s1 + $0x554] sm:$0xf]
    %v373 = vld [vmem:[%s1 + $0x558] sm:$0xf]
    %v374 = vld [vmem:[%s1 + $0x55c] sm:$0xf]
    %v375 = vld [vmem:[%s1 + $0x560] sm:$0xf]
    %v376 = vld [vmem:[%s1 + $0x564] sm:$0xf]
    %v377 = vld [vmem:[%s1 + $0x568] sm:$0xf]
    %v378 = vld [vmem:[%s1 + $0x56c] sm:$0xf]
    %v379 = vld [vmem:[%s1 + $0x570] sm:$0xf]
    %v380 = vld [vmem:[%s1 + $0x574] sm:$0xf]
    %v381 = vld [vmem:[%s1 + $0x578] sm:$0xf]
    %v382 = vld [vmem:[%s1 + $0x57c] sm:$0xf]
    %v383 = vld [vmem:[%s1 + $0x580] sm:$0xf]
    %v384 = vld [vmem:[%s1 + $0x584] sm:$0xf]
    %v385 = vld [vmem:[%s1 + $0x588] sm:$0xf]
    %v386 = vld [vmem:[%s1 + $0x58c] sm:$0xf]
    %v387 = vld [vmem:[%s1 + $0x590] sm:$0xf]
    %v388 = vld [vmem:[%s1 + $0x594] sm:$0xf]
    %v389 = vld [vmem:[%s1 + $0x598] sm:$0xf]
    %v390 = vld [vmem:[%s1 + $0x59c] sm:$0xf]
    %v391 = vld [vmem:[%s1 + $0x5a0] sm:$0xf]
    %v392 = vld [vmem:[%s1 + $0x5a4] sm:$0xf]
    %v393 = vld [vmem:[%s1 + $0x5a8] sm:$0xf]
    %v394 = vld [vmem:[%s1 + $0x5ac] sm:$0xf]
    %v395 = vld [vmem:[%s1 + $0x5b0] sm:$0xf]
    %v396 = vld [vmem:[%s1 + $0x5b4] sm:$0xf]
    %v397 = vld [vmem:[%s1 + $0x5b8] sm:$0xf]
    %v398 = vld [vmem:[%s1 + $0x5bc] sm:$0xf]
    %v399 = vld [vmem:[%s1 + $0x5c0] sm:$0xf]
    %v400 = vld [vmem:[%s1 + $0x5c4] sm:$0xf]
    %v401 = vld [vmem:[%s1 + $0x5c8] sm:$0xf]
    %v402 = vld [vmem:[%s1 + $0x5cc] sm:$0xf]
    %v403 = vld [vmem:[%s1 + $0x5d0] sm:$0xf]
    %v404 = vld [vmem:[%s1 + $0x5d4] sm:$0xf]
    %v405 = vld [vmem:[%s1 + $0x5d8] sm:$0xf]
    %v406 = vld [vmem:[%s1 + $0x5dc] sm:$0xf]
    %v407 = vld [vmem:[%s1 + $0x5e0] sm:$0xf]
    %v408 = vld [vmem:[%s1 + $0x5e4] sm:$0xf]
    %v409 = vld [vmem:[%s1 + $0x5e8] sm:$0xf]
    %v410 = vld [vmem:[%s1 + $0x5ec] sm:$0xf]
    %v411 = vld [vmem:[%s1 + $0x5f0] sm:$0xf]
    %v412 = vld [vmem:[%s1 + $0x5f4] sm:$0xf]
    %v413 = vld [vmem:[%s1 + $0x5f8] sm:$0xf]
    %v414 = vld [vmem:[%s1 + $0x5fc] sm:$0xf]
    %v415 = vld [vmem:[%s1 + $0x600] sm:$0xf]
    %v416 = vld [vmem:[%s1 + $0x604] sm:$0xf]
    %v417 = vld [vmem:[%s1 + $0x608] sm:$0xf]
    %v418 = vld [vmem:[%s1 + $0x60c] sm:$0xf]
    %v419 = vld [vmem:[%s1 + $0x610] sm:$0xf]
    %v420 = vld [vmem:[%s1 + $0x614] sm:$0xf]
    %v421 = vld [vmem:[%s1 + $0x618] sm:$0xf]
    %v422 = vld [vmem:[%s1 + $0x61c] sm:$0xf]
    %v423 = vld [vmem:[%s1 + $0x620] sm:$0xf]
    %v424 = vld [vmem:[%s1 + $0x624] sm:$0xf]
    %v425 = vld [vmem:[%s1 + $0x628] sm:$0xf]
    %v426 = vld [vmem:[%s1 + $0x62c] sm:$0xf]
    %v427 = vld [vmem:[%s1 + $0x630] sm:$0xf]
    %v428 = vld [vmem:[%s1 + $0x634] sm:$0xf]
    %v429 = vld [vmem:[%s1 + $0x638] sm:$0xf]
    %v430 = vld [vmem:[%s1 + $0x63c] sm:$0xf]
    %v431 = vld [vmem:[%s2] sm:$0x1]
    %v433 = vperm.slane %v431, 0
    %436 = vst [vmem:[#allocation1] ss:$9 sm:$0xff] %v27
    %v437 = vld [vmem:[#allocation1] sm:$0xff]
    %v438 = vld [vmem:[#allocation1 + $0x9] sm:$0xff]
    %v439 = vld [vmem:[#allocation1 + $0x12] sm:$0xff]
    %v440 = vld [vmem:[#allocation1 + $0x1b] sm:$0xff]
    %v441 = vld [vmem:[#allocation1 + $0x24] sm:$0xff]
    %v442 = vld [vmem:[#allocation1 + $0x2d] sm:$0xff]
    %v443 = vld [vmem:[#allocation1 + $0x36] sm:$0xff]
    %v444 = vld [vmem:[#allocation1 + $0x3f] sm:$0xff]
    %446 = vst [vmem:[#allocation1] ss:$9 sm:$0xff] %v28
    %v447 = vld [vmem:[#allocation1] sm:$0xff]
    %v448 = vld [vmem:[#allocation1 + $0x9] sm:$0xff]
    %v449 = vld [vmem:[#allocation1 + $0x12] sm:$0xff]
    %v450 = vld [vmem:[#allocation1 + $0x1b] sm:$0xff]
    %v451 = vld [vmem:[#allocation1 + $0x24] sm:$0xff]
    %v452 = vld [vmem:[#allocation1 + $0x2d] sm:$0xff]
    %v453 = vld [vmem:[#allocation1 + $0x36] sm:$0xff]
    %v454 = vld [vmem:[#allocation1 + $0x3f] sm:$0xff]
    %456 = vst [vmem:[#allocation1] ss:$9 sm:$0xff] %v29
    %v457 = vld [vmem:[#allocation1] sm:$0xff]
    %v458 = vld [vmem:[#allocation1 + $0x9] sm:$0xff]
    %v459 = vld [vmem:[#allocation1 + $0x12] sm:$0xff]
    %v460 = vld [vmem:[#allocation1 + $0x1b] sm:$0xff]
    %v461 = vld [vmem:[#allocation1 + $0x24] sm:$0xff]
    %v462 = vld [vmem:[#allocation1 + $0x2d] sm:$0xff]
    %v463 = vld [vmem:[#allocation1 + $0x36] sm:$0xff]
    %v464 = vld [vmem:[#allocation1 + $0x3f] sm:$0xff]
    %466 = vst [vmem:[#allocation1] ss:$9 sm:$0xff] %v30
    %v467 = vld [vmem:[#allocation1] sm:$0xff]
    %v893 = vunpack.c.l.b16 %v31
    %v894 = vunpack.c.l.b16 %v32
    %v895 = vunpack.c.l.b16 %v33
    %v896 = vunpack.c.l.b16 %v34
    %v897 = vunpack.c.l.b16 %v35
    %v898 = vunpack.c.l.b16 %v36
    %v899 = vunpack.c.l.b16 %v37
    %v900 = vunpack.c.l.b16 %v38
    %v901 = vunpack.c.l.b16 %v39
    %v902 = vunpack.c.l.b16 %v40
    %v903 = vunpack.c.l.b16 %v41
    %v904 = vunpack.c.l.b16 %v42
    %v905 = vunpack.c.l.b16 %v43
    %v906 = vunpack.c.l.b16 %v44
    %v907 = vunpack.c.l.b16 %v45
    %v908 = vunpack.c.l.b16 %v46
    %v909 = vunpack.c.l.b16 %v47
    %v910 = vunpack.c.l.b16 %v48
    %v911 = vunpack.c.l.b16 %v49
    %v912 = vunpack.c.l.b16 %v50
    %v913 = vunpack.c.l.b16 %v51
    %v914 = vunpack.c.l.b16 %v52
    %v915 = vunpack.c.l.b16 %v53
    %v916 = vunpack.c.l.b16 %v54
    %v917 = vunpack.c.l.b16 %v55
    %v918 = vunpack.c.l.b16 %v56
    %v919 = vunpack.c.l.b16 %v57
    %v920 = vunpack.c.l.b16 %v58
    %v921 = vunpack.c.l.b16 %v59
    %v922 = vunpack.c.l.b16 %v60
    %v923 = vunpack.c.l.b16 %v61
    %v924 = vunpack.c.l.b16 %v62
    %v925 = vunpack.c.l.b16 %v63
    %v926 = vunpack.c.l.b16 %v64
    %v927 = vunpack.c.l.b16 %v65
    %v928 = vunpack.c.l.b16 %v66
    %v929 = vunpack.c.l.b16 %v67
    %v930 = vunpack.c.l.b16 %v68
    %v931 = vunpack.c.l.b16 %v69
    %v932 = vunpack.c.l.b16 %v70
    %v933 = vunpack.c.l.b16 %v71
    %v934 = vunpack.c.l.b16 %v72
    %v935 = vunpack.c.l.b16 %v73
    %v936 = vunpack.c.l.b16 %v74
    %v937 = vunpack.c.l.b16 %v75
    %v938 = vunpack.c.l.b16 %v76
    %v939 = vunpack.c.l.b16 %v77
    %v940 = vunpack.c.l.b16 %v78
    %v941 = vunpack.c.l.b16 %v79
    %v942 = vunpack.c.l.b16 %v80
    %v943 = vunpack.c.l.b16 %v81
    %v944 = vunpack.c.l.b16 %v82
    %v945 = vunpack.c.l.b16 %v83
    %v946 = vunpack.c.l.b16 %v84
    %v947 = vunpack.c.l.b16 %v85
    %v948 = vunpack.c.l.b16 %v86
    %v949 = vunpack.c.l.b16 %v87
    %v950 = vunpack.c.l.b16 %v88
    %v951 = vunpack.c.l.b16 %v89
    %v952 = vunpack.c.l.b16 %v90
    %v953 = vunpack.c.l.b16 %v91
    %v954 = vunpack.c.l.b16 %v92
    %v955 = vunpack.c.l.b16 %v93
    %v956 = vunpack.c.l.b16 %v94
    %v957 = vunpack.c.l.b16 %v95
    %v958 = vunpack.c.l.b16 %v96
    %v959 = vunpack.c.l.b16 %v97
    %v960 = vunpack.c.l.b16 %v98
    %v961 = vunpack.c.l.b16 %v99
    %v962 = vunpack.c.l.b16 %v100
    %v963 = vunpack.c.l.b16 %v101
    %v964 = vunpack.c.l.b16 %v102
    %v965 = vunpack.c.l.b16 %v103
    %v966 = vunpack.c.l.b16 %v104
    %v967 = vunpack.c.l.b16 %v105
    %v968 = vunpack.c.l.b16 %v106
    %v969 = vunpack.c.l.b16 %v107
    %v970 = vunpack.c.l.b16 %v108
    %v971 = vunpack.c.l.b16 %v109
    %v972 = vunpack.c.l.b16 %v110
    %v973 = vunpack.c.l.b16 %v111
    %v974 = vunpack.c.l.b16 %v112
    %v975 = vunpack.c.l.b16 %v113
    %v976 = vunpack.c.l.b16 %v114
    %v977 = vunpack.c.l.b16 %v115
    %v978 = vunpack.c.l.b16 %v116
    %v979 = vunpack.c.l.b16 %v117
    %v980 = vunpack.c.l.b16 %v118
    %v981 = vunpack.c.l.b16 %v119
    %v982 = vunpack.c.l.b16 %v120
    %v983 = vunpack.c.l.b16 %v121
    %v984 = vunpack.c.l.b16 %v122
    %v985 = vunpack.c.l.b16 %v123
    %v986 = vunpack.c.l.b16 %v124
    %v987 = vunpack.c.l.b16 %v125
    %v988 = vunpack.c.l.b16 %v126
    %v989 = vunpack.c.l.b16 %v127
    %v990 = vunpack.c.l.b16 %v128
    %v991 = vunpack.c.l.b16 %v129
    %v992 = vunpack.c.l.b16 %v130
    %v993 = vunpack.c.l.b16 %v131
    %v994 = vunpack.c.l.b16 %v132
    %v995 = vunpack.c.l.b16 %v133
    %v996 = vunpack.c.l.b16 %v134
    %v997 = vunpack.c.l.b16 %v135
    %v998 = vunpack.c.l.b16 %v136
    %v999 = vunpack.c.l.b16 %v137
    %v1000 = vunpack.c.l.b16 %v138
    %v1001 = vunpack.c.l.b16 %v139
    %v1002 = vunpack.c.l.b16 %v140
    %v1003 = vunpack.c.l.b16 %v141
    %v1004 = vunpack.c.l.b16 %v142
    %v1005 = vunpack.c.l.b16 %v143
    %v1006 = vunpack.c.l.b16 %v144
    %v1007 = vunpack.c.l.b16 %v145
    %v1008 = vunpack.c.l.b16 %v146
    %v1009 = vunpack.c.l.b16 %v147
    %v1010 = vunpack.c.l.b16 %v148
    %v1011 = vunpack.c.l.b16 %v149
    %v1012 = vunpack.c.l.b16 %v150
    %v1013 = vunpack.c.l.b16 %v151
    %v1014 = vunpack.c.l.b16 %v152
    %v1015 = vunpack.c.l.b16 %v153
    %v1016 = vunpack.c.l.b16 %v154
    %v1017 = vunpack.c.l.b16 %v155
    %v1018 = vunpack.c.l.b16 %v156
    %v1019 = vunpack.c.l.b16 %v157
    %v1020 = vunpack.c.l.b16 %v158
    %v1021 = vunpack.c.l.b16 %v159
    %v1022 = vunpack.c.l.b16 %v160
    %v1023 = vunpack.c.l.b16 %v161
    %v1024 = vunpack.c.l.b16 %v162
    %v1025 = vunpack.c.l.b16 %v163
    %v1026 = vunpack.c.l.b16 %v164
    %v1027 = vunpack.c.l.b16 %v165
    %v1028 = vunpack.c.l.b16 %v166
    %v1029 = vunpack.c.l.b16 %v167
    %v1030 = vunpack.c.l.b16 %v168
    %v1031 = vunpack.c.l.b16 %v169
    %v1032 = vunpack.c.l.b16 %v170
    %v1033 = vunpack.c.l.b16 %v171
    %v1034 = vunpack.c.l.b16 %v172
    %v1035 = vunpack.c.l.b16 %v173
    %v1036 = vunpack.c.l.b16 %v174
    %v1037 = vunpack.c.l.b16 %v175
    %v1038 = vunpack.c.l.b16 %v176
    %v1039 = vunpack.c.l.b16 %v177
    %v1040 = vunpack.c.l.b16 %v178
    %v1041 = vunpack.c.l.b16 %v179
    %v1042 = vunpack.c.l.b16 %v180
    %v1043 = vunpack.c.l.b16 %v181
    %v1044 = vunpack.c.l.b16 %v182
    %v1045 = vunpack.c.l.b16 %v183
    %v1046 = vunpack.c.l.b16 %v184
    %v1047 = vunpack.c.l.b16 %v185
    %v1048 = vunpack.c.l.b16 %v186
    %v1049 = vunpack.c.l.b16 %v187
    %v1050 = vunpack.c.l.b16 %v188
    %v1051 = vunpack.c.l.b16 %v189
    %v1052 = vunpack.c.l.b16 %v190
    %v1053 = vunpack.c.l.b16 %v191
    %v1054 = vunpack.c.l.b16 %v192
    %v1055 = vunpack.c.l.b16 %v193
    %v1056 = vunpack.c.l.b16 %v194
    %v1057 = vunpack.c.l.b16 %v195
    %v1058 = vunpack.c.l.b16 %v196
    %v1059 = vunpack.c.l.b16 %v197
    %v1060 = vunpack.c.l.b16 %v198
    %v1061 = vunpack.c.l.b16 %v199
    %v1062 = vunpack.c.l.b16 %v200
    %v1063 = vunpack.c.l.b16 %v201
    %v1064 = vunpack.c.l.b16 %v202
    %v1065 = vunpack.c.l.b16 %v203
    %v1066 = vunpack.c.l.b16 %v204
    %v1067 = vunpack.c.l.b16 %v205
    %v1068 = vunpack.c.l.b16 %v206
    %v1069 = vunpack.c.l.b16 %v207
    %v1070 = vunpack.c.l.b16 %v208
    %v1071 = vunpack.c.l.b16 %v209
    %v1072 = vunpack.c.l.b16 %v210
    %v1073 = vunpack.c.l.b16 %v211
    %v1074 = vunpack.c.l.b16 %v212
    %v1075 = vunpack.c.l.b16 %v213
    %v1076 = vunpack.c.l.b16 %v214
    %v1077 = vunpack.c.l.b16 %v215
    %v1078 = vunpack.c.l.b16 %v216
    %v1079 = vunpack.c.l.b16 %v217
    %v1080 = vunpack.c.l.b16 %v218
    %v1081 = vunpack.c.l.b16 %v219
    %v1082 = vunpack.c.l.b16 %v220
    %v1083 = vunpack.c.l.b16 %v221
    %v1084 = vunpack.c.l.b16 %v222
    %v1085 = vunpack.c.l.b16 %v223
    %v1086 = vunpack.c.l.b16 %v224
    %v1087 = vunpack.c.l.b16 %v225
    %v1088 = vunpack.c.l.b16 %v226
    %v1089 = vunpack.c.l.b16 %v227
    %v1090 = vunpack.c.l.b16 %v228
    %v1091 = vunpack.c.l.b16 %v229
    %v1092 = vunpack.c.l.b16 %v230
    %v1093 = vunpack.c.l.b16 %v231
    %v1094 = vunpack.c.l.b16 %v232
    %v1095 = vunpack.c.l.b16 %v233
    %v1096 = vunpack.c.l.b16 %v234
    %v1097 = vunpack.c.l.b16 %v235
    %v1098 = vunpack.c.l.b16 %v236
    %v1099 = vunpack.c.l.b16 %v237
    %v1100 = vunpack.c.l.b16 %v238
    %v1101 = vunpack.c.l.b16 %v239
    %v1102 = vunpack.c.l.b16 %v240
    %v1103 = vunpack.c.l.b16 %v241
    %v1104 = vunpack.c.l.b16 %v242
    %v1105 = vunpack.c.l.b16 %v243
    %v1106 = vunpack.c.l.b16 %v244
    %v1107 = vunpack.c.l.b16 %v245
    %v1108 = vunpack.c.l.b16 %v246
    %v1109 = vunpack.c.l.b16 %v247
    %v1110 = vunpack.c.l.b16 %v248
    %v1111 = vunpack.c.l.b16 %v249
    %v1112 = vunpack.c.l.b16 %v250
    %v1113 = vunpack.c.l.b16 %v251
    %v1114 = vunpack.c.l.b16 %v252
    %v1115 = vunpack.c.l.b16 %v253
    %v1116 = vunpack.c.l.b16 %v254
    %v1117 = vunpack.c.l.b16 %v255
    %v1118 = vunpack.c.l.b16 %v256
    %v1119 = vunpack.c.l.b16 %v257
    %v1120 = vunpack.c.l.b16 %v258
    %v1121 = vunpack.c.l.b16 %v259
    %v1122 = vunpack.c.l.b16 %v260
    %v1123 = vunpack.c.l.b16 %v261
    %v1124 = vunpack.c.l.b16 %v262
    %v1125 = vunpack.c.l.b16 %v263
    %v1126 = vunpack.c.l.b16 %v264
    %v1127 = vunpack.c.l.b16 %v265
    %v1128 = vunpack.c.l.b16 %v266
    %v1129 = vunpack.c.l.b16 %v267
    %v1130 = vunpack.c.l.b16 %v268
    %v1131 = vunpack.c.l.b16 %v269
    %v1132 = vunpack.c.l.b16 %v270
    %v1133 = vunpack.c.l.b16 %v271
    %v1134 = vunpack.c.l.b16 %v272
    %v1135 = vunpack.c.l.b16 %v273
    %v1136 = vunpack.c.l.b16 %v274
    %v1137 = vunpack.c.l.b16 %v275
    %v1138 = vunpack.c.l.b16 %v276
    %v1139 = vunpack.c.l.b16 %v277
    %v1140 = vunpack.c.l.b16 %v278
    %v1141 = vunpack.c.l.b16 %v279
    %v1142 = vunpack.c.l.b16 %v280
    %v1143 = vunpack.c.l.b16 %v281
    %v1144 = vunpack.c.l.b16 %v282
    %v1145 = vunpack.c.l.b16 %v283
    %v1146 = vunpack.c.l.b16 %v284
    %v1147 = vunpack.c.l.b16 %v285
    %v1148 = vunpack.c.l.b16 %v286
    %v1149 = vunpack.c.l.b16 %v287
    %v1150 = vunpack.c.l.b16 %v288
    %v1151 = vunpack.c.l.b16 %v289
    %v1152 = vunpack.c.l.b16 %v290
    %v1153 = vunpack.c.l.b16 %v291
    %v1154 = vunpack.c.l.b16 %v292
    %v1155 = vunpack.c.l.b16 %v293
    %v1156 = vunpack.c.l.b16 %v294
    %v1157 = vunpack.c.l.b16 %v295
    %v1158 = vunpack.c.l.b16 %v296
    %v1159 = vunpack.c.l.b16 %v297
    %v1160 = vunpack.c.l.b16 %v298
    %v1161 = vunpack.c.l.b16 %v299
    %v1162 = vunpack.c.l.b16 %v300
    %v1163 = vunpack.c.l.b16 %v301
    %v1164 = vunpack.c.l.b16 %v302
    %v1165 = vunpack.c.l.b16 %v303
    %v1166 = vunpack.c.l.b16 %v304
    %v1167 = vunpack.c.l.b16 %v305
    %v1168 = vunpack.c.l.b16 %v306
    %v1169 = vunpack.c.l.b16 %v307
    %v1170 = vunpack.c.l.b16 %v308
    %v1171 = vunpack.c.l.b16 %v309
    %v1172 = vunpack.c.l.b16 %v310
    %v1173 = vunpack.c.l.b16 %v311
    %v1174 = vunpack.c.l.b16 %v312
    %v1175 = vunpack.c.l.b16 %v313
    %v1176 = vunpack.c.l.b16 %v314
    %v1177 = vunpack.c.l.b16 %v315
    %v1178 = vunpack.c.l.b16 %v316
    %v1179 = vunpack.c.l.b16 %v317
    %v1180 = vunpack.c.l.b16 %v318
    %v1181 = vunpack.c.l.b16 %v319
    %v1182 = vunpack.c.l.b16 %v320
    %v1183 = vunpack.c.l.b16 %v321
    %v1184 = vunpack.c.l.b16 %v322
    %v1185 = vunpack.c.l.b16 %v323
    %v1186 = vunpack.c.l.b16 %v324
    %v1187 = vunpack.c.l.b16 %v325
    %v1188 = vunpack.c.l.b16 %v326
    %v1189 = vunpack.c.l.b16 %v327
    %v1190 = vunpack.c.l.b16 %v328
    %v1191 = vunpack.c.l.b16 %v329
    %v1192 = vunpack.c.l.b16 %v330
    %v1193 = vunpack.c.l.b16 %v331
    %v1194 = vunpack.c.l.b16 %v332
    %v1195 = vunpack.c.l.b16 %v333
    %v1196 = vunpack.c.l.b16 %v334
    %v1197 = vunpack.c.l.b16 %v335
    %v1198 = vunpack.c.l.b16 %v336
    %v1199 = vunpack.c.l.b16 %v337
    %v1200 = vunpack.c.l.b16 %v338
    %v1201 = vunpack.c.l.b16 %v339
    %v1202 = vunpack.c.l.b16 %v340
    %v1203 = vunpack.c.l.b16 %v341
    %v1204 = vunpack.c.l.b16 %v342
    %v1205 = vunpack.c.l.b16 %v343
    %v1206 = vunpack.c.l.b16 %v344
    %v1207 = vunpack.c.l.b16 %v345
    %v1208 = vunpack.c.l.b16 %v346
    %v1209 = vunpack.c.l.b16 %v347
    %v1210 = vunpack.c.l.b16 %v348
    %v1211 = vunpack.c.l.b16 %v349
    %v1212 = vunpack.c.l.b16 %v350
    %v1213 = vunpack.c.l.b16 %v351
    %v1214 = vunpack.c.l.b16 %v352
    %v1215 = vunpack.c.l.b16 %v353
    %v1216 = vunpack.c.l.b16 %v354
    %v1217 = vunpack.c.l.b16 %v355
    %v1218 = vunpack.c.l.b16 %v356
    %v1219 = vunpack.c.l.b16 %v357
    %v1220 = vunpack.c.l.b16 %v358
    %v1221 = vunpack.c.l.b16 %v359
    %v1222 = vunpack.c.l.b16 %v360
    %v1223 = vunpack.c.l.b16 %v361
    %v1224 = vunpack.c.l.b16 %v362
    %v1225 = vunpack.c.l.b16 %v363
    %v1226 = vunpack.c.l.b16 %v364
    %v1227 = vunpack.c.l.b16 %v365
    %v1228 = vunpack.c.l.b16 %v366
    %v1229 = vunpack.c.l.b16 %v367
    %v1230 = vunpack.c.l.b16 %v368
    %v1231 = vunpack.c.l.b16 %v369
    %v1232 = vunpack.c.l.b16 %v370
    %v1233 = vunpack.c.l.b16 %v371
    %v1234 = vunpack.c.l.b16 %v372
    %v1235 = vunpack.c.l.b16 %v373
    %v1236 = vunpack.c.l.b16 %v374
    %v1237 = vunpack.c.l.b16 %v375
    %v1238 = vunpack.c.l.b16 %v376
    %v1239 = vunpack.c.l.b16 %v377
    %v1240 = vunpack.c.l.b16 %v378
    %v1241 = vunpack.c.l.b16 %v379
    %v1242 = vunpack.c.l.b16 %v380
    %v1243 = vunpack.c.l.b16 %v381
    %v1244 = vunpack.c.l.b16 %v382
    %v1245 = vunpack.c.l.b16 %v383
    %v1246 = vunpack.c.l.b16 %v384
    %v1247 = vunpack.c.l.b16 %v385
    %v1248 = vunpack.c.l.b16 %v386
    %v1249 = vunpack.c.l.b16 %v387
    %v1250 = vunpack.c.l.b16 %v388
    %v1251 = vunpack.c.l.b16 %v389
    %v1252 = vunpack.c.l.b16 %v390
    %v1253 = vunpack.c.l.b16 %v391
    %v1254 = vunpack.c.l.b16 %v392
    %v1255 = vunpack.c.l.b16 %v393
    %v1256 = vunpack.c.l.b16 %v394
    %v1257 = vunpack.c.l.b16 %v395
    %v1258 = vunpack.c.l.b16 %v396
    %v1259 = vunpack.c.l.b16 %v397
    %v1260 = vunpack.c.l.b16 %v398
    %v1261 = vunpack.c.l.b16 %v399
    %v1262 = vunpack.c.l.b16 %v400
    %v1263 = vunpack.c.l.b16 %v401
    %v1264 = vunpack.c.l.b16 %v402
    %v1265 = vunpack.c.l.b16 %v403
    %v1266 = vunpack.c.l.b16 %v404
    %v1267 = vunpack.c.l.b16 %v405
    %v1268 = vunpack.c.l.b16 %v406
    %v1269 = vunpack.c.l.b16 %v407
    %v1270 = vunpack.c.l.b16 %v408
    %v1271 = vunpack.c.l.b16 %v409
    %v1272 = vunpack.c.l.b16 %v410
    %v1273 = vunpack.c.l.b16 %v411
    %v1274 = vunpack.c.l.b16 %v412
    %v1275 = vunpack.c.l.b16 %v413
    %v1276 = vunpack.c.l.b16 %v414
    %v1277 = vunpack.c.l.b16 %v415
    %v1278 = vunpack.c.l.b16 %v416
    %v1279 = vunpack.c.l.b16 %v417
    %v1280 = vunpack.c.l.b16 %v418
    %v1281 = vunpack.c.l.b16 %v419
    %v1282 = vunpack.c.l.b16 %v420
    %v1283 = vunpack.c.l.b16 %v421
    %v1284 = vunpack.c.l.b16 %v422
    %v1285 = vunpack.c.l.b16 %v423
    %v1286 = vunpack.c.l.b16 %v424
    %v1287 = vunpack.c.l.b16 %v425
    %v1288 = vunpack.c.l.b16 %v426
    %v1289 = vunpack.c.l.b16 %v427
    %v1290 = vunpack.c.l.b16 %v428
    %v1291 = vunpack.c.l.b16 %v429
    %v1292 = vunpack.c.l.b16 %v430
    %v1293 = vpack.c.b16 %v894, %v893
    %v1294 = vpack.c.b16 %v896, %v895
    %v1295 = vpack.c.b16 %v898, %v897
    %v1296 = vpack.c.b16 %v900, %v899
    %v1297 = vpack.c.b16 %v902, %v901
    %v1298 = vpack.c.b16 %v904, %v903
    %v1299 = vpack.c.b16 %v906, %v905
    %v1300 = vpack.c.b16 %v908, %v907
    %v1301 = vpack.c.b16 %v910, %v909
    %v1302 = vpack.c.b16 %v912, %v911
    %v1303 = vpack.c.b16 %v914, %v913
    %v1304 = vpack.c.b16 %v916, %v915
    %v1305 = vpack.c.b16 %v918, %v917
    %v1306 = vpack.c.b16 %v920, %v919
    %v1307 = vpack.c.b16 %v922, %v921
    %v1308 = vpack.c.b16 %v924, %v923
    %v1309 = vpack.c.b16 %v926, %v925
    %v1310 = vpack.c.b16 %v928, %v927
    %v1311 = vpack.c.b16 %v930, %v929
    %v1312 = vpack.c.b16 %v932, %v931
    %v1313 = vpack.c.b16 %v934, %v933
    %v1314 = vpack.c.b16 %v936, %v935
    %v1315 = vpack.c.b16 %v938, %v937
    %v1316 = vpack.c.b16 %v940, %v939
    %v1317 = vpack.c.b16 %v942, %v941
    %v1318 = vpack.c.b16 %v944, %v943
    %v1319 = vpack.c.b16 %v946, %v945
    %v1320 = vpack.c.b16 %v948, %v947
    %v1321 = vpack.c.b16 %v950, %v949
    %v1322 = vpack.c.b16 %v952, %v951
    %v1323 = vpack.c.b16 %v954, %v953
    %v1324 = vpack.c.b16 %v956, %v955
    %v1325 = vpack.c.b16 %v958, %v957
    %v1326 = vpack.c.b16 %v960, %v959
    %v1327 = vpack.c.b16 %v962, %v961
    %v1328 = vpack.c.b16 %v964, %v963
    %v1329 = vpack.c.b16 %v966, %v965
    %v1330 = vpack.c.b16 %v968, %v967
    %v1331 = vpack.c.b16 %v970, %v969
    %v1332 = vpack.c.b16 %v972, %v971
    %v1333 = vpack.c.b16 %v974, %v973
    %v1334 = vpack.c.b16 %v976, %v975
    %v1335 = vpack.c.b16 %v978, %v977
    %v1336 = vpack.c.b16 %v980, %v979
    %v1337 = vpack.c.b16 %v982, %v981
    %v1338 = vpack.c.b16 %v984, %v983
    %v1339 = vpack.c.b16 %v986, %v985
    %v1340 = vpack.c.b16 %v988, %v987
    %v1341 = vpack.c.b16 %v990, %v989
    %v1342 = vpack.c.b16 %v992, %v991
    %v1343 = vpack.c.b16 %v994, %v993
    %v1344 = vpack.c.b16 %v996, %v995
    %v1345 = vpack.c.b16 %v998, %v997
    %v1346 = vpack.c.b16 %v1000, %v999
    %v1347 = vpack.c.b16 %v1002, %v1001
    %v1348 = vpack.c.b16 %v1004, %v1003
    %v1349 = vpack.c.b16 %v1006, %v1005
    %v1350 = vpack.c.b16 %v1008, %v1007
    %v1351 = vpack.c.b16 %v1010, %v1009
    %v1352 = vpack.c.b16 %v1012, %v1011
    %v1353 = vpack.c.b16 %v1014, %v1013
    %v1354 = vpack.c.b16 %v1016, %v1015
    %v1355 = vpack.c.b16 %v1018, %v1017
    %v1356 = vpack.c.b16 %v1020, %v1019
    %v1357 = vpack.c.b16 %v1022, %v1021
    %v1358 = vpack.c.b16 %v1024, %v1023
    %v1359 = vpack.c.b16 %v1026, %v1025
    %v1360 = vpack.c.b16 %v1028, %v1027
    %v1361 = vpack.c.b16 %v1030, %v1029
    %v1362 = vpack.c.b16 %v1032, %v1031
    %v1363 = vpack.c.b16 %v1034, %v1033
    %v1364 = vpack.c.b16 %v1036, %v1035
    %v1365 = vpack.c.b16 %v1038, %v1037
    %v1366 = vpack.c.b16 %v1040, %v1039
    %v1367 = vpack.c.b16 %v1042, %v1041
    %v1368 = vpack.c.b16 %v1044, %v1043
    %v1369 = vpack.c.b16 %v1046, %v1045
    %v1370 = vpack.c.b16 %v1048, %v1047
    %v1371 = vpack.c.b16 %v1050, %v1049
    %v1372 = vpack.c.b16 %v1052, %v1051
    %v1373 = vpack.c.b16 %v1054, %v1053
    %v1374 = vpack.c.b16 %v1056, %v1055
    %v1375 = vpack.c.b16 %v1058, %v1057
    %v1376 = vpack.c.b16 %v1060, %v1059
    %v1377 = vpack.c.b16 %v1062, %v1061
    %v1378 = vpack.c.b16 %v1064, %v1063
    %v1379 = vpack.c.b16 %v1066, %v1065
    %v1380 = vpack.c.b16 %v1068, %v1067
    %v1381 = vpack.c.b16 %v1070, %v1069
    %v1382 = vpack.c.b16 %v1072, %v1071
    %v1383 = vpack.c.b16 %v1074, %v1073
    %v1384 = vpack.c.b16 %v1076, %v1075
    %v1385 = vpack.c.b16 %v1078, %v1077
    %v1386 = vpack.c.b16 %v1080, %v1079
    %v1387 = vpack.c.b16 %v1082, %v1081
    %v1388 = vpack.c.b16 %v1084, %v1083
    %v1389 = vpack.c.b16 %v1086, %v1085
    %v1390 = vpack.c.b16 %v1088, %v1087
    %v1391 = vpack.c.b16 %v1090, %v1089
    %v1392 = vpack.c.b16 %v1092, %v1091
    %v1393 = vpack.c.b16 %v1094, %v1093
    %v1394 = vpack.c.b16 %v1096, %v1095
    %v1395 = vpack.c.b16 %v1098, %v1097
    %v1396 = vpack.c.b16 %v1100, %v1099
    %v1397 = vpack.c.b16 %v1102, %v1101
    %v1398 = vpack.c.b16 %v1104, %v1103
    %v1399 = vpack.c.b16 %v1106, %v1105
    %v1400 = vpack.c.b16 %v1108, %v1107
    %v1401 = vpack.c.b16 %v1110, %v1109
    %v1402 = vpack.c.b16 %v1112, %v1111
    %v1403 = vpack.c.b16 %v1114, %v1113
    %v1404 = vpack.c.b16 %v1116, %v1115
    %v1405 = vpack.c.b16 %v1118, %v1117
    %v1406 = vpack.c.b16 %v1120, %v1119
    %v1407 = vpack.c.b16 %v1122, %v1121
    %v1408 = vpack.c.b16 %v1124, %v1123
    %v1409 = vpack.c.b16 %v1126, %v1125
    %v1410 = vpack.c.b16 %v1128, %v1127
    %v1411 = vpack.c.b16 %v1130, %v1129
    %v1412 = vpack.c.b16 %v1132, %v1131
    %v1413 = vpack.c.b16 %v1134, %v1133
    %v1414 = vpack.c.b16 %v1136, %v1135
    %v1415 = vpack.c.b16 %v1138, %v1137
    %v1416 = vpack.c.b16 %v1140, %v1139
    %v1417 = vpack.c.b16 %v1142, %v1141
    %v1418 = vpack.c.b16 %v1144, %v1143
    %v1419 = vpack.c.b16 %v1146, %v1145
    %v1420 = vpack.c.b16 %v1148, %v1147
    %v1421 = vpack.c.b16 %v1150, %v1149
    %v1422 = vpack.c.b16 %v1152, %v1151
    %v1423 = vpack.c.b16 %v1154, %v1153
    %v1424 = vpack.c.b16 %v1156, %v1155
    %v1425 = vpack.c.b16 %v1158, %v1157
    %v1426 = vpack.c.b16 %v1160, %v1159
    %v1427 = vpack.c.b16 %v1162, %v1161
    %v1428 = vpack.c.b16 %v1164, %v1163
    %v1429 = vpack.c.b16 %v1166, %v1165
    %v1430 = vpack.c.b16 %v1168, %v1167
    %v1431 = vpack.c.b16 %v1170, %v1169
    %v1432 = vpack.c.b16 %v1172, %v1171
    %v1433 = vpack.c.b16 %v1174, %v1173
    %v1434 = vpack.c.b16 %v1176, %v1175
    %v1435 = vpack.c.b16 %v1178, %v1177
    %v1436 = vpack.c.b16 %v1180, %v1179
    %v1437 = vpack.c.b16 %v1182, %v1181
    %v1438 = vpack.c.b16 %v1184, %v1183
    %v1439 = vpack.c.b16 %v1186, %v1185
    %v1440 = vpack.c.b16 %v1188, %v1187
    %v1441 = vpack.c.b16 %v1190, %v1189
    %v1442 = vpack.c.b16 %v1192, %v1191
    %v1443 = vpack.c.b16 %v1194, %v1193
    %v1444 = vpack.c.b16 %v1196, %v1195
    %v1445 = vpack.c.b16 %v1198, %v1197
    %v1446 = vpack.c.b16 %v1200, %v1199
    %v1447 = vpack.c.b16 %v1202, %v1201
    %v1448 = vpack.c.b16 %v1204, %v1203
    %v1449 = vpack.c.b16 %v1206, %v1205
    %v1450 = vpack.c.b16 %v1208, %v1207
    %v1451 = vpack.c.b16 %v1210, %v1209
    %v1452 = vpack.c.b16 %v1212, %v1211
    %v1453 = vpack.c.b16 %v1214, %v1213
    %v1454 = vpack.c.b16 %v1216, %v1215
    %v1455 = vpack.c.b16 %v1218, %v1217
    %v1456 = vpack.c.b16 %v1220, %v1219
    %v1457 = vpack.c.b16 %v1222, %v1221
    %v1458 = vpack.c.b16 %v1224, %v1223
    %v1459 = vpack.c.b16 %v1226, %v1225
    %v1460 = vpack.c.b16 %v1228, %v1227
    %v1461 = vpack.c.b16 %v1230, %v1229
    %v1462 = vpack.c.b16 %v1232, %v1231
    %v1463 = vpack.c.b16 %v1234, %v1233
    %v1464 = vpack.c.b16 %v1236, %v1235
    %v1465 = vpack.c.b16 %v1238, %v1237
    %v1466 = vpack.c.b16 %v1240, %v1239
    %v1467 = vpack.c.b16 %v1242, %v1241
    %v1468 = vpack.c.b16 %v1244, %v1243
    %v1469 = vpack.c.b16 %v1246, %v1245
    %v1470 = vpack.c.b16 %v1248, %v1247
    %v1471 = vpack.c.b16 %v1250, %v1249
    %v1472 = vpack.c.b16 %v1252, %v1251
    %v1473 = vpack.c.b16 %v1254, %v1253
    %v1474 = vpack.c.b16 %v1256, %v1255
    %v1475 = vpack.c.b16 %v1258, %v1257
    %v1476 = vpack.c.b16 %v1260, %v1259
    %v1477 = vpack.c.b16 %v1262, %v1261
    %v1478 = vpack.c.b16 %v1264, %v1263
    %v1479 = vpack.c.b16 %v1266, %v1265
    %v1480 = vpack.c.b16 %v1268, %v1267
    %v1481 = vpack.c.b16 %v1270, %v1269
    %v1482 = vpack.c.b16 %v1272, %v1271
    %v1483 = vpack.c.b16 %v1274, %v1273
    %v1484 = vpack.c.b16 %v1276, %v1275
    %v1485 = vpack.c.b16 %v1278, %v1277
    %v1486 = vpack.c.b16 %v1280, %v1279
    %v1487 = vpack.c.b16 %v1282, %v1281
    %v1488 = vpack.c.b16 %v1284, %v1283
    %v1489 = vpack.c.b16 %v1286, %v1285
    %v1490 = vpack.c.b16 %v1288, %v1287
    %v1491 = vpack.c.b16 %v1290, %v1289
    %v1492 = vpack.c.b16 %v1292, %v1291
    %1693 = vmatpush.bf16.msra.mxu0 %v1300
    %1694 = vmatpush.bf16.msra.mxu0 %v1299
    %1695 = vmatpush.bf16.msra.mxu0 %v1298
    %1696 = vmatpush.bf16.msra.mxu0 %v1297
    %1697 = vmatpush.bf16.msra.mxu0 %v1296
    %1698 = vmatpush.bf16.msra.mxu0 %v1295
    %1699 = vmatpush.bf16.msra.mxu0 %v1294
    %1700 = vmatpush.bf16.msra.mxu0 %v1293
    %1701 = vmatmul.bf16.gmra.mxu0 %v437
    %v1702 = vpop.f32.mrf.mxu0
    %v1703 = vadd.f32 %v433, %v1702
    %v1704 = vpop.f32.mrf.mxu0
    %1705 = vdwg.mxu0
    %1706 = vmatpush.bf16.msra.mxu0 %v1308
    %1707 = vmatpush.bf16.msra.mxu0 %v1307
    %1708 = vmatpush.bf16.msra.mxu0 %v1306
    %1709 = vmatpush.bf16.msra.mxu0 %v1305
    %1710 = vmatpush.bf16.msra.mxu0 %v1304
    %1711 = vmatpush.bf16.msra.mxu0 %v1303
    %1712 = vmatpush.bf16.msra.mxu0 %v1302
    %1713 = vmatpush.bf16.msra.mxu0 %v1301
    %1714 = vmatmul.bf16.gmra.mxu0 %v438
    %v1715 = vpop.f32.mrf.mxu0
    %v1716 = vadd.f32 %v1703, %v1715
    %v1717 = vpop.f32.mrf.mxu0
    %1718 = vdwg.mxu0
    %1719 = vmatpush.bf16.msra.mxu0 %v1316
    %1720 = vmatpush.bf16.msra.mxu0 %v1315
    %1721 = vmatpush.bf16.msra.mxu0 %v1314
    %1722 = vmatpush.bf16.msra.mxu0 %v1313
    %1723 = vmatpush.bf16.msra.mxu0 %v1312
    %1724 = vmatpush.bf16.msra.mxu0 %v1311
    %1725 = vmatpush.bf16.msra.mxu0 %v1310
    %1726 = vmatpush.bf16.msra.mxu0 %v1309
    %1727 = vmatmul.bf16.gmra.mxu0 %v439
    %v1728 = vpop.f32.mrf.mxu0
    %v1729 = vadd.f32 %v1716, %v1728
    %v1730 = vpop.f32.mrf.mxu0
    %1731 = vdwg.mxu0
    %1732 = vmatpush.bf16.msra.mxu0 %v1324
    %1733 = vmatpush.bf16.msra.mxu0 %v1323
    %1734 = vmatpush.bf16.msra.mxu0 %v1322
    %1735 = vmatpush.bf16.msra.mxu0 %v1321
    %1736 = vmatpush.bf16.msra.mxu0 %v1320
    %1737 = vmatpush.bf16.msra.mxu0 %v1319
    %1738 = vmatpush.bf16.msra.mxu0 %v1318
    %1739 = vmatpush.bf16.msra.mxu0 %v1317
    %1740 = vmatmul.bf16.gmra.mxu0 %v440
    %v1741 = vpop.f32.mrf.mxu0
    %v1742 = vadd.f32 %v1729, %v1741
    %v1743 = vpop.f32.mrf.mxu0
    %1744 = vdwg.mxu0
    %1745 = vmatpush.bf16.msra.mxu0 %v1332
    %1746 = vmatpush.bf16.msra.mxu0 %v1331
    %1747 = vmatpush.bf16.msra.mxu0 %v1330
    %1748 = vmatpush.bf16.msra.mxu0 %v1329
    %1749 = vmatpush.bf16.msra.mxu0 %v1328
    %1750 = vmatpush.bf16.msra.mxu0 %v1327
    %1751 = vmatpush.bf16.msra.mxu0 %v1326
    %1752 = vmatpush.bf16.msra.mxu0 %v1325
    %1753 = vmatmul.bf16.gmra.mxu0 %v441
    %v1754 = vpop.f32.mrf.mxu0
    %v1755 = vadd.f32 %v1742, %v1754
    %v1756 = vpop.f32.mrf.mxu0
    %1757 = vdwg.mxu0
    %1758 = vmatpush.bf16.msra.mxu0 %v1340
    %1759 = vmatpush.bf16.msra.mxu0 %v1339
    %1760 = vmatpush.bf16.msra.mxu0 %v1338
    %1761 = vmatpush.bf16.msra.mxu0 %v1337
    %1762 = vmatpush.bf16.msra.mxu0 %v1336
    %1763 = vmatpush.bf16.msra.mxu0 %v1335
    %1764 = vmatpush.bf16.msra.mxu0 %v1334
    %1765 = vmatpush.bf16.msra.mxu0 %v1333
    %1766 = vmatmul.bf16.gmra.mxu0 %v442
    %v1767 = vpop.f32.mrf.mxu0
    %v1768 = vadd.f32 %v1755, %v1767
    %v1769 = vpop.f32.mrf.mxu0
    %1770 = vdwg.mxu0
    %1771 = vmatpush.bf16.msra.mxu0 %v1348
    %1772 = vmatpush.bf16.msra.mxu0 %v1347
    %1773 = vmatpush.bf16.msra.mxu0 %v1346
    %1774 = vmatpush.bf16.msra.mxu0 %v1345
    %1775 = vmatpush.bf16.msra.mxu0 %v1344
    %1776 = vmatpush.bf16.msra.mxu0 %v1343
    %1777 = vmatpush.bf16.msra.mxu0 %v1342
    %1778 = vmatpush.bf16.msra.mxu0 %v1341
    %1779 = vmatmul.bf16.gmra.mxu0 %v443
    %v1780 = vpop.f32.mrf.mxu0
    %v1781 = vadd.f32 %v1768, %v1780
    %v1782 = vpop.f32.mrf.mxu0
    %1783 = vdwg.mxu0
    %1784 = vmatpush.bf16.msra.mxu0 %v1356
    %1785 = vmatpush.bf16.msra.mxu0 %v1355
    %1786 = vmatpush.bf16.msra.mxu0 %v1354
    %1787 = vmatpush.bf16.msra.mxu0 %v1353
    %1788 = vmatpush.bf16.msra.mxu0 %v1352
    %1789 = vmatpush.bf16.msra.mxu0 %v1351
    %1790 = vmatpush.bf16.msra.mxu0 %v1350
    %1791 = vmatpush.bf16.msra.mxu0 %v1349
    %1792 = vmatmul.bf16.gmra.mxu0 %v444
    %v1793 = vpop.f32.mrf.mxu0
    %v1794 = vadd.f32 %v1781, %v1793
    %v1795 = vpop.f32.mrf.mxu0
    %1796 = vdwg.mxu0
    %1797 = vmatpush.bf16.msra.mxu0 %v1364
    %1798 = vmatpush.bf16.msra.mxu0 %v1363
    %1799 = vmatpush.bf16.msra.mxu0 %v1362
    %1800 = vmatpush.bf16.msra.mxu0 %v1361
    %1801 = vmatpush.bf16.msra.mxu0 %v1360
    %1802 = vmatpush.bf16.msra.mxu0 %v1359
    %1803 = vmatpush.bf16.msra.mxu0 %v1358
    %1804 = vmatpush.bf16.msra.mxu0 %v1357
    %1805 = vmatmul.bf16.gmra.mxu0 %v447
    %v1806 = vpop.f32.mrf.mxu0
    %v1807 = vadd.f32 %v1794, %v1806
    %v1808 = vpop.f32.mrf.mxu0
    %1809 = vdwg.mxu0
    %1810 = vmatpush.bf16.msra.mxu0 %v1372
    %1811 = vmatpush.bf16.msra.mxu0 %v1371
    %1812 = vmatpush.bf16.msra.mxu0 %v1370
    %1813 = vmatpush.bf16.msra.mxu0 %v1369
    %1814 = vmatpush.bf16.msra.mxu0 %v1368
    %1815 = vmatpush.bf16.msra.mxu0 %v1367
    %1816 = vmatpush.bf16.msra.mxu0 %v1366
    %1817 = vmatpush.bf16.msra.mxu0 %v1365
    %1818 = vmatmul.bf16.gmra.mxu0 %v448
    %v1819 = vpop.f32.mrf.mxu0
    %v1820 = vadd.f32 %v1807, %v1819
    %v1821 = vpop.f32.mrf.mxu0
    %1822 = vdwg.mxu0
    %1823 = vmatpush.bf16.msra.mxu0 %v1380
    %1824 = vmatpush.bf16.msra.mxu0 %v1379
    %1825 = vmatpush.bf16.msra.mxu0 %v1378
    %1826 = vmatpush.bf16.msra.mxu0 %v1377
    %1827 = vmatpush.bf16.msra.mxu0 %v1376
    %1828 = vmatpush.bf16.msra.mxu0 %v1375
    %1829 = vmatpush.bf16.msra.mxu0 %v1374
    %1830 = vmatpush.bf16.msra.mxu0 %v1373
    %1831 = vmatmul.bf16.gmra.mxu0 %v449
    %v1832 = vpop.f32.mrf.mxu0
    %v1833 = vadd.f32 %v1820, %v1832
    %v1834 = vpop.f32.mrf.mxu0
    %1835 = vdwg.mxu0
    %1836 = vmatpush.bf16.msra.mxu0 %v1388
    %1837 = vmatpush.bf16.msra.mxu0 %v1387
    %1838 = vmatpush.bf16.msra.mxu0 %v1386
    %1839 = vmatpush.bf16.msra.mxu0 %v1385
    %1840 = vmatpush.bf16.msra.mxu0 %v1384
    %1841 = vmatpush.bf16.msra.mxu0 %v1383
    %1842 = vmatpush.bf16.msra.mxu0 %v1382
    %1843 = vmatpush.bf16.msra.mxu0 %v1381
    %1844 = vmatmul.bf16.gmra.mxu0 %v450
    %v1845 = vpop.f32.mrf.mxu0
    %v1846 = vadd.f32 %v1833, %v1845
    %v1847 = vpop.f32.mrf.mxu0
    %1848 = vdwg.mxu0
    %1849 = vmatpush.bf16.msra.mxu0 %v1396
    %1850 = vmatpush.bf16.msra.mxu0 %v1395
    %1851 = vmatpush.bf16.msra.mxu0 %v1394
    %1852 = vmatpush.bf16.msra.mxu0 %v1393
    %1853 = vmatpush.bf16.msra.mxu0 %v1392
    %1854 = vmatpush.bf16.msra.mxu0 %v1391
    %1855 = vmatpush.bf16.msra.mxu0 %v1390
    %1856 = vmatpush.bf16.msra.mxu0 %v1389
    %1857 = vmatmul.bf16.gmra.mxu0 %v451
    %v1858 = vpop.f32.mrf.mxu0
    %v1859 = vadd.f32 %v1846, %v1858
    %v1860 = vpop.f32.mrf.mxu0
    %1861 = vdwg.mxu0
    %1862 = vmatpush.bf16.msra.mxu0 %v1404
    %1863 = vmatpush.bf16.msra.mxu0 %v1403
    %1864 = vmatpush.bf16.msra.mxu0 %v1402
    %1865 = vmatpush.bf16.msra.mxu0 %v1401
    %1866 = vmatpush.bf16.msra.mxu0 %v1400
    %1867 = vmatpush.bf16.msra.mxu0 %v1399
    %1868 = vmatpush.bf16.msra.mxu0 %v1398
    %1869 = vmatpush.bf16.msra.mxu0 %v1397
    %1870 = vmatmul.bf16.gmra.mxu0 %v452
    %v1871 = vpop.f32.mrf.mxu0
    %v1872 = vadd.f32 %v1859, %v1871
    %v1873 = vpop.f32.mrf.mxu0
    %1874 = vdwg.mxu0
    %1875 = vmatpush.bf16.msra.mxu0 %v1412
    %1876 = vmatpush.bf16.msra.mxu0 %v1411
    %1877 = vmatpush.bf16.msra.mxu0 %v1410
    %1878 = vmatpush.bf16.msra.mxu0 %v1409
    %1879 = vmatpush.bf16.msra.mxu0 %v1408
    %1880 = vmatpush.bf16.msra.mxu0 %v1407
    %1881 = vmatpush.bf16.msra.mxu0 %v1406
    %1882 = vmatpush.bf16.msra.mxu0 %v1405
    %1883 = vmatmul.bf16.gmra.mxu0 %v453
    %v1884 = vpop.f32.mrf.mxu0
    %v1885 = vadd.f32 %v1872, %v1884
    %v1886 = vpop.f32.mrf.mxu0
    %1887 = vdwg.mxu0
    %1888 = vmatpush.bf16.msra.mxu0 %v1420
    %1889 = vmatpush.bf16.msra.mxu0 %v1419
    %1890 = vmatpush.bf16.msra.mxu0 %v1418
    %1891 = vmatpush.bf16.msra.mxu0 %v1417
    %1892 = vmatpush.bf16.msra.mxu0 %v1416
    %1893 = vmatpush.bf16.msra.mxu0 %v1415
    %1894 = vmatpush.bf16.msra.mxu0 %v1414
    %1895 = vmatpush.bf16.msra.mxu0 %v1413
    %1896 = vmatmul.bf16.gmra.mxu0 %v454
    %v1897 = vpop.f32.mrf.mxu0
    %v1898 = vadd.f32 %v1885, %v1897
    %v1899 = vpop.f32.mrf.mxu0
    %1900 = vdwg.mxu0
    %1901 = vmatpush.bf16.msra.mxu0 %v1428
    %1902 = vmatpush.bf16.msra.mxu0 %v1427
    %1903 = vmatpush.bf16.msra.mxu0 %v1426
    %1904 = vmatpush.bf16.msra.mxu0 %v1425
    %1905 = vmatpush.bf16.msra.mxu0 %v1424
    %1906 = vmatpush.bf16.msra.mxu0 %v1423
    %1907 = vmatpush.bf16.msra.mxu0 %v1422
    %1908 = vmatpush.bf16.msra.mxu0 %v1421
    %1909 = vmatmul.bf16.gmra.mxu0 %v457
    %v1910 = vpop.f32.mrf.mxu0
    %v1911 = vadd.f32 %v1898, %v1910
    %v1912 = vpop.f32.mrf.mxu0
    %1913 = vdwg.mxu0
    %1914 = vmatpush.bf16.msra.mxu0 %v1436
    %1915 = vmatpush.bf16.msra.mxu0 %v1435
    %1916 = vmatpush.bf16.msra.mxu0 %v1434
    %1917 = vmatpush.bf16.msra.mxu0 %v1433
    %1918 = vmatpush.bf16.msra.mxu0 %v1432
    %1919 = vmatpush.bf16.msra.mxu0 %v1431
    %1920 = vmatpush.bf16.msra.mxu0 %v1430
    %1921 = vmatpush.bf16.msra.mxu0 %v1429
    %1922 = vmatmul.bf16.gmra.mxu0 %v458
    %v1923 = vpop.f32.mrf.mxu0
    %v1924 = vadd.f32 %v1911, %v1923
    %v1925 = vpop.f32.mrf.mxu0
    %1926 = vdwg.mxu0
    %1927 = vmatpush.bf16.msra.mxu0 %v1444
    %1928 = vmatpush.bf16.msra.mxu0 %v1443
    %1929 = vmatpush.bf16.msra.mxu0 %v1442
    %1930 = vmatpush.bf16.msra.mxu0 %v1441
    %1931 = vmatpush.bf16.msra.mxu0 %v1440
    %1932 = vmatpush.bf16.msra.mxu0 %v1439
    %1933 = vmatpush.bf16.msra.mxu0 %v1438
    %1934 = vmatpush.bf16.msra.mxu0 %v1437
    %1935 = vmatmul.bf16.gmra.mxu0 %v459
    %v1936 = vpop.f32.mrf.mxu0
    %v1937 = vadd.f32 %v1924, %v1936
    %v1938 = vpop.f32.mrf.mxu0
    %1939 = vdwg.mxu0
    %1940 = vmatpush.bf16.msra.mxu0 %v1452
    %1941 = vmatpush.bf16.msra.mxu0 %v1451
    %1942 = vmatpush.bf16.msra.mxu0 %v1450
    %1943 = vmatpush.bf16.msra.mxu0 %v1449
    %1944 = vmatpush.bf16.msra.mxu0 %v1448
    %1945 = vmatpush.bf16.msra.mxu0 %v1447
    %1946 = vmatpush.bf16.msra.mxu0 %v1446
    %1947 = vmatpush.bf16.msra.mxu0 %v1445
    %1948 = vmatmul.bf16.gmra.mxu0 %v460
    %v1949 = vpop.f32.mrf.mxu0
    %v1950 = vadd.f32 %v1937, %v1949
    %v1951 = vpop.f32.mrf.mxu0
    %1952 = vdwg.mxu0
    %1953 = vmatpush.bf16.msra.mxu0 %v1460
    %1954 = vmatpush.bf16.msra.mxu0 %v1459
    %1955 = vmatpush.bf16.msra.mxu0 %v1458
    %1956 = vmatpush.bf16.msra.mxu0 %v1457
    %1957 = vmatpush.bf16.msra.mxu0 %v1456
    %1958 = vmatpush.bf16.msra.mxu0 %v1455
    %1959 = vmatpush.bf16.msra.mxu0 %v1454
    %1960 = vmatpush.bf16.msra.mxu0 %v1453
    %1961 = vmatmul.bf16.gmra.mxu0 %v461
    %v1962 = vpop.f32.mrf.mxu0
    %v1963 = vadd.f32 %v1950, %v1962
    %v1964 = vpop.f32.mrf.mxu0
    %1965 = vdwg.mxu0
    %1966 = vmatpush.bf16.msra.mxu0 %v1468
    %1967 = vmatpush.bf16.msra.mxu0 %v1467
    %1968 = vmatpush.bf16.msra.mxu0 %v1466
    %1969 = vmatpush.bf16.msra.mxu0 %v1465
    %1970 = vmatpush.bf16.msra.mxu0 %v1464
    %1971 = vmatpush.bf16.msra.mxu0 %v1463
    %1972 = vmatpush.bf16.msra.mxu0 %v1462
    %1973 = vmatpush.bf16.msra.mxu0 %v1461
    %1974 = vmatmul.bf16.gmra.mxu0 %v462
    %v1975 = vpop.f32.mrf.mxu0
    %v1976 = vadd.f32 %v1963, %v1975
    %v1977 = vpop.f32.mrf.mxu0
    %1978 = vdwg.mxu0
    %1979 = vmatpush.bf16.msra.mxu0 %v1476
    %1980 = vmatpush.bf16.msra.mxu0 %v1475
    %1981 = vmatpush.bf16.msra.mxu0 %v1474
    %1982 = vmatpush.bf16.msra.mxu0 %v1473
    %1983 = vmatpush.bf16.msra.mxu0 %v1472
    %1984 = vmatpush.bf16.msra.mxu0 %v1471
    %1985 = vmatpush.bf16.msra.mxu0 %v1470
    %1986 = vmatpush.bf16.msra.mxu0 %v1469
    %1987 = vmatmul.bf16.gmra.mxu0 %v463
    %v1988 = vpop.f32.mrf.mxu0
    %v1989 = vadd.f32 %v1976, %v1988
    %v1990 = vpop.f32.mrf.mxu0
    %1991 = vdwg.mxu0
    %1992 = vmatpush.bf16.msra.mxu0 %v1484
    %1993 = vmatpush.bf16.msra.mxu0 %v1483
    %1994 = vmatpush.bf16.msra.mxu0 %v1482
    %1995 = vmatpush.bf16.msra.mxu0 %v1481
    %1996 = vmatpush.bf16.msra.mxu0 %v1480
    %1997 = vmatpush.bf16.msra.mxu0 %v1479
    %1998 = vmatpush.bf16.msra.mxu0 %v1478
    %1999 = vmatpush.bf16.msra.mxu0 %v1477
    %2000 = vmatmul.bf16.gmra.mxu0 %v464
    %v2001 = vpop.f32.mrf.mxu0
    %v2002 = vadd.f32 %v1989, %v2001
    %v2003 = vpop.f32.mrf.mxu0
    %2004 = vdwg.mxu0
    %2005 = vmatpush.bf16.msra.mxu0 %v1492
    %2006 = vmatpush.bf16.msra.mxu0 %v1491
    %2007 = vmatpush.bf16.msra.mxu0 %v1490
    %2008 = vmatpush.bf16.msra.mxu0 %v1489
    %2009 = vmatpush.bf16.msra.mxu0 %v1488
    %2010 = vmatpush.bf16.msra.mxu0 %v1487
    %2011 = vmatpush.bf16.msra.mxu0 %v1486
    %2012 = vmatpush.bf16.msra.mxu0 %v1485
    %2013 = vmatmul.bf16.gmra.mxu0 %v467
    %v2014 = vpop.f32.mrf.mxu0
    %v2015 = vadd.f32 %v2002, %v2014
    %v2016 = vpop.f32.mrf.mxu0
    %2017 = vdwg.mxu0
    %v2018 = vmax.f32 %v2015, 0.0
    %v2019 = vpack.c.bf16 %v2018, %v2018
    %v2020 = vld [vmem:[%s3] sm:$0xf]
    %v2021 = vld [vmem:[%s3 + $0x4] sm:$0xf]
    %v2022 = vld [vmem:[%s3 + $0x8] sm:$0xf]
    %v2023 = vld [vmem:[%s3 + $0xc] sm:$0xf]
    %v2024 = vld [vmem:[%s3 + $0x10] sm:$0xf]
    %v2025 = vld [vmem:[%s3 + $0x14] sm:$0xf]
    %v2026 = vld [vmem:[%s3 + $0x18] sm:$0xf]
    %v2027 = vld [vmem:[%s3 + $0x1c] sm:$0xf]
    %v2028 = vld [vmem:[%s3 + $0x20] sm:$0xf]
    %v2029 = vld [vmem:[%s3 + $0x24] sm:$0xf]
    %v2030 = vld [vmem:[%s3 + $0x28] sm:$0xf]
    %v2031 = vld [vmem:[%s3 + $0x2c] sm:$0xf]
    %v2032 = vld [vmem:[%s3 + $0x30] sm:$0xf]
    %v2033 = vld [vmem:[%s3 + $0x34] sm:$0xf]
    %v2034 = vld [vmem:[%s3 + $0x38] sm:$0xf]
    %v2035 = vld [vmem:[%s3 + $0x3c] sm:$0xf]
    %v2036 = vld [vmem:[%s4] sm:$0x1]
    %v2038 = vperm.slane %v2036, 0
    %v2056 = vunpack.c.l.b16 %v2020
    %v2057 = vunpack.c.l.b16 %v2021
    %v2058 = vunpack.c.l.b16 %v2022
    %v2059 = vunpack.c.l.b16 %v2023
    %v2060 = vunpack.c.l.b16 %v2024
    %v2061 = vunpack.c.l.b16 %v2025
    %v2062 = vunpack.c.l.b16 %v2026
    %v2063 = vunpack.c.l.b16 %v2027
    %v2064 = vunpack.c.l.b16 %v2028
    %v2065 = vunpack.c.l.b16 %v2029
    %v2066 = vunpack.c.l.b16 %v2030
    %v2067 = vunpack.c.l.b16 %v2031
    %v2068 = vunpack.c.l.b16 %v2032
    %v2069 = vunpack.c.l.b16 %v2033
    %v2070 = vunpack.c.l.b16 %v2034
    %v2071 = vunpack.c.l.b16 %v2035
    %v2072 = vpack.c.b16 %v2057, %v2056
    %v2073 = vpack.c.b16 %v2059, %v2058
    %v2074 = vpack.c.b16 %v2061, %v2060
    %v2075 = vpack.c.b16 %v2063, %v2062
    %v2076 = vpack.c.b16 %v2065, %v2064
    %v2077 = vpack.c.b16 %v2067, %v2066
    %v2078 = vpack.c.b16 %v2069, %v2068
    %v2079 = vpack.c.b16 %v2071, %v2070
    %2088 = vmatpush.bf16.msra.mxu0 %v2079
    %2089 = vmatpush.bf16.msra.mxu0 %v2078
    %2090 = vmatpush.bf16.msra.mxu0 %v2077
    %2091 = vmatpush.bf16.msra.mxu0 %v2076
    %2092 = vmatpush.bf16.msra.mxu0 %v2075
    %2093 = vmatpush.bf16.msra.mxu0 %v2074
    %2094 = vmatpush.bf16.msra.mxu0 %v2073
    %2095 = vmatpush.bf16.msra.mxu0 %v2072
    %2096 = vmatmul.bf16.gmra.mxu0 %v2019
    %v2097 = vpop.f32.mrf.mxu0
    %v2098 = vadd.f32 %v2038, %v2097
    %v2099 = vpop.f32.mrf.mxu0
    %2100 = vdwg.mxu0
    %v2101 = vmax.f32 %v2098, 0.0
    %v2102 = vpack.c.bf16 %v2101, %v2101
    %v2103 = vld [vmem:[%s5] sm:$0xf]
    %v2104 = vld [vmem:[%s5 + $0x4] sm:$0xf]
    %v2105 = vld [vmem:[%s5 + $0x8] sm:$0xf]
    %v2106 = vld [vmem:[%s5 + $0xc] sm:$0xf]
    %v2107 = vld [vmem:[%s5 + $0x10] sm:$0xf]
    %v2108 = vld [vmem:[%s5 + $0x14] sm:$0xf]
    %v2109 = vld [vmem:[%s5 + $0x18] sm:$0xf]
    %v2110 = vld [vmem:[%s5 + $0x1c] sm:$0xf]
    %v2111 = vld [vmem:[%s5 + $0x20] sm:$0xf]
    %v2112 = vld [vmem:[%s5 + $0x24] sm:$0xf]
    %v2113 = vld [vmem:[%s5 + $0x28] sm:$0xf]
    %v2114 = vld [vmem:[%s5 + $0x2c] sm:$0xf]
    %v2115 = vld [vmem:[%s5 + $0x30] sm:$0xf]
    %v2116 = vld [vmem:[%s5 + $0x34] sm:$0xf]
    %v2117 = vld [vmem:[%s5 + $0x38] sm:$0xf]
    %v2118 = vld [vmem:[%s5 + $0x3c] sm:$0xf]
    %v2119 = vld [vmem:[%s6] sm:$0x1]
    %v2121 = vperm.slane %v2119, 0
    %v2139 = vunpack.c.l.b16 %v2103
    %v2140 = vunpack.c.l.b16 %v2104
    %v2141 = vunpack.c.l.b16 %v2105
    %v2142 = vunpack.c.l.b16 %v2106
    %v2143 = vunpack.c.l.b16 %v2107
    %v2144 = vunpack.c.l.b16 %v2108
    %v2145 = vunpack.c.l.b16 %v2109
    %v2146 = vunpack.c.l.b16 %v2110
    %v2147 = vunpack.c.l.b16 %v2111
    %v2148 = vunpack.c.l.b16 %v2112
    %v2149 = vunpack.c.l.b16 %v2113
    %v2150 = vunpack.c.l.b16 %v2114
    %v2151 = vunpack.c.l.b16 %v2115
    %v2152 = vunpack.c.l.b16 %v2116
    %v2153 = vunpack.c.l.b16 %v2117
    %v2154 = vunpack.c.l.b16 %v2118
    %v2155 = vpack.c.b16 %v2140, %v2139
    %v2156 = vpack.c.b16 %v2142, %v2141
    %v2157 = vpack.c.b16 %v2144, %v2143
    %v2158 = vpack.c.b16 %v2146, %v2145
    %v2159 = vpack.c.b16 %v2148, %v2147
    %v2160 = vpack.c.b16 %v2150, %v2149
    %v2161 = vpack.c.b16 %v2152, %v2151
    %v2162 = vpack.c.b16 %v2154, %v2153
    %2171 = vmatpush.bf16.msra.mxu0 %v2162
    %2172 = vmatpush.bf16.msra.mxu0 %v2161
    %2173 = vmatpush.bf16.msra.mxu0 %v2160
    %2174 = vmatpush.bf16.msra.mxu0 %v2159
    %2175 = vmatpush.bf16.msra.mxu0 %v2158
    %2176 = vmatpush.bf16.msra.mxu0 %v2157
    %2177 = vmatpush.bf16.msra.mxu0 %v2156
    %2178 = vmatpush.bf16.msra.mxu0 %v2155
    %2179 = vmatmul.bf16.gmra.mxu0 %v2102
    %v2180 = vpop.f32.mrf.mxu0
    %v2181 = vadd.f32 %v2121, %v2180
    %v2182 = vpop.f32.mrf.mxu0
    %2183 = vdwg.mxu0
    %2184 = vst [vmem:[#allocation2] sm:$0x3] %v2181
    // Predicated region
    $region30: #{net_forward.5} parent=1 // pred_check
      _
    $region31: #{net_forward.5} parent=1 // pred_check_branch
      %2186 = sbr.rel (0) target = $region33
    $region32: #{net_forward.5} parent=1 // pred_region
      %2188 = vsyncadd [#allocation3], 0
      %s2190 = sshll.u32 [#allocation2], 4
      %s2191 = int_to_ptr.vmem [resolvable:$true] %s2190
      %s2192 = sshll.u32 %s7, 4
      %s2193 = int_to_ptr.hbm [resolvable:$true] %s2192
      %2195 = dma.vmem_to_hbm [thread:$0]  %s2191, 32, %s2193, [#allocation3]
    $region33: #{net_forward.5} parent=1 // pred_fallthru
      _
    // Predicated region
    $region34: #{net_forward.5} parent=1 // pred_check
      _
    $region35: #{net_forward.5} parent=1 // pred_check_branch
      %2197 = sbr.rel (0) target = $region37
    $region36: #{net_forward.5} parent=1 // pred_region
      %2199 = dma.done [#allocation3], 32
    $region37: #{net_forward.5} parent=1 // pred_fallthru
      _
    %2200 = vsyncpa [#allocation3], 1

</llo_original>
